<compile_context>
chip_gen: v7x
topology: tpu7x:2x2x1
jax: 0.10.0
libtpu: 0.0.40
codegen_flags: <defaults>
</compile_context>

<pallas_src>
from functools import partial
from math import sqrt

import jax
import jax.numpy as jnp
from jax.experimental import pallas as pl
from jax.experimental.pallas import tpu as pltpu

DIM = 32
HEADS = 2
DIM_HEAD = 16
INNER = HEADS * DIM_HEAD            # 32
FF_MULT = 2
HIDDEN = DIM * FF_MULT              # 64
DEPTH = 2
LN_EPS = 1e-5
NEG_INF = -1e9
SCALE = 1.0 / sqrt(DIM_HEAD)


# ---------------------------------------------------------------------------
# Static packed-slab layout (shared by the host-side packer and the kernel)
# ---------------------------------------------------------------------------
def _offsets(sizes):
    offs, c = {}, 0
    for name, s in sizes:
        offs[name] = (c, c + s)
        c += s
    return offs, c


WIN_OFFS, WIN_COLS = _offsets([
    ("qkv_x", 3 * INNER), ("qkv_m", 3 * INNER),
    ("cq_x", INNER), ("ckv_x", 2 * INNER),
    ("cq_m", INNER), ("ckv_m", 2 * INNER),
    ("w1_x", HIDDEN), ("w1_m", HIDDEN),
])                                                    # WIN_COLS = 512

WOUT_OFFS, WOUT_ROWS = _offsets([
    ("wo_ax", INNER), ("wo_am", INNER), ("wo_cx", INNER), ("wo_cm", INNER),
    ("w2_x", HIDDEN), ("w2_m", HIDDEN),
])                                                    # WOUT_ROWS = 256

VROW = {name: i for i, name in enumerate([
    "ax_g", "ax_b", "am_g", "am_b",
    "cx_g", "cx_b", "cx_cg", "cx_cb",
    "cm_g", "cm_b", "cm_cg", "cm_cb",
    "fx_g", "fx_b", "fx_b2",
    "fm_g", "fm_b", "fm_b2",
    "fx_b1", "fm_b1",
])}
NV = len(VROW)                                        # 20


def _wi(win, name):
    lo, hi = WIN_OFFS[name]
    return win[:, lo:hi]


def _wo(wout, name):
    lo, hi = WOUT_OFFS[name]
    return wout[lo:hi, :]


def _vd(vec, name):                                   # (1, DIM) LN / bias vector
    r = VROW[name]
    return vec[r:r + 1, :DIM]


def _vh(vec, name):                                   # (1, HIDDEN) FF hidden bias
    r = VROW[name]
    return vec[r:r + 1, :]


# ---------------------------------------------------------------------------
# In-kernel math (bf16 MXU operands, f32 accumulation, f32 elementwise)
# ---------------------------------------------------------------------------
def _ln(t, g, b):
    mu = jnp.mean(t, axis=-1, keepdims=True)
    var = jnp.mean((t - mu) ** 2, axis=-1, keepdims=True)
    return (t - mu) * jax.lax.rsqrt(var + LN_EPS) * g + b


def _bf16(t):
    return t.astype(jnp.bfloat16)


def _attend(q, k, v, wo, bias):
    # q:(nq, INNER) f32 (scale pre-folded into W_q), k/v:(nk, INNER) f32,
    # wo:(INNER, DIM) bf16, bias:(nq, nk) f32.  Per-head out-projection is
    # accumulated directly (no concat -> no lane relayout).
    qb, kb, vb = _bf16(q), _bf16(k), _bf16(v)
    out = jnp.zeros((q.shape[0], DIM), jnp.float32)
    for h in range(HEADS):
        sl = slice(h * DIM_HEAD, (h + 1) * DIM_HEAD)
        s = jax.lax.dot_general(qb[:, sl], kb[:, sl], (((1,), (1,)), ((), ())),
                                preferred_element_type=jnp.float32)
        s = s + bias
        s = s - jnp.max(s, axis=-1, keepdims=True)
        p = jnp.exp(s)
        p = p / jnp.sum(p, axis=-1, keepdims=True)    # exact division (f32)
        o_h = jnp.dot(_bf16(p), vb[:, sl], preferred_element_type=jnp.float32)
        out = out + jnp.dot(_bf16(o_h), wo[sl, :],
                            preferred_element_type=jnp.float32)
    return out


def _self_attn(x, g, b, wqkv, wo, bias):
    xn = _ln(x, g, b)
    qkv = jnp.dot(_bf16(xn), wqkv, preferred_element_type=jnp.float32)
    return x + _attend(qkv[:, :INNER], qkv[:, INNER:2 * INNER],
                       qkv[:, 2 * INNER:], wo, bias)


def _cross_attn(x, ctx, g, b, cg, cb, wq, wkv, wo, bias):
    xn = _ln(x, g, b)
    cn = _ln(ctx, cg, cb)
    q = jnp.dot(_bf16(xn), wq, preferred_element_type=jnp.float32)
    kv = jnp.dot(_bf16(cn), wkv, preferred_element_type=jnp.float32)
    return x + _attend(q, kv[:, :INNER], kv[:, INNER:], wo, bias)


def _ff(x, g, b, w1, b1, w2, b2):
    xn = _ln(x, g, b)
    h = jnp.dot(_bf16(xn), w1, preferred_element_type=jnp.float32) + b1
    h = jax.nn.gelu(h)
    return x + jnp.dot(_bf16(h), w2, preferred_element_type=jnp.float32) + b2


# ---------------------------------------------------------------------------
# Fused whole-network kernels (grid = (batch, depth))
# ---------------------------------------------------------------------------
def fused_net_kernel(x_ref, m_ref, bias_ref, vec_ref, win_ref, wout_ref,
                     xo_ref, mo_ref, xs, ms):
    n = x_ref.shape[1]
    nm = m_ref.shape[1]
    l = pl.program_id(1)

    # First layer for this batch row: load x / m into resident f32 scratch.
    @pl.when(l == 0)
    def _():
        xs[...] = x_ref[0].astype(jnp.float32)
        ms[...] = m_ref[0].astype(jnp.float32)

    x = xs[...]
    m = ms[...]

    vec = vec_ref[0]          # (NV, HIDDEN)   f32
    win = win_ref[0]          # (DIM, 512)     bf16
    wout = wout_ref[0]        # (256, DIM)     bf16
    bias = bias_ref[0]        # (n+nm, n+nm)   f32 — built once per forward

    bias_xx = bias[0:n, 0:n]
    bias_mm = bias[n:n + nm, n:n + nm]
    bias_xm = bias[0:n, n:n + nm]
    bias_mx = bias[n:n + nm, 0:n]

    # x = attn(x) + x
    x = _self_attn(x, _vd(vec, "ax_g"), _vd(vec, "ax_b"),
                   _wi(win, "qkv_x"), _wo(wout, "wo_ax"), bias_xx)
    # m = msa_attn(m) + m
    m = _self_attn(m, _vd(vec, "am_g"), _vd(vec, "am_b"),
                   _wi(win, "qkv_m"), _wo(wout, "wo_am"), bias_mm)
    # x = cross_attn(x, m) + x
    x = _cross_attn(x, m, _vd(vec, "cx_g"), _vd(vec, "cx_b"),
                    _vd(vec, "cx_cg"), _vd(vec, "cx_cb"),
                    _wi(win, "cq_x"), _wi(win, "ckv_x"), _wo(wout, "wo_cx"),
                    bias_xm)
    # m = msa_cross_attn(m, x) + m
    m = _cross_attn(m, x, _vd(vec, "cm_g"), _vd(vec, "cm_b"),
                    _vd(vec, "cm_cg"), _vd(vec, "cm_cb"),
                    _wi(win, "cq_m"), _wi(win, "ckv_m"), _wo(wout, "wo_cm"),
                    bias_mx)
    # x = ff(x) + x
    x = _ff(x, _vd(vec, "fx_g"), _vd(vec, "fx_b"), _wi(win, "w1_x"),
            _vh(vec, "fx_b1"), _wo(wout, "w2_x"), _vd(vec, "fx_b2"))
    # m = msa_ff(m) + m
    m = _ff(m, _vd(vec, "fm_g"), _vd(vec, "fm_b"), _wi(win, "w1_m"),
            _vh(vec, "fm_b1"), _wo(wout, "w2_m"), _vd(vec, "fm_b2"))

    xs[...] = x
    ms[...] = m

    # Last layer: write back to HBM (outputs alias the donated inputs).
    @pl.when(l == pl.num_programs(1) - 1)
    def _():
        xo_ref[0] = x.astype(xo_ref.dtype)
        mo_ref[0] = m.astype(mo_ref.dtype)


def fused_net_x_kernel(x_ref, bias_ref, vec_ref, win_ref, wout_ref,
                       xo_ref, xs):
    # m is None path: per layer, x = attn(x) + x ; x = ff(x) + x
    l = pl.program_id(1)

    @pl.when(l == 0)
    def _():
        xs[...] = x_ref[0].astype(jnp.float32)

    x = xs[...]
    vec = vec_ref[0]
    win = win_ref[0]
    wout = wout_ref[0]
    bias_xx = bias_ref[0]

    x = _self_attn(x, _vd(vec, "ax_g"), _vd(vec, "ax_b"),
                   _wi(win, "qkv_x"), _wo(wout, "wo_ax"), bias_xx)
    x = _ff(x, _vd(vec, "fx_g"), _vd(vec, "fx_b"), _wi(win, "w1_x"),
            _vh(vec, "fx_b1"), _wo(wout, "w2_x"), _vd(vec, "fx_b2"))

    xs[...] = x

    @pl.when(l == pl.num_programs(1) - 1)
    def _():
        xo_ref[0] = x.astype(xo_ref.dtype)


# ---------------------------------------------------------------------------
# Host-side packing: per-layer param dicts -> depth-stacked slabs
# ---------------------------------------------------------------------------
def _pack_params(params):
    """Stack per-layer params into depth-indexed slabs.

    Folds 1/sqrt(dim_head) into Q weight columns and pre-casts MXU weights
    to bf16 (accumulation stays f32 in-kernel).  One-time host transform.
    """
    vecs, wins, wouts = [], [], []
    for (attn_p, ff_p, msa_attn_p), (cross_p, msa_ff_p, msa_cross_p) in params:
        def row(v):
            return jnp.pad(v, ((0, 0), (0, HIDDEN - v.shape[-1])))

        vec = jnp.concatenate([
            row(attn_p['g']), row(attn_p['b']),
            row(msa_attn_p['g']), row(msa_attn_p['b']),
            row(cross_p['g']), row(cross_p['b']),
            row(cross_p['cg']), row(cross_p['cb']),
            row(msa_cross_p['g']), row(msa_cross_p['b']),
            row(msa_cross_p['cg']), row(msa_cross_p['cb']),
            row(ff_p['g']), row(ff_p['b']), row(ff_p['b2']),
            row(msa_ff_p['g']), row(msa_ff_p['b']), row(msa_ff_p['b2']),
            ff_p['b1'], msa_ff_p['b1'],
        ], axis=0).astype(jnp.float32)                       # (NV, HIDDEN)

        def fold_qkv(w):                                     # scale Q columns
            return w.at[:, :INNER].multiply(SCALE)

        win = jnp.concatenate([
            fold_qkv(attn_p['wqkv']), fold_qkv(msa_attn_p['wqkv']),
            cross_p['wq'] * SCALE, cross_p['wkv'],
            msa_cross_p['wq'] * SCALE, msa_cross_p['wkv'],
            ff_p['w1'], msa_ff_p['w1'],
        ], axis=1).astype(jnp.bfloat16)                      # (DIM, WIN_COLS)

        wout = jnp.concatenate([
            attn_p['wo'], msa_attn_p['wo'], cross_p['wo'], msa_cross_p['wo'],
            ff_p['w2'], msa_ff_p['w2'],
        ], axis=0).astype(jnp.bfloat16)                      # (WOUT_ROWS, DIM)

        vecs.append(vec)
        wins.append(win)
        wouts.append(wout)
    return jnp.stack(vecs), jnp.stack(wins), jnp.stack(wouts)


def _joint_bias(xmask, mmask):
    # Additive mask over [x ; m] keys/queries, built ONCE per forward.
    joint = jnp.concatenate([xmask, mmask], axis=1).astype(jnp.float32)
    keep = (joint[:, :, None] > 0.5) & (joint[:, None, :] > 0.5)
    return jnp.where(keep, 0.0, NEG_INF).astype(jnp.float32)


def _pair_bias(qmask, kmask):
    keep = (qmask[:, :, None] > 0.5) & (kmask[:, None, :] > 0.5)
    return jnp.where(keep, 0.0, NEG_INF).astype(jnp.float32)


# ---------------------------------------------------------------------------
# SequentialSequence forward (same control flow as the PyTorch module)
# ---------------------------------------------------------------------------
def sequential_sequence_forward(x, m, seq_shape, msa_shape, params,
                                mask=None, msa_mask=None):
    # TODO(synk): seq_shape / msa_shape are reshape hints for axial-style blocks
    # in alphafold2_pytorch; the dense attention blocks used here ignore them.
    B, n, d = x.shape
    assert d == DIM
    if mask is None:
        mask = jnp.ones((B, n), jnp.float32)

    vec_slab, win_slab, wout_slab = _pack_params(params)
    depth = vec_slab.shape[0]
    cparams = pltpu.CompilerParams(
        dimension_semantics=("parallel", "arbitrary"))
    # "parallel" batch axis: sharded across v7x's 2 TCs; plain serial loop on
    # 1-TC v5e/v6e (per-step overhead ~0.35us, negligible vs. a fused layer).

    if m is not None:
        nm = m.shape[1]
        mm = msa_mask if msa_mask is not None else jnp.ones((B, nm), jnp.float32)
        bias = _joint_bias(mask, mm)                         # (B, n+nm, n+nm)

        x_out, m_out = pl.pallas_call(
            fused_net_kernel,
            out_shape=(jax.ShapeDtypeStruct((B, n, d), x.dtype),
                       jax.ShapeDtypeStruct((B, nm, d), m.dtype)),
            grid=(B, depth),
            in_specs=[
                pl.BlockSpec((1, n, d), lambda b, l: (b, 0, 0)),
                pl.BlockSpec((1, nm, d), lambda b, l: (b, 0, 0)),
                pl.BlockSpec((1, n + nm, n + nm), lambda b, l: (b, 0, 0)),
                pl.BlockSpec((1, NV, HIDDEN), lambda b, l: (l, 0, 0)),
                pl.BlockSpec((1, DIM, WIN_COLS), lambda b, l: (l, 0, 0)),
                pl.BlockSpec((1, WOUT_ROWS, DIM), lambda b, l: (l, 0, 0)),
            ],
            out_specs=(pl.BlockSpec((1, n, d), lambda b, l: (b, 0, 0)),
                       pl.BlockSpec((1, nm, d), lambda b, l: (b, 0, 0))),
            scratch_shapes=[pltpu.VMEM((n, d), jnp.float32),
                            pltpu.VMEM((nm, d), jnp.float32)],
            input_output_aliases={0: 0, 1: 1},               # x, m updated in place
            compiler_params=cparams,
        )(x, m, bias, vec_slab, win_slab, wout_slab)
        return x_out, m_out

    bias = _pair_bias(mask, mask)                            # (B, n, n)
    x_out = pl.pallas_call(
        fused_net_x_kernel,
        out_shape=jax.ShapeDtypeStruct((B, n, d), x.dtype),
        grid=(B, depth),
        in_specs=[
            pl.BlockSpec((1, n, d), lambda b, l: (b, 0, 0)),
            pl.BlockSpec((1, n, n), lambda b, l: (b, 0, 0)),
            pl.BlockSpec((1, NV, HIDDEN), lambda b, l: (l, 0, 0)),
            pl.BlockSpec((1, DIM, WIN_COLS), lambda b, l: (l, 0, 0)),
            pl.BlockSpec((1, WOUT_ROWS, DIM), lambda b, l: (l, 0, 0)),
        ],
        out_specs=pl.BlockSpec((1, n, d), lambda b, l: (b, 0, 0)),
        scratch_shapes=[pltpu.VMEM((n, d), jnp.float32)],
        input_output_aliases={0: 0},
        compiler_params=cparams,
    )(x, bias, vec_slab, win_slab, wout_slab)
    return x_out, None


# ---------------------------------------------------------------------------
# Pure-JAX f32 reference (exact division, explicit scale, unpacked params)
# ---------------------------------------------------------------------------
def _ref_ln(t, g, b):
    mu = jnp.mean(t, axis=-1, keepdims=True)
    var = jnp.mean((t - mu) ** 2, axis=-1, keepdims=True)
    return (t - mu) * jax.lax.rsqrt(var + LN_EPS) * g + b


def _ref_attend(q, k, v, wo, bias):
    outs = []
    for h in range(HEADS):
        sl = slice(h * DIM_HEAD, (h + 1) * DIM_HEAD)
        s = (q[:, sl] * SCALE) @ k[:, sl].T + bias
        p = jax.nn.softmax(s, axis=-1)
        outs.append(p @ v[:, sl])
    return jnp.concatenate(outs, axis=-1) @ wo


def _ref_self_attn(x, p, bias):
    xn = _ref_ln(x, p['g'], p['b'])
    qkv = xn @ p['wqkv']
    return x + _ref_attend(qkv[:, :INNER], qkv[:, INNER:2 * INNER],
                           qkv[:, 2 * INNER:], p['wo'], bias)


def _ref_cross_attn(x, ctx, p, bias):
    xn = _ref_ln(x, p['g'], p['b'])
    cn = _ref_ln(ctx, p['cg'], p['cb'])
    q = xn @ p['wq']
    kv = cn @ p['wkv']
    return x + _ref_attend(q, kv[:, :INNER], kv[:, INNER:], p['wo'], bias)


def _ref_ff(x, p):
    xn = _ref_ln(x, p['g'], p['b'])
    h = jax.nn.gelu(xn @ p['w1'] + p['b1'])
    return x + h @ p['w2'] + p['b2']


def _bias1(qm, km):
    return jnp.where((qm[:, None] > 0.5) & (km[None, :] > 0.5),
                     jnp.float32(0.0), jnp.float32(NEG_INF))


def reference_forward(x, m, params, mask, msa_mask):
    def layer_xm(xb, mb, xmb, mmb, lp):
        (attn_p, ff_p, msa_attn_p), (cross_p, msa_ff_p, msa_cross_p) = lp
        xb = _ref_self_attn(xb, attn_p, _bias1(xmb, xmb))
        mb = _ref_self_attn(mb, msa_attn_p, _bias1(mmb, mmb))
        xb = _ref_cross_attn(xb, mb, cross_p, _bias1(xmb, mmb))
        mb = _ref_cross_attn(mb, xb, msa_cross_p, _bias1(mmb, xmb))
        xb = _ref_ff(xb, ff_p)
        mb = _ref_ff(mb, msa_ff_p)
        return xb, mb

    def layer_x(xb, xmb, lp):
        (attn_p, ff_p, _), _ = lp
        xb = _ref_self_attn(xb, attn_p, _bias1(xmb, xmb))
        xb = _ref_ff(xb, ff_p)
        return xb

    for lp in params:
        if m is not None:
            x, m = jax.vmap(partial(layer_xm, lp=lp))(x, m, mask, msa_mask)
        else:
            x = jax.vmap(partial(layer_x, lp=lp))(x, mask)
    return x, m


# ---------------------------------------------------------------------------
# Deterministic parameter init
# ---------------------------------------------------------------------------
def init_self_attn_params(key, dim, heads, dim_head):
    inner = heads * dim_head
    ks = jax.random.split(key, 2)
    s = 0.02
    return dict(
        g=jnp.ones((1, dim), jnp.float32),
        b=jnp.zeros((1, dim), jnp.float32),
        wqkv=s * jax.random.normal(ks[0], (dim, 3 * inner), jnp.float32),
        wo=s * jax.random.normal(ks[1], (inner, dim), jnp.float32),
    )


def init_cross_attn_params(key, dim, heads, dim_head):
    inner = heads * dim_head
    ks = jax.random.split(key, 3)
    s = 0.02
    return dict(
        g=jnp.ones((1, dim), jnp.float32),
        b=jnp.zeros((1, dim), jnp.float32),
        cg=jnp.ones((1, dim), jnp.float32),
        cb=jnp.zeros((1, dim), jnp.float32),
        wq=s * jax.random.normal(ks[0], (dim, inner), jnp.float32),
        wkv=s * jax.random.normal(ks[1], (dim, 2 * inner), jnp.float32),
        wo=s * jax.random.normal(ks[2], (inner, dim), jnp.float32),
    )


def init_ff_params(key, dim, mult):
    hidden = dim * mult
    ks = jax.random.split(key, 2)
    s = 0.02
    return dict(
        g=jnp.ones((1, dim), jnp.float32),
        b=jnp.zeros((1, dim), jnp.float32),
        w1=s * jax.random.normal(ks[0], (dim, hidden), jnp.float32),
        b1=jnp.zeros((1, hidden), jnp.float32),
        w2=s * jax.random.normal(ks[1], (hidden, dim), jnp.float32),
        b2=jnp.zeros((1, dim), jnp.float32),
    )


def build_params(key, depth):
    layers = []
    for i in range(depth):
        ks = jax.random.split(jax.random.fold_in(key, i), 6)
        attn = init_self_attn_params(ks[0], DIM, HEADS, DIM_HEAD)
        ff = init_ff_params(ks[1], DIM, FF_MULT)
        msa_attn = init_self_attn_params(ks[2], DIM, HEADS, DIM_HEAD)
        cross = init_cross_attn_params(ks[3], DIM, HEADS, DIM_HEAD)
        msa_ff = init_ff_params(ks[4], DIM, FF_MULT)
        msa_cross = init_cross_attn_params(ks[5], DIM, HEADS, DIM_HEAD)
        layers.append(((attn, ff, msa_attn), (cross, msa_ff, msa_cross)))
    return layers


if __name__ == "__main__":
    key = jax.random.PRNGKey(0)
    B, n, nm = 2, 8, 16
    keys = jax.random.split(key, 5)

    x = jax.random.normal(keys[0], (B, n, DIM), jnp.float32)
    m = jax.random.normal(keys[1], (B, nm, DIM), jnp.float32)
    mask = (jax.random.uniform(keys[2], (B, n)) > 0.2).astype(jnp.float32)
    msa_mask = (jax.random.uniform(keys[3], (B, nm)) > 0.2).astype(jnp.float32)
    mask = mask.at[:, 0].set(1.0)
    msa_mask = msa_mask.at[:, 0].set(1.0)

    params = build_params(keys[4], DEPTH)
    seq_shape = (B, n)
    msa_shape = (B, nm)

    # Pure-JAX f32 references first (kernel inputs are donated via
    # input_output_aliases, so the kernel path runs on fresh copies below).
    x_ref, m_ref = reference_forward(x, m, params, mask, msa_mask)
    x_only_ref, _ = reference_forward(x, None, params, mask, None)

    x_out, m_out = sequential_sequence_forward(
        jnp.copy(x), jnp.copy(m), seq_shape, msa_shape, params,
        mask=mask, msa_mask=msa_mask)
    jax.block_until_ready((x_out, m_out))

    x_only_out, none_m = sequential_sequence_forward(
        jnp.copy(x), None, seq_shape, None, params, mask=mask)
    jax.block_until_ready(x_only_out)

    # bf16 MXU operands (f32 accumulation) vs. a pure-f32 reference =>
    # tolerances set accordingly.
    assert jnp.allclose(x_out, x_ref, atol=1e-2, rtol=1e-2), "x mismatch vs reference"
    assert jnp.allclose(m_out, m_ref, atol=1e-2, rtol=1e-2), "m mismatch vs reference"
    assert jnp.allclose(x_only_out, x_only_ref, atol=1e-2, rtol=1e-2), \
        "x-only path mismatch vs reference"
    assert none_m is None

    print("KERNEL_OK")
</pallas_src>

<mosaic_0001>
module attributes {stable_mosaic.version = 11 : i64} {
  func.func @fused_net_kernel(%arg0: i32, %arg1: i32, %arg2: memref<1x8x32xf32, #tpu.memory_space<vmem>>, %arg3: memref<1x16x32xf32, #tpu.memory_space<vmem>>, %arg4: memref<1x24x24xf32, #tpu.memory_space<vmem>>, %arg5: memref<1x20x64xf32, #tpu.memory_space<vmem>>, %arg6: memref<1x32x512xbf16, #tpu.memory_space<vmem>>, %arg7: memref<1x256x32xbf16, #tpu.memory_space<vmem>>, %arg8: memref<1x8x32xf32, #tpu.memory_space<vmem>>, %arg9: memref<1x16x32xf32, #tpu.memory_space<vmem>>, %arg10: memref<8x32xf32, #tpu.memory_space<vmem>>, %arg11: memref<16x32xf32, #tpu.memory_space<vmem>>) attributes {dimension_semantics = [#tpu.dimension_semantics<parallel>, #tpu.dimension_semantics<arbitrary>], iteration_bounds = array<i64: 2, 2>, scalar_prefetch = 0 : i64, scratch_operands = 2 : i64, tpu.core_type = #tpu.core_type<tc>, window_params = [{transform_indices = @transform_0, window_bounds = array<i64: 1, 8, 32>}, {transform_indices = @transform_1, window_bounds = array<i64: 1, 16, 32>}, {transform_indices = @transform_2, window_bounds = array<i64: 1, 24, 24>}, {transform_indices = @transform_3, window_bounds = array<i64: 1, 20, 64>}, {transform_indices = @transform_4, window_bounds = array<i64: 1, 32, 512>}, {transform_indices = @transform_5, window_bounds = array<i64: 1, 256, 32>}, {transform_indices = @transform_6, window_bounds = array<i64: 1, 8, 32>}, {transform_indices = @transform_7, window_bounds = array<i64: 1, 16, 32>}]} {
    %c0_i32 = arith.constant 0 : i32
    %0 = arith.cmpi eq, %arg1, %c0_i32 : i32
    %1 = arith.extui %0 : i1 to i32
    %c0_i32_0 = arith.constant 0 : i32
    %2 = arith.cmpi ne, %1, %c0_i32_0 : i32
    scf.if %2 {
      %c0_122 = arith.constant 0 : index
      %c0_123 = arith.constant 0 : index
      %c0_124 = arith.constant 0 : index
      %478 = vector.load %arg2[%c0_122, %c0_123, %c0_124] : memref<1x8x32xf32, #tpu.memory_space<vmem>>, vector<1x8x32xf32>
      %479 = vector.shape_cast %478 : vector<1x8x32xf32> to vector<8x32xf32>
      %c0_125 = arith.constant 0 : index
      %c0_126 = arith.constant 0 : index
      %480 = vector.load %arg10[%c0_125, %c0_126] : memref<8x32xf32, #tpu.memory_space<vmem>>, vector<8x32xf32>
      tpu.vector_store %arg10[%c0_125, %c0_126], %479 {strides = array<i32>} : memref<8x32xf32, #tpu.memory_space<vmem>>, vector<8x32xf32>,
      %c0_127 = arith.constant 0 : index
      %c0_128 = arith.constant 0 : index
      %c0_129 = arith.constant 0 : index
      %481 = vector.load %arg3[%c0_127, %c0_128, %c0_129] : memref<1x16x32xf32, #tpu.memory_space<vmem>>, vector<1x16x32xf32>
      %482 = vector.shape_cast %481 : vector<1x16x32xf32> to vector<16x32xf32>
      %c0_130 = arith.constant 0 : index
      %c0_131 = arith.constant 0 : index
      %483 = vector.load %arg11[%c0_130, %c0_131] : memref<16x32xf32, #tpu.memory_space<vmem>>, vector<16x32xf32>
      tpu.vector_store %arg11[%c0_130, %c0_131], %482 {strides = array<i32>} : memref<16x32xf32, #tpu.memory_space<vmem>>, vector<16x32xf32>,
    } else {
    }
    %c0 = arith.constant 0 : index
    %c0_1 = arith.constant 0 : index
    %3 = vector.load %arg10[%c0, %c0_1] : memref<8x32xf32, #tpu.memory_space<vmem>>, vector<8x32xf32>
    %c0_2 = arith.constant 0 : index
    %c0_3 = arith.constant 0 : index
    %4 = vector.load %arg11[%c0_2, %c0_3] : memref<16x32xf32, #tpu.memory_space<vmem>>, vector<16x32xf32>
    %c0_4 = arith.constant 0 : index
    %c0_5 = arith.constant 0 : index
    %c0_6 = arith.constant 0 : index
    %5 = vector.load %arg5[%c0_4, %c0_5, %c0_6] : memref<1x20x64xf32, #tpu.memory_space<vmem>>, vector<1x20x64xf32>
    %6 = vector.shape_cast %5 : vector<1x20x64xf32> to vector<20x64xf32>
    %c0_7 = arith.constant 0 : index
    %c0_8 = arith.constant 0 : index
    %c0_9 = arith.constant 0 : index
    %7 = vector.load %arg6[%c0_7, %c0_8, %c0_9] : memref<1x32x512xbf16, #tpu.memory_space<vmem>>, vector<1x32x512xbf16>
    %8 = vector.shape_cast %7 : vector<1x32x512xbf16> to vector<32x512xbf16>
    %c0_10 = arith.constant 0 : index
    %c0_11 = arith.constant 0 : index
    %c0_12 = arith.constant 0 : index
    %9 = vector.load %arg7[%c0_10, %c0_11, %c0_12] : memref<1x256x32xbf16, #tpu.memory_space<vmem>>, vector<1x256x32xbf16>
    %10 = vector.shape_cast %9 : vector<1x256x32xbf16> to vector<256x32xbf16>
    %c0_13 = arith.constant 0 : index
    %c0_14 = arith.constant 0 : index
    %c0_15 = arith.constant 0 : index
    %11 = vector.load %arg4[%c0_13, %c0_14, %c0_15] : memref<1x24x24xf32, #tpu.memory_space<vmem>>, vector<1x24x24xf32>
    %12 = vector.shape_cast %11 : vector<1x24x24xf32> to vector<24x24xf32>
    %13 = vector.extract_strided_slice %12 {offsets = [0, 0], sizes = [8, 8], strides = [1, 1]} : vector<24x24xf32> to vector<8x8xf32>
    %14 = vector.extract_strided_slice %12 {offsets = [8, 8], sizes = [16, 16], strides = [1, 1]} : vector<24x24xf32> to vector<16x16xf32>
    %15 = vector.extract_strided_slice %12 {offsets = [0, 8], sizes = [8, 16], strides = [1, 1]} : vector<24x24xf32> to vector<8x16xf32>
    %16 = vector.extract_strided_slice %12 {offsets = [8, 0], sizes = [16, 8], strides = [1, 1]} : vector<24x24xf32> to vector<16x8xf32>
    %17 = vector.extract_strided_slice %6 {offsets = [0, 0], sizes = [1, 32], strides = [1, 1]} : vector<20x64xf32> to vector<1x32xf32>
    %18 = vector.extract_strided_slice %6 {offsets = [1, 0], sizes = [1, 32], strides = [1, 1]} : vector<20x64xf32> to vector<1x32xf32>
    %19 = vector.extract_strided_slice %8 {offsets = [0, 0], sizes = [32, 96], strides = [1, 1]} : vector<32x512xbf16> to vector<32x96xbf16>
    %20 = vector.extract_strided_slice %10 {offsets = [0, 0], sizes = [32, 32], strides = [1, 1]} : vector<256x32xbf16> to vector<32x32xbf16>
    %cst = arith.constant dense<0.000000e+00> : vector<8xf32>
    %21 = vector.multi_reduction <add>, %3, %cst [1] : vector<8x32xf32> to vector<8xf32>
    %22 = vector.shape_cast %21 : vector<8xf32> to vector<8x1xf32>
    %cst_16 = arith.constant 3.200000e+01 : f32
    %23 = vector.broadcast %cst_16 : f32 to vector<8x1xf32>
    %24 = arith.divf %22, %23 : vector<8x1xf32>
    %25 = vector.broadcast %24 : vector<8x1xf32> to vector<8x32xf32>
    %26 = arith.subf %3, %25 : vector<8x32xf32>
    %27 = arith.mulf %26, %26 : vector<8x32xf32>
    %cst_17 = arith.constant dense<0.000000e+00> : vector<8xf32>
    %28 = vector.multi_reduction <add>, %27, %cst_17 [1] : vector<8x32xf32> to vector<8xf32>
    %29 = vector.shape_cast %28 : vector<8xf32> to vector<8x1xf32>
    %cst_18 = arith.constant 3.200000e+01 : f32
    %30 = vector.broadcast %cst_18 : f32 to vector<8x1xf32>
    %31 = arith.divf %29, %30 : vector<8x1xf32>
    %32 = vector.broadcast %24 : vector<8x1xf32> to vector<8x32xf32>
    %33 = arith.subf %3, %32 : vector<8x32xf32>
    %cst_19 = arith.constant 9.99999974E-6 : f32
    %34 = vector.broadcast %cst_19 : f32 to vector<8x1xf32>
    %35 = arith.addf %31, %34 : vector<8x1xf32>
    %36 = math.rsqrt %35 : vector<8x1xf32>
    %37 = vector.broadcast %36 : vector<8x1xf32> to vector<8x32xf32>
    %38 = arith.mulf %33, %37 : vector<8x32xf32>
    %39 = vector.broadcast %17 : vector<1x32xf32> to vector<8x32xf32>
    %40 = arith.mulf %38, %39 : vector<8x32xf32>
    %41 = vector.broadcast %18 : vector<1x32xf32> to vector<8x32xf32>
    %42 = arith.addf %40, %41 : vector<8x32xf32>
    %43 = arith.truncf %42 : vector<8x32xf32> to vector<8x32xbf16>
    %cst_20 = arith.constant dense<0.000000e+00> : vector<8x96xf32>
    %44 = tpu.matmul %43, %19, %cst_20 {dimension_numbers = #tpu.dot_dimension_numbers<[1], [0], [0], [1], [0, 0, 1, 1], [], []>} : vector<8x32xbf16>, vector<32x96xbf16>, vector<8x96xf32> -> vector<8x96xf32>
    %45 = vector.extract_strided_slice %44 {offsets = [0, 0], sizes = [8, 32], strides = [1, 1]} : vector<8x96xf32> to vector<8x32xf32>
    %46 = vector.extract_strided_slice %44 {offsets = [0, 32], sizes = [8, 32], strides = [1, 1]} : vector<8x96xf32> to vector<8x32xf32>
    %47 = vector.extract_strided_slice %44 {offsets = [0, 64], sizes = [8, 32], strides = [1, 1]} : vector<8x96xf32> to vector<8x32xf32>
    %48 = arith.truncf %45 : vector<8x32xf32> to vector<8x32xbf16>
    %49 = arith.truncf %46 : vector<8x32xf32> to vector<8x32xbf16>
    %50 = arith.truncf %47 : vector<8x32xf32> to vector<8x32xbf16>
    %cst_21 = arith.constant 0.000000e+00 : f32
    %51 = vector.broadcast %cst_21 : f32 to vector<8x32xf32>
    %52 = vector.extract_strided_slice %48 {offsets = [0, 0], sizes = [8, 16], strides = [1, 1]} : vector<8x32xbf16> to vector<8x16xbf16>
    %53 = vector.extract_strided_slice %49 {offsets = [0, 0], sizes = [8, 16], strides = [1, 1]} : vector<8x32xbf16> to vector<8x16xbf16>
    %cst_22 = arith.constant dense<0.000000e+00> : vector<8x8xf32>
    %54 = tpu.matmul %52, %53, %cst_22 {dimension_numbers = #tpu.dot_dimension_numbers<[1], [1], [0], [0], [0, 0, 1, 0], [], []>} : vector<8x16xbf16>, vector<8x16xbf16>, vector<8x8xf32> -> vector<8x8xf32>
    %55 = arith.addf %54, %13 : vector<8x8xf32>
    %cst_23 = arith.constant dense<0xFF800000> : vector<8xf32>
    %56 = vector.multi_reduction <maximumf>, %55, %cst_23 [1] : vector<8x8xf32> to vector<8xf32>
    %57 = vector.shape_cast %56 : vector<8xf32> to vector<8x1xf32>
    %58 = vector.broadcast %57 : vector<8x1xf32> to vector<8x8xf32>
    %59 = arith.subf %55, %58 : vector<8x8xf32>
    %60 = math.exp %59 : vector<8x8xf32>
    %cst_24 = arith.constant dense<0.000000e+00> : vector<8xf32>
    %61 = vector.multi_reduction <add>, %60, %cst_24 [1] : vector<8x8xf32> to vector<8xf32>
    %62 = vector.shape_cast %61 : vector<8xf32> to vector<8x1xf32>
    %63 = vector.broadcast %62 : vector<8x1xf32> to vector<8x8xf32>
    %64 = arith.divf %60, %63 : vector<8x8xf32>
    %65 = arith.truncf %64 : vector<8x8xf32> to vector<8x8xbf16>
    %66 = vector.extract_strided_slice %50 {offsets = [0, 0], sizes = [8, 16], strides = [1, 1]} : vector<8x32xbf16> to vector<8x16xbf16>
    %cst_25 = arith.constant dense<0.000000e+00> : vector<8x16xf32>
    %67 = tpu.matmul %65, %66, %cst_25 {dimension_numbers = #tpu.dot_dimension_numbers<[1], [0], [0], [1], [0, 0, 1, 1], [], []>} : vector<8x8xbf16>, vector<8x16xbf16>, vector<8x16xf32> -> vector<8x16xf32>
    %68 = arith.truncf %67 : vector<8x16xf32> to vector<8x16xbf16>
    %69 = vector.extract_strided_slice %20 {offsets = [0, 0], sizes = [16, 32], strides = [1, 1]} : vector<32x32xbf16> to vector<16x32xbf16>
    %cst_26 = arith.constant dense<0.000000e+00> : vector<8x32xf32>
    %70 = tpu.matmul %68, %69, %cst_26 {dimension_numbers = #tpu.dot_dimension_numbers<[1], [0], [0], [1], [0, 0, 1, 1], [], []>} : vector<8x16xbf16>, vector<16x32xbf16>, vector<8x32xf32> -> vector<8x32xf32>
    %71 = arith.addf %51, %70 : vector<8x32xf32>
    %72 = vector.extract_strided_slice %48 {offsets = [0, 16], sizes = [8, 16], strides = [1, 1]} : vector<8x32xbf16> to vector<8x16xbf16>
    %73 = vector.extract_strided_slice %49 {offsets = [0, 16], sizes = [8, 16], strides = [1, 1]} : vector<8x32xbf16> to vector<8x16xbf16>
    %cst_27 = arith.constant dense<0.000000e+00> : vector<8x8xf32>
    %74 = tpu.matmul %72, %73, %cst_27 {dimension_numbers = #tpu.dot_dimension_numbers<[1], [1], [0], [0], [0, 0, 1, 0], [], []>} : vector<8x16xbf16>, vector<8x16xbf16>, vector<8x8xf32> -> vector<8x8xf32>
    %75 = arith.addf %74, %13 : vector<8x8xf32>
    %cst_28 = arith.constant dense<0xFF800000> : vector<8xf32>
    %76 = vector.multi_reduction <maximumf>, %75, %cst_28 [1] : vector<8x8xf32> to vector<8xf32>
    %77 = vector.shape_cast %76 : vector<8xf32> to vector<8x1xf32>
    %78 = vector.broadcast %77 : vector<8x1xf32> to vector<8x8xf32>
    %79 = arith.subf %75, %78 : vector<8x8xf32>
    %80 = math.exp %79 : vector<8x8xf32>
    %cst_29 = arith.constant dense<0.000000e+00> : vector<8xf32>
    %81 = vector.multi_reduction <add>, %80, %cst_29 [1] : vector<8x8xf32> to vector<8xf32>
    %82 = vector.shape_cast %81 : vector<8xf32> to vector<8x1xf32>
    %83 = vector.broadcast %82 : vector<8x1xf32> to vector<8x8xf32>
    %84 = arith.divf %80, %83 : vector<8x8xf32>
    %85 = arith.truncf %84 : vector<8x8xf32> to vector<8x8xbf16>
    %86 = vector.extract_strided_slice %50 {offsets = [0, 16], sizes = [8, 16], strides = [1, 1]} : vector<8x32xbf16> to vector<8x16xbf16>
    %cst_30 = arith.constant dense<0.000000e+00> : vector<8x16xf32>
    %87 = tpu.matmul %85, %86, %cst_30 {dimension_numbers = #tpu.dot_dimension_numbers<[1], [0], [0], [1], [0, 0, 1, 1], [], []>} : vector<8x8xbf16>, vector<8x16xbf16>, vector<8x16xf32> -> vector<8x16xf32>
    %88 = arith.truncf %87 : vector<8x16xf32> to vector<8x16xbf16>
    %89 = vector.extract_strided_slice %20 {offsets = [16, 0], sizes = [16, 32], strides = [1, 1]} : vector<32x32xbf16> to vector<16x32xbf16>
    %cst_31 = arith.constant dense<0.000000e+00> : vector<8x32xf32>
    %90 = tpu.matmul %88, %89, %cst_31 {dimension_numbers = #tpu.dot_dimension_numbers<[1], [0], [0], [1], [0, 0, 1, 1], [], []>} : vector<8x16xbf16>, vector<16x32xbf16>, vector<8x32xf32> -> vector<8x32xf32>
    %91 = arith.addf %71, %90 : vector<8x32xf32>
    %92 = arith.addf %3, %91 : vector<8x32xf32>
    %93 = vector.extract_strided_slice %6 {offsets = [2, 0], sizes = [1, 32], strides = [1, 1]} : vector<20x64xf32> to vector<1x32xf32>
    %94 = vector.extract_strided_slice %6 {offsets = [3, 0], sizes = [1, 32], strides = [1, 1]} : vector<20x64xf32> to vector<1x32xf32>
    %95 = vector.extract_strided_slice %8 {offsets = [0, 96], sizes = [32, 96], strides = [1, 1]} : vector<32x512xbf16> to vector<32x96xbf16>
    %96 = vector.extract_strided_slice %10 {offsets = [32, 0], sizes = [32, 32], strides = [1, 1]} : vector<256x32xbf16> to vector<32x32xbf16>
    %cst_32 = arith.constant dense<0.000000e+00> : vector<16xf32>
    %97 = vector.multi_reduction <add>, %4, %cst_32 [1] : vector<16x32xf32> to vector<16xf32>
    %98 = vector.shape_cast %97 : vector<16xf32> to vector<16x1xf32>
    %cst_33 = arith.constant 3.200000e+01 : f32
    %99 = vector.broadcast %cst_33 : f32 to vector<16x1xf32>
    %100 = arith.divf %98, %99 : vector<16x1xf32>
    %101 = vector.broadcast %100 : vector<16x1xf32> to vector<16x32xf32>
    %102 = arith.subf %4, %101 : vector<16x32xf32>
    %103 = arith.mulf %102, %102 : vector<16x32xf32>
    %cst_34 = arith.constant dense<0.000000e+00> : vector<16xf32>
    %104 = vector.multi_reduction <add>, %103, %cst_34 [1] : vector<16x32xf32> to vector<16xf32>
    %105 = vector.shape_cast %104 : vector<16xf32> to vector<16x1xf32>
    %cst_35 = arith.constant 3.200000e+01 : f32
    %106 = vector.broadcast %cst_35 : f32 to vector<16x1xf32>
    %107 = arith.divf %105, %106 : vector<16x1xf32>
    %108 = vector.broadcast %100 : vector<16x1xf32> to vector<16x32xf32>
    %109 = arith.subf %4, %108 : vector<16x32xf32>
    %cst_36 = arith.constant 9.99999974E-6 : f32
    %110 = vector.broadcast %cst_36 : f32 to vector<16x1xf32>
    %111 = arith.addf %107, %110 : vector<16x1xf32>
    %112 = math.rsqrt %111 : vector<16x1xf32>
    %113 = vector.broadcast %112 : vector<16x1xf32> to vector<16x32xf32>
    %114 = arith.mulf %109, %113 : vector<16x32xf32>
    %115 = vector.broadcast %93 : vector<1x32xf32> to vector<16x32xf32>
    %116 = arith.mulf %114, %115 : vector<16x32xf32>
    %117 = vector.broadcast %94 : vector<1x32xf32> to vector<16x32xf32>
    %118 = arith.addf %116, %117 : vector<16x32xf32>
    %119 = arith.truncf %118 : vector<16x32xf32> to vector<16x32xbf16>
    %cst_37 = arith.constant dense<0.000000e+00> : vector<16x96xf32>
    %120 = tpu.matmul %119, %95, %cst_37 {dimension_numbers = #tpu.dot_dimension_numbers<[1], [0], [0], [1], [0, 0, 1, 1], [], []>} : vector<16x32xbf16>, vector<32x96xbf16>, vector<16x96xf32> -> vector<16x96xf32>
    %121 = vector.extract_strided_slice %120 {offsets = [0, 0], sizes = [16, 32], strides = [1, 1]} : vector<16x96xf32> to vector<16x32xf32>
    %122 = vector.extract_strided_slice %120 {offsets = [0, 32], sizes = [16, 32], strides = [1, 1]} : vector<16x96xf32> to vector<16x32xf32>
    %123 = vector.extract_strided_slice %120 {offsets = [0, 64], sizes = [16, 32], strides = [1, 1]} : vector<16x96xf32> to vector<16x32xf32>
    %124 = arith.truncf %121 : vector<16x32xf32> to vector<16x32xbf16>
    %125 = arith.truncf %122 : vector<16x32xf32> to vector<16x32xbf16>
    %126 = arith.truncf %123 : vector<16x32xf32> to vector<16x32xbf16>
    %cst_38 = arith.constant 0.000000e+00 : f32
    %127 = vector.broadcast %cst_38 : f32 to vector<16x32xf32>
    %128 = vector.extract_strided_slice %124 {offsets = [0, 0], sizes = [16, 16], strides = [1, 1]} : vector<16x32xbf16> to vector<16x16xbf16>
    %129 = vector.extract_strided_slice %125 {offsets = [0, 0], sizes = [16, 16], strides = [1, 1]} : vector<16x32xbf16> to vector<16x16xbf16>
    %cst_39 = arith.constant dense<0.000000e+00> : vector<16x16xf32>
    %130 = tpu.matmul %128, %129, %cst_39 {dimension_numbers = #tpu.dot_dimension_numbers<[1], [1], [0], [0], [0, 0, 1, 0], [], []>} : vector<16x16xbf16>, vector<16x16xbf16>, vector<16x16xf32> -> vector<16x16xf32>
    %131 = arith.addf %130, %14 : vector<16x16xf32>
    %cst_40 = arith.constant dense<0xFF800000> : vector<16xf32>
    %132 = vector.multi_reduction <maximumf>, %131, %cst_40 [1] : vector<16x16xf32> to vector<16xf32>
    %133 = vector.shape_cast %132 : vector<16xf32> to vector<16x1xf32>
    %134 = vector.broadcast %133 : vector<16x1xf32> to vector<16x16xf32>
    %135 = arith.subf %131, %134 : vector<16x16xf32>
    %136 = math.exp %135 : vector<16x16xf32>
    %cst_41 = arith.constant dense<0.000000e+00> : vector<16xf32>
    %137 = vector.multi_reduction <add>, %136, %cst_41 [1] : vector<16x16xf32> to vector<16xf32>
    %138 = vector.shape_cast %137 : vector<16xf32> to vector<16x1xf32>
    %139 = vector.broadcast %138 : vector<16x1xf32> to vector<16x16xf32>
    %140 = arith.divf %136, %139 : vector<16x16xf32>
    %141 = arith.truncf %140 : vector<16x16xf32> to vector<16x16xbf16>
    %142 = vector.extract_strided_slice %126 {offsets = [0, 0], sizes = [16, 16], strides = [1, 1]} : vector<16x32xbf16> to vector<16x16xbf16>
    %cst_42 = arith.constant dense<0.000000e+00> : vector<16x16xf32>
    %143 = tpu.matmul %141, %142, %cst_42 {dimension_numbers = #tpu.dot_dimension_numbers<[1], [0], [0], [1], [0, 0, 1, 1], [], []>} : vector<16x16xbf16>, vector<16x16xbf16>, vector<16x16xf32> -> vector<16x16xf32>
    %144 = arith.truncf %143 : vector<16x16xf32> to vector<16x16xbf16>
    %145 = vector.extract_strided_slice %96 {offsets = [0, 0], sizes = [16, 32], strides = [1, 1]} : vector<32x32xbf16> to vector<16x32xbf16>
    %cst_43 = arith.constant dense<0.000000e+00> : vector<16x32xf32>
    %146 = tpu.matmul %144, %145, %cst_43 {dimension_numbers = #tpu.dot_dimension_numbers<[1], [0], [0], [1], [0, 0, 1, 1], [], []>} : vector<16x16xbf16>, vector<16x32xbf16>, vector<16x32xf32> -> vector<16x32xf32>
    %147 = arith.addf %127, %146 : vector<16x32xf32>
    %148 = vector.extract_strided_slice %124 {offsets = [0, 16], sizes = [16, 16], strides = [1, 1]} : vector<16x32xbf16> to vector<16x16xbf16>
    %149 = vector.extract_strided_slice %125 {offsets = [0, 16], sizes = [16, 16], strides = [1, 1]} : vector<16x32xbf16> to vector<16x16xbf16>
    %cst_44 = arith.constant dense<0.000000e+00> : vector<16x16xf32>
    %150 = tpu.matmul %148, %149, %cst_44 {dimension_numbers = #tpu.dot_dimension_numbers<[1], [1], [0], [0], [0, 0, 1, 0], [], []>} : vector<16x16xbf16>, vector<16x16xbf16>, vector<16x16xf32> -> vector<16x16xf32>
    %151 = arith.addf %150, %14 : vector<16x16xf32>
    %cst_45 = arith.constant dense<0xFF800000> : vector<16xf32>
    %152 = vector.multi_reduction <maximumf>, %151, %cst_45 [1] : vector<16x16xf32> to vector<16xf32>
    %153 = vector.shape_cast %152 : vector<16xf32> to vector<16x1xf32>
    %154 = vector.broadcast %153 : vector<16x1xf32> to vector<16x16xf32>
    %155 = arith.subf %151, %154 : vector<16x16xf32>
    %156 = math.exp %155 : vector<16x16xf32>
    %cst_46 = arith.constant dense<0.000000e+00> : vector<16xf32>
    %157 = vector.multi_reduction <add>, %156, %cst_46 [1] : vector<16x16xf32> to vector<16xf32>
    %158 = vector.shape_cast %157 : vector<16xf32> to vector<16x1xf32>
    %159 = vector.broadcast %158 : vector<16x1xf32> to vector<16x16xf32>
    %160 = arith.divf %156, %159 : vector<16x16xf32>
    %161 = arith.truncf %160 : vector<16x16xf32> to vector<16x16xbf16>
    %162 = vector.extract_strided_slice %126 {offsets = [0, 16], sizes = [16, 16], strides = [1, 1]} : vector<16x32xbf16> to vector<16x16xbf16>
    %cst_47 = arith.constant dense<0.000000e+00> : vector<16x16xf32>
    %163 = tpu.matmul %161, %162, %cst_47 {dimension_numbers = #tpu.dot_dimension_numbers<[1], [0], [0], [1], [0, 0, 1, 1], [], []>} : vector<16x16xbf16>, vector<16x16xbf16>, vector<16x16xf32> -> vector<16x16xf32>
    %164 = arith.truncf %163 : vector<16x16xf32> to vector<16x16xbf16>
    %165 = vector.extract_strided_slice %96 {offsets = [16, 0], sizes = [16, 32], strides = [1, 1]} : vector<32x32xbf16> to vector<16x32xbf16>
    %cst_48 = arith.constant dense<0.000000e+00> : vector<16x32xf32>
    %166 = tpu.matmul %164, %165, %cst_48 {dimension_numbers = #tpu.dot_dimension_numbers<[1], [0], [0], [1], [0, 0, 1, 1], [], []>} : vector<16x16xbf16>, vector<16x32xbf16>, vector<16x32xf32> -> vector<16x32xf32>
    %167 = arith.addf %147, %166 : vector<16x32xf32>
    %168 = arith.addf %4, %167 : vector<16x32xf32>
    %169 = vector.extract_strided_slice %6 {offsets = [4, 0], sizes = [1, 32], strides = [1, 1]} : vector<20x64xf32> to vector<1x32xf32>
    %170 = vector.extract_strided_slice %6 {offsets = [5, 0], sizes = [1, 32], strides = [1, 1]} : vector<20x64xf32> to vector<1x32xf32>
    %171 = vector.extract_strided_slice %6 {offsets = [6, 0], sizes = [1, 32], strides = [1, 1]} : vector<20x64xf32> to vector<1x32xf32>
    %172 = vector.extract_strided_slice %6 {offsets = [7, 0], sizes = [1, 32], strides = [1, 1]} : vector<20x64xf32> to vector<1x32xf32>
    %173 = vector.extract_strided_slice %8 {offsets = [0, 192], sizes = [32, 32], strides = [1, 1]} : vector<32x512xbf16> to vector<32x32xbf16>
    %174 = vector.extract_strided_slice %8 {offsets = [0, 224], sizes = [32, 64], strides = [1, 1]} : vector<32x512xbf16> to vector<32x64xbf16>
    %175 = vector.extract_strided_slice %10 {offsets = [64, 0], sizes = [32, 32], strides = [1, 1]} : vector<256x32xbf16> to vector<32x32xbf16>
    %cst_49 = arith.constant dense<0.000000e+00> : vector<8xf32>
    %176 = vector.multi_reduction <add>, %92, %cst_49 [1] : vector<8x32xf32> to vector<8xf32>
    %177 = vector.shape_cast %176 : vector<8xf32> to vector<8x1xf32>
    %cst_50 = arith.constant 3.200000e+01 : f32
    %178 = vector.broadcast %cst_50 : f32 to vector<8x1xf32>
    %179 = arith.divf %177, %178 : vector<8x1xf32>
    %180 = vector.broadcast %179 : vector<8x1xf32> to vector<8x32xf32>
    %181 = arith.subf %92, %180 : vector<8x32xf32>
    %182 = arith.mulf %181, %181 : vector<8x32xf32>
    %cst_51 = arith.constant dense<0.000000e+00> : vector<8xf32>
    %183 = vector.multi_reduction <add>, %182, %cst_51 [1] : vector<8x32xf32> to vector<8xf32>
    %184 = vector.shape_cast %183 : vector<8xf32> to vector<8x1xf32>
    %cst_52 = arith.constant 3.200000e+01 : f32
    %185 = vector.broadcast %cst_52 : f32 to vector<8x1xf32>
    %186 = arith.divf %184, %185 : vector<8x1xf32>
    %187 = vector.broadcast %179 : vector<8x1xf32> to vector<8x32xf32>
    %188 = arith.subf %92, %187 : vector<8x32xf32>
    %cst_53 = arith.constant 9.99999974E-6 : f32
    %189 = vector.broadcast %cst_53 : f32 to vector<8x1xf32>
    %190 = arith.addf %186, %189 : vector<8x1xf32>
    %191 = math.rsqrt %190 : vector<8x1xf32>
    %192 = vector.broadcast %191 : vector<8x1xf32> to vector<8x32xf32>
    %193 = arith.mulf %188, %192 : vector<8x32xf32>
    %194 = vector.broadcast %169 : vector<1x32xf32> to vector<8x32xf32>
    %195 = arith.mulf %193, %194 : vector<8x32xf32>
    %196 = vector.broadcast %170 : vector<1x32xf32> to vector<8x32xf32>
    %197 = arith.addf %195, %196 : vector<8x32xf32>
    %cst_54 = arith.constant dense<0.000000e+00> : vector<16xf32>
    %198 = vector.multi_reduction <add>, %168, %cst_54 [1] : vector<16x32xf32> to vector<16xf32>
    %199 = vector.shape_cast %198 : vector<16xf32> to vector<16x1xf32>
    %cst_55 = arith.constant 3.200000e+01 : f32
    %200 = vector.broadcast %cst_55 : f32 to vector<16x1xf32>
    %201 = arith.divf %199, %200 : vector<16x1xf32>
    %202 = vector.broadcast %201 : vector<16x1xf32> to vector<16x32xf32>
    %203 = arith.subf %168, %202 : vector<16x32xf32>
    %204 = arith.mulf %203, %203 : vector<16x32xf32>
    %cst_56 = arith.constant dense<0.000000e+00> : vector<16xf32>
    %205 = vector.multi_reduction <add>, %204, %cst_56 [1] : vector<16x32xf32> to vector<16xf32>
    %206 = vector.shape_cast %205 : vector<16xf32> to vector<16x1xf32>
    %cst_57 = arith.constant 3.200000e+01 : f32
    %207 = vector.broadcast %cst_57 : f32 to vector<16x1xf32>
    %208 = arith.divf %206, %207 : vector<16x1xf32>
    %209 = vector.broadcast %201 : vector<16x1xf32> to vector<16x32xf32>
    %210 = arith.subf %168, %209 : vector<16x32xf32>
    %cst_58 = arith.constant 9.99999974E-6 : f32
    %211 = vector.broadcast %cst_58 : f32 to vector<16x1xf32>
    %212 = arith.addf %208, %211 : vector<16x1xf32>
    %213 = math.rsqrt %212 : vector<16x1xf32>
    %214 = vector.broadcast %213 : vector<16x1xf32> to vector<16x32xf32>
    %215 = arith.mulf %210, %214 : vector<16x32xf32>
    %216 = vector.broadcast %171 : vector<1x32xf32> to vector<16x32xf32>
    %217 = arith.mulf %215, %216 : vector<16x32xf32>
    %218 = vector.broadcast %172 : vector<1x32xf32> to vector<16x32xf32>
    %219 = arith.addf %217, %218 : vector<16x32xf32>
    %220 = arith.truncf %197 : vector<8x32xf32> to vector<8x32xbf16>
    %cst_59 = arith.constant dense<0.000000e+00> : vector<8x32xf32>
    %221 = tpu.matmul %220, %173, %cst_59 {dimension_numbers = #tpu.dot_dimension_numbers<[1], [0], [0], [1], [0, 0, 1, 1], [], []>} : vector<8x32xbf16>, vector<32x32xbf16>, vector<8x32xf32> -> vector<8x32xf32>
    %222 = arith.truncf %219 : vector<16x32xf32> to vector<16x32xbf16>
    %cst_60 = arith.constant dense<0.000000e+00> : vector<16x64xf32>
    %223 = tpu.matmul %222, %174, %cst_60 {dimension_numbers = #tpu.dot_dimension_numbers<[1], [0], [0], [1], [0, 0, 1, 1], [], []>} : vector<16x32xbf16>, vector<32x64xbf16>, vector<16x64xf32> -> vector<16x64xf32>
    %224 = vector.extract_strided_slice %223 {offsets = [0, 0], sizes = [16, 32], strides = [1, 1]} : vector<16x64xf32> to vector<16x32xf32>
    %225 = vector.extract_strided_slice %223 {offsets = [0, 32], sizes = [16, 32], strides = [1, 1]} : vector<16x64xf32> to vector<16x32xf32>
    %226 = arith.truncf %221 : vector<8x32xf32> to vector<8x32xbf16>
    %227 = arith.truncf %224 : vector<16x32xf32> to vector<16x32xbf16>
    %228 = arith.truncf %225 : vector<16x32xf32> to vector<16x32xbf16>
    %cst_61 = arith.constant 0.000000e+00 : f32
    %229 = vector.broadcast %cst_61 : f32 to vector<8x32xf32>
    %230 = vector.extract_strided_slice %226 {offsets = [0, 0], sizes = [8, 16], strides = [1, 1]} : vector<8x32xbf16> to vector<8x16xbf16>
    %231 = vector.extract_strided_slice %227 {offsets = [0, 0], sizes = [16, 16], strides = [1, 1]} : vector<16x32xbf16> to vector<16x16xbf16>
    %cst_62 = arith.constant dense<0.000000e+00> : vector<8x16xf32>
    %232 = tpu.matmul %230, %231, %cst_62 {dimension_numbers = #tpu.dot_dimension_numbers<[1], [1], [0], [0], [0, 0, 1, 0], [], []>} : vector<8x16xbf16>, vector<16x16xbf16>, vector<8x16xf32> -> vector<8x16xf32>
    %233 = arith.addf %232, %15 : vector<8x16xf32>
    %cst_63 = arith.constant dense<0xFF800000> : vector<8xf32>
    %234 = vector.multi_reduction <maximumf>, %233, %cst_63 [1] : vector<8x16xf32> to vector<8xf32>
    %235 = vector.shape_cast %234 : vector<8xf32> to vector<8x1xf32>
    %236 = vector.broadcast %235 : vector<8x1xf32> to vector<8x16xf32>
    %237 = arith.subf %233, %236 : vector<8x16xf32>
    %238 = math.exp %237 : vector<8x16xf32>
    %cst_64 = arith.constant dense<0.000000e+00> : vector<8xf32>
    %239 = vector.multi_reduction <add>, %238, %cst_64 [1] : vector<8x16xf32> to vector<8xf32>
    %240 = vector.shape_cast %239 : vector<8xf32> to vector<8x1xf32>
    %241 = vector.broadcast %240 : vector<8x1xf32> to vector<8x16xf32>
    %242 = arith.divf %238, %241 : vector<8x16xf32>
    %243 = arith.truncf %242 : vector<8x16xf32> to vector<8x16xbf16>
    %244 = vector.extract_strided_slice %228 {offsets = [0, 0], sizes = [16, 16], strides = [1, 1]} : vector<16x32xbf16> to vector<16x16xbf16>
    %cst_65 = arith.constant dense<0.000000e+00> : vector<8x16xf32>
    %245 = tpu.matmul %243, %244, %cst_65 {dimension_numbers = #tpu.dot_dimension_numbers<[1], [0], [0], [1], [0, 0, 1, 1], [], []>} : vector<8x16xbf16>, vector<16x16xbf16>, vector<8x16xf32> -> vector<8x16xf32>
    %246 = arith.truncf %245 : vector<8x16xf32> to vector<8x16xbf16>
    %247 = vector.extract_strided_slice %175 {offsets = [0, 0], sizes = [16, 32], strides = [1, 1]} : vector<32x32xbf16> to vector<16x32xbf16>
    %cst_66 = arith.constant dense<0.000000e+00> : vector<8x32xf32>
    %248 = tpu.matmul %246, %247, %cst_66 {dimension_numbers = #tpu.dot_dimension_numbers<[1], [0], [0], [1], [0, 0, 1, 1], [], []>} : vector<8x16xbf16>, vector<16x32xbf16>, vector<8x32xf32> -> vector<8x32xf32>
    %249 = arith.addf %229, %248 : vector<8x32xf32>
    %250 = vector.extract_strided_slice %226 {offsets = [0, 16], sizes = [8, 16], strides = [1, 1]} : vector<8x32xbf16> to vector<8x16xbf16>
    %251 = vector.extract_strided_slice %227 {offsets = [0, 16], sizes = [16, 16], strides = [1, 1]} : vector<16x32xbf16> to vector<16x16xbf16>
    %cst_67 = arith.constant dense<0.000000e+00> : vector<8x16xf32>
    %252 = tpu.matmul %250, %251, %cst_67 {dimension_numbers = #tpu.dot_dimension_numbers<[1], [1], [0], [0], [0, 0, 1, 0], [], []>} : vector<8x16xbf16>, vector<16x16xbf16>, vector<8x16xf32> -> vector<8x16xf32>
    %253 = arith.addf %252, %15 : vector<8x16xf32>
    %cst_68 = arith.constant dense<0xFF800000> : vector<8xf32>
    %254 = vector.multi_reduction <maximumf>, %253, %cst_68 [1] : vector<8x16xf32> to vector<8xf32>
    %255 = vector.shape_cast %254 : vector<8xf32> to vector<8x1xf32>
    %256 = vector.broadcast %255 : vector<8x1xf32> to vector<8x16xf32>
    %257 = arith.subf %253, %256 : vector<8x16xf32>
    %258 = math.exp %257 : vector<8x16xf32>
    %cst_69 = arith.constant dense<0.000000e+00> : vector<8xf32>
    %259 = vector.multi_reduction <add>, %258, %cst_69 [1] : vector<8x16xf32> to vector<8xf32>
    %260 = vector.shape_cast %259 : vector<8xf32> to vector<8x1xf32>
    %261 = vector.broadcast %260 : vector<8x1xf32> to vector<8x16xf32>
    %262 = arith.divf %258, %261 : vector<8x16xf32>
    %263 = arith.truncf %262 : vector<8x16xf32> to vector<8x16xbf16>
    %264 = vector.extract_strided_slice %228 {offsets = [0, 16], sizes = [16, 16], strides = [1, 1]} : vector<16x32xbf16> to vector<16x16xbf16>
    %cst_70 = arith.constant dense<0.000000e+00> : vector<8x16xf32>
    %265 = tpu.matmul %263, %264, %cst_70 {dimension_numbers = #tpu.dot_dimension_numbers<[1], [0], [0], [1], [0, 0, 1, 1], [], []>} : vector<8x16xbf16>, vector<16x16xbf16>, vector<8x16xf32> -> vector<8x16xf32>
    %266 = arith.truncf %265 : vector<8x16xf32> to vector<8x16xbf16>
    %267 = vector.extract_strided_slice %175 {offsets = [16, 0], sizes = [16, 32], strides = [1, 1]} : vector<32x32xbf16> to vector<16x32xbf16>
    %cst_71 = arith.constant dense<0.000000e+00> : vector<8x32xf32>
    %268 = tpu.matmul %266, %267, %cst_71 {dimension_numbers = #tpu.dot_dimension_numbers<[1], [0], [0], [1], [0, 0, 1, 1], [], []>} : vector<8x16xbf16>, vector<16x32xbf16>, vector<8x32xf32> -> vector<8x32xf32>
    %269 = arith.addf %249, %268 : vector<8x32xf32>
    %270 = arith.addf %92, %269 : vector<8x32xf32>
    %271 = vector.extract_strided_slice %6 {offsets = [8, 0], sizes = [1, 32], strides = [1, 1]} : vector<20x64xf32> to vector<1x32xf32>
    %272 = vector.extract_strided_slice %6 {offsets = [9, 0], sizes = [1, 32], strides = [1, 1]} : vector<20x64xf32> to vector<1x32xf32>
    %273 = vector.extract_strided_slice %6 {offsets = [10, 0], sizes = [1, 32], strides = [1, 1]} : vector<20x64xf32> to vector<1x32xf32>
    %274 = vector.extract_strided_slice %6 {offsets = [11, 0], sizes = [1, 32], strides = [1, 1]} : vector<20x64xf32> to vector<1x32xf32>
    %275 = vector.extract_strided_slice %8 {offsets = [0, 288], sizes = [32, 32], strides = [1, 1]} : vector<32x512xbf16> to vector<32x32xbf16>
    %276 = vector.extract_strided_slice %8 {offsets = [0, 320], sizes = [32, 64], strides = [1, 1]} : vector<32x512xbf16> to vector<32x64xbf16>
    %277 = vector.extract_strided_slice %10 {offsets = [96, 0], sizes = [32, 32], strides = [1, 1]} : vector<256x32xbf16> to vector<32x32xbf16>
    %cst_72 = arith.constant dense<0.000000e+00> : vector<16xf32>
    %278 = vector.multi_reduction <add>, %168, %cst_72 [1] : vector<16x32xf32> to vector<16xf32>
    %279 = vector.shape_cast %278 : vector<16xf32> to vector<16x1xf32>
    %cst_73 = arith.constant 3.200000e+01 : f32
    %280 = vector.broadcast %cst_73 : f32 to vector<16x1xf32>
    %281 = arith.divf %279, %280 : vector<16x1xf32>
    %282 = vector.broadcast %281 : vector<16x1xf32> to vector<16x32xf32>
    %283 = arith.subf %168, %282 : vector<16x32xf32>
    %284 = arith.mulf %283, %283 : vector<16x32xf32>
    %cst_74 = arith.constant dense<0.000000e+00> : vector<16xf32>
    %285 = vector.multi_reduction <add>, %284, %cst_74 [1] : vector<16x32xf32> to vector<16xf32>
    %286 = vector.shape_cast %285 : vector<16xf32> to vector<16x1xf32>
    %cst_75 = arith.constant 3.200000e+01 : f32
    %287 = vector.broadcast %cst_75 : f32 to vector<16x1xf32>
    %288 = arith.divf %286, %287 : vector<16x1xf32>
    %289 = vector.broadcast %281 : vector<16x1xf32> to vector<16x32xf32>
    %290 = arith.subf %168, %289 : vector<16x32xf32>
    %cst_76 = arith.constant 9.99999974E-6 : f32
    %291 = vector.broadcast %cst_76 : f32 to vector<16x1xf32>
    %292 = arith.addf %288, %291 : vector<16x1xf32>
    %293 = math.rsqrt %292 : vector<16x1xf32>
    %294 = vector.broadcast %293 : vector<16x1xf32> to vector<16x32xf32>
    %295 = arith.mulf %290, %294 : vector<16x32xf32>
    %296 = vector.broadcast %271 : vector<1x32xf32> to vector<16x32xf32>
    %297 = arith.mulf %295, %296 : vector<16x32xf32>
    %298 = vector.broadcast %272 : vector<1x32xf32> to vector<16x32xf32>
    %299 = arith.addf %297, %298 : vector<16x32xf32>
    %cst_77 = arith.constant dense<0.000000e+00> : vector<8xf32>
    %300 = vector.multi_reduction <add>, %270, %cst_77 [1] : vector<8x32xf32> to vector<8xf32>
    %301 = vector.shape_cast %300 : vector<8xf32> to vector<8x1xf32>
    %cst_78 = arith.constant 3.200000e+01 : f32
    %302 = vector.broadcast %cst_78 : f32 to vector<8x1xf32>
    %303 = arith.divf %301, %302 : vector<8x1xf32>
    %304 = vector.broadcast %303 : vector<8x1xf32> to vector<8x32xf32>
    %305 = arith.subf %270, %304 : vector<8x32xf32>
    %306 = arith.mulf %305, %305 : vector<8x32xf32>
    %cst_79 = arith.constant dense<0.000000e+00> : vector<8xf32>
    %307 = vector.multi_reduction <add>, %306, %cst_79 [1] : vector<8x32xf32> to vector<8xf32>
    %308 = vector.shape_cast %307 : vector<8xf32> to vector<8x1xf32>
    %cst_80 = arith.constant 3.200000e+01 : f32
    %309 = vector.broadcast %cst_80 : f32 to vector<8x1xf32>
    %310 = arith.divf %308, %309 : vector<8x1xf32>
    %311 = vector.broadcast %303 : vector<8x1xf32> to vector<8x32xf32>
    %312 = arith.subf %270, %311 : vector<8x32xf32>
    %cst_81 = arith.constant 9.99999974E-6 : f32
    %313 = vector.broadcast %cst_81 : f32 to vector<8x1xf32>
    %314 = arith.addf %310, %313 : vector<8x1xf32>
    %315 = math.rsqrt %314 : vector<8x1xf32>
    %316 = vector.broadcast %315 : vector<8x1xf32> to vector<8x32xf32>
    %317 = arith.mulf %312, %316 : vector<8x32xf32>
    %318 = vector.broadcast %273 : vector<1x32xf32> to vector<8x32xf32>
    %319 = arith.mulf %317, %318 : vector<8x32xf32>
    %320 = vector.broadcast %274 : vector<1x32xf32> to vector<8x32xf32>
    %321 = arith.addf %319, %320 : vector<8x32xf32>
    %322 = arith.truncf %299 : vector<16x32xf32> to vector<16x32xbf16>
    %cst_82 = arith.constant dense<0.000000e+00> : vector<16x32xf32>
    %323 = tpu.matmul %322, %275, %cst_82 {dimension_numbers = #tpu.dot_dimension_numbers<[1], [0], [0], [1], [0, 0, 1, 1], [], []>} : vector<16x32xbf16>, vector<32x32xbf16>, vector<16x32xf32> -> vector<16x32xf32>
    %324 = arith.truncf %321 : vector<8x32xf32> to vector<8x32xbf16>
    %cst_83 = arith.constant dense<0.000000e+00> : vector<8x64xf32>
    %325 = tpu.matmul %324, %276, %cst_83 {dimension_numbers = #tpu.dot_dimension_numbers<[1], [0], [0], [1], [0, 0, 1, 1], [], []>} : vector<8x32xbf16>, vector<32x64xbf16>, vector<8x64xf32> -> vector<8x64xf32>
    %326 = vector.extract_strided_slice %325 {offsets = [0, 0], sizes = [8, 32], strides = [1, 1]} : vector<8x64xf32> to vector<8x32xf32>
    %327 = vector.extract_strided_slice %325 {offsets = [0, 32], sizes = [8, 32], strides = [1, 1]} : vector<8x64xf32> to vector<8x32xf32>
    %328 = arith.truncf %323 : vector<16x32xf32> to vector<16x32xbf16>
    %329 = arith.truncf %326 : vector<8x32xf32> to vector<8x32xbf16>
    %330 = arith.truncf %327 : vector<8x32xf32> to vector<8x32xbf16>
    %cst_84 = arith.constant 0.000000e+00 : f32
    %331 = vector.broadcast %cst_84 : f32 to vector<16x32xf32>
    %332 = vector.extract_strided_slice %328 {offsets = [0, 0], sizes = [16, 16], strides = [1, 1]} : vector<16x32xbf16> to vector<16x16xbf16>
    %333 = vector.extract_strided_slice %329 {offsets = [0, 0], sizes = [8, 16], strides = [1, 1]} : vector<8x32xbf16> to vector<8x16xbf16>
    %cst_85 = arith.constant dense<0.000000e+00> : vector<16x8xf32>
    %334 = tpu.matmul %332, %333, %cst_85 {dimension_numbers = #tpu.dot_dimension_numbers<[1], [1], [0], [0], [0, 0, 1, 0], [], []>} : vector<16x16xbf16>, vector<8x16xbf16>, vector<16x8xf32> -> vector<16x8xf32>
    %335 = arith.addf %334, %16 : vector<16x8xf32>
    %cst_86 = arith.constant dense<0xFF800000> : vector<16xf32>
    %336 = vector.multi_reduction <maximumf>, %335, %cst_86 [1] : vector<16x8xf32> to vector<16xf32>
    %337 = vector.shape_cast %336 : vector<16xf32> to vector<16x1xf32>
    %338 = vector.broadcast %337 : vector<16x1xf32> to vector<16x8xf32>
    %339 = arith.subf %335, %338 : vector<16x8xf32>
    %340 = math.exp %339 : vector<16x8xf32>
    %cst_87 = arith.constant dense<0.000000e+00> : vector<16xf32>
    %341 = vector.multi_reduction <add>, %340, %cst_87 [1] : vector<16x8xf32> to vector<16xf32>
    %342 = vector.shape_cast %341 : vector<16xf32> to vector<16x1xf32>
    %343 = vector.broadcast %342 : vector<16x1xf32> to vector<16x8xf32>
    %344 = arith.divf %340, %343 : vector<16x8xf32>
    %345 = arith.truncf %344 : vector<16x8xf32> to vector<16x8xbf16>
    %346 = vector.extract_strided_slice %330 {offsets = [0, 0], sizes = [8, 16], strides = [1, 1]} : vector<8x32xbf16> to vector<8x16xbf16>
    %cst_88 = arith.constant dense<0.000000e+00> : vector<16x16xf32>
    %347 = tpu.matmul %345, %346, %cst_88 {dimension_numbers = #tpu.dot_dimension_numbers<[1], [0], [0], [1], [0, 0, 1, 1], [], []>} : vector<16x8xbf16>, vector<8x16xbf16>, vector<16x16xf32> -> vector<16x16xf32>
    %348 = arith.truncf %347 : vector<16x16xf32> to vector<16x16xbf16>
    %349 = vector.extract_strided_slice %277 {offsets = [0, 0], sizes = [16, 32], strides = [1, 1]} : vector<32x32xbf16> to vector<16x32xbf16>
    %cst_89 = arith.constant dense<0.000000e+00> : vector<16x32xf32>
    %350 = tpu.matmul %348, %349, %cst_89 {dimension_numbers = #tpu.dot_dimension_numbers<[1], [0], [0], [1], [0, 0, 1, 1], [], []>} : vector<16x16xbf16>, vector<16x32xbf16>, vector<16x32xf32> -> vector<16x32xf32>
    %351 = arith.addf %331, %350 : vector<16x32xf32>
    %352 = vector.extract_strided_slice %328 {offsets = [0, 16], sizes = [16, 16], strides = [1, 1]} : vector<16x32xbf16> to vector<16x16xbf16>
    %353 = vector.extract_strided_slice %329 {offsets = [0, 16], sizes = [8, 16], strides = [1, 1]} : vector<8x32xbf16> to vector<8x16xbf16>
    %cst_90 = arith.constant dense<0.000000e+00> : vector<16x8xf32>
    %354 = tpu.matmul %352, %353, %cst_90 {dimension_numbers = #tpu.dot_dimension_numbers<[1], [1], [0], [0], [0, 0, 1, 0], [], []>} : vector<16x16xbf16>, vector<8x16xbf16>, vector<16x8xf32> -> vector<16x8xf32>
    %355 = arith.addf %354, %16 : vector<16x8xf32>
    %cst_91 = arith.constant dense<0xFF800000> : vector<16xf32>
    %356 = vector.multi_reduction <maximumf>, %355, %cst_91 [1] : vector<16x8xf32> to vector<16xf32>
    %357 = vector.shape_cast %356 : vector<16xf32> to vector<16x1xf32>
    %358 = vector.broadcast %357 : vector<16x1xf32> to vector<16x8xf32>
    %359 = arith.subf %355, %358 : vector<16x8xf32>
    %360 = math.exp %359 : vector<16x8xf32>
    %cst_92 = arith.constant dense<0.000000e+00> : vector<16xf32>
    %361 = vector.multi_reduction <add>, %360, %cst_92 [1] : vector<16x8xf32> to vector<16xf32>
    %362 = vector.shape_cast %361 : vector<16xf32> to vector<16x1xf32>
    %363 = vector.broadcast %362 : vector<16x1xf32> to vector<16x8xf32>
    %364 = arith.divf %360, %363 : vector<16x8xf32>
    %365 = arith.truncf %364 : vector<16x8xf32> to vector<16x8xbf16>
    %366 = vector.extract_strided_slice %330 {offsets = [0, 16], sizes = [8, 16], strides = [1, 1]} : vector<8x32xbf16> to vector<8x16xbf16>
    %cst_93 = arith.constant dense<0.000000e+00> : vector<16x16xf32>
    %367 = tpu.matmul %365, %366, %cst_93 {dimension_numbers = #tpu.dot_dimension_numbers<[1], [0], [0], [1], [0, 0, 1, 1], [], []>} : vector<16x8xbf16>, vector<8x16xbf16>, vector<16x16xf32> -> vector<16x16xf32>
    %368 = arith.truncf %367 : vector<16x16xf32> to vector<16x16xbf16>
    %369 = vector.extract_strided_slice %277 {offsets = [16, 0], sizes = [16, 32], strides = [1, 1]} : vector<32x32xbf16> to vector<16x32xbf16>
    %cst_94 = arith.constant dense<0.000000e+00> : vector<16x32xf32>
    %370 = tpu.matmul %368, %369, %cst_94 {dimension_numbers = #tpu.dot_dimension_numbers<[1], [0], [0], [1], [0, 0, 1, 1], [], []>} : vector<16x16xbf16>, vector<16x32xbf16>, vector<16x32xf32> -> vector<16x32xf32>
    %371 = arith.addf %351, %370 : vector<16x32xf32>
    %372 = arith.addf %168, %371 : vector<16x32xf32>
    %373 = vector.extract_strided_slice %6 {offsets = [12, 0], sizes = [1, 32], strides = [1, 1]} : vector<20x64xf32> to vector<1x32xf32>
    %374 = vector.extract_strided_slice %6 {offsets = [13, 0], sizes = [1, 32], strides = [1, 1]} : vector<20x64xf32> to vector<1x32xf32>
    %375 = vector.extract_strided_slice %8 {offsets = [0, 384], sizes = [32, 64], strides = [1, 1]} : vector<32x512xbf16> to vector<32x64xbf16>
    %376 = vector.extract_strided_slice %6 {offsets = [18, 0], sizes = [1, 64], strides = [1, 1]} : vector<20x64xf32> to vector<1x64xf32>
    %377 = vector.extract_strided_slice %10 {offsets = [128, 0], sizes = [64, 32], strides = [1, 1]} : vector<256x32xbf16> to vector<64x32xbf16>
    %378 = vector.extract_strided_slice %6 {offsets = [14, 0], sizes = [1, 32], strides = [1, 1]} : vector<20x64xf32> to vector<1x32xf32>
    %cst_95 = arith.constant dense<0.000000e+00> : vector<8xf32>
    %379 = vector.multi_reduction <add>, %270, %cst_95 [1] : vector<8x32xf32> to vector<8xf32>
    %380 = vector.shape_cast %379 : vector<8xf32> to vector<8x1xf32>
    %cst_96 = arith.constant 3.200000e+01 : f32
    %381 = vector.broadcast %cst_96 : f32 to vector<8x1xf32>
    %382 = arith.divf %380, %381 : vector<8x1xf32>
    %383 = vector.broadcast %382 : vector<8x1xf32> to vector<8x32xf32>
    %384 = arith.subf %270, %383 : vector<8x32xf32>
    %385 = arith.mulf %384, %384 : vector<8x32xf32>
    %cst_97 = arith.constant dense<0.000000e+00> : vector<8xf32>
    %386 = vector.multi_reduction <add>, %385, %cst_97 [1] : vector<8x32xf32> to vector<8xf32>
    %387 = vector.shape_cast %386 : vector<8xf32> to vector<8x1xf32>
    %cst_98 = arith.constant 3.200000e+01 : f32
    %388 = vector.broadcast %cst_98 : f32 to vector<8x1xf32>
    %389 = arith.divf %387, %388 : vector<8x1xf32>
    %390 = vector.broadcast %382 : vector<8x1xf32> to vector<8x32xf32>
    %391 = arith.subf %270, %390 : vector<8x32xf32>
    %cst_99 = arith.constant 9.99999974E-6 : f32
    %392 = vector.broadcast %cst_99 : f32 to vector<8x1xf32>
    %393 = arith.addf %389, %392 : vector<8x1xf32>
    %394 = math.rsqrt %393 : vector<8x1xf32>
    %395 = vector.broadcast %394 : vector<8x1xf32> to vector<8x32xf32>
    %396 = arith.mulf %391, %395 : vector<8x32xf32>
    %397 = vector.broadcast %373 : vector<1x32xf32> to vector<8x32xf32>
    %398 = arith.mulf %396, %397 : vector<8x32xf32>
    %399 = vector.broadcast %374 : vector<1x32xf32> to vector<8x32xf32>
    %400 = arith.addf %398, %399 : vector<8x32xf32>
    %401 = arith.truncf %400 : vector<8x32xf32> to vector<8x32xbf16>
    %cst_100 = arith.constant dense<0.000000e+00> : vector<8x64xf32>
    %402 = tpu.matmul %401, %375, %cst_100 {dimension_numbers = #tpu.dot_dimension_numbers<[1], [0], [0], [1], [0, 0, 1, 1], [], []>} : vector<8x32xbf16>, vector<32x64xbf16>, vector<8x64xf32> -> vector<8x64xf32>
    %403 = vector.broadcast %376 : vector<1x64xf32> to vector<8x64xf32>
    %404 = arith.addf %402, %403 : vector<8x64xf32>
    %405 = arith.mulf %404, %404 : vector<8x64xf32>
    %406 = arith.mulf %404, %405 : vector<8x64xf32>
    %cst_101 = arith.constant 4.471500e-02 : f32
    %407 = vector.broadcast %cst_101 : f32 to vector<8x64xf32>
    %408 = arith.mulf %407, %406 : vector<8x64xf32>
    %409 = arith.addf %404, %408 : vector<8x64xf32>
    %cst_102 = arith.constant 0.797884583 : f32
    %410 = vector.broadcast %cst_102 : f32 to vector<8x64xf32>
    %411 = arith.mulf %410, %409 : vector<8x64xf32>
    %412 = math.tanh %411 : vector<8x64xf32>
    %cst_103 = arith.constant 1.000000e+00 : f32
    %413 = vector.broadcast %cst_103 : f32 to vector<8x64xf32>
    %414 = arith.addf %413, %412 : vector<8x64xf32>
    %cst_104 = arith.constant 5.000000e-01 : f32
    %415 = vector.broadcast %cst_104 : f32 to vector<8x64xf32>
    %416 = arith.mulf %415, %414 : vector<8x64xf32>
    %417 = arith.mulf %404, %416 : vector<8x64xf32>
    %418 = arith.truncf %417 : vector<8x64xf32> to vector<8x64xbf16>
    %cst_105 = arith.constant dense<0.000000e+00> : vector<8x32xf32>
    %419 = tpu.matmul %418, %377, %cst_105 {dimension_numbers = #tpu.dot_dimension_numbers<[1], [0], [0], [1], [0, 0, 1, 1], [], []>} : vector<8x64xbf16>, vector<64x32xbf16>, vector<8x32xf32> -> vector<8x32xf32>
    %420 = arith.addf %270, %419 : vector<8x32xf32>
    %421 = vector.broadcast %378 : vector<1x32xf32> to vector<8x32xf32>
    %422 = arith.addf %420, %421 : vector<8x32xf32>
    %423 = vector.extract_strided_slice %6 {offsets = [15, 0], sizes = [1, 32], strides = [1, 1]} : vector<20x64xf32> to vector<1x32xf32>
    %424 = vector.extract_strided_slice %6 {offsets = [16, 0], sizes = [1, 32], strides = [1, 1]} : vector<20x64xf32> to vector<1x32xf32>
    %425 = vector.extract_strided_slice %8 {offsets = [0, 448], sizes = [32, 64], strides = [1, 1]} : vector<32x512xbf16> to vector<32x64xbf16>
    %426 = vector.extract_strided_slice %6 {offsets = [19, 0], sizes = [1, 64], strides = [1, 1]} : vector<20x64xf32> to vector<1x64xf32>
    %427 = vector.extract_strided_slice %10 {offsets = [192, 0], sizes = [64, 32], strides = [1, 1]} : vector<256x32xbf16> to vector<64x32xbf16>
    %428 = vector.extract_strided_slice %6 {offsets = [17, 0], sizes = [1, 32], strides = [1, 1]} : vector<20x64xf32> to vector<1x32xf32>
    %cst_106 = arith.constant dense<0.000000e+00> : vector<16xf32>
    %429 = vector.multi_reduction <add>, %372, %cst_106 [1] : vector<16x32xf32> to vector<16xf32>
    %430 = vector.shape_cast %429 : vector<16xf32> to vector<16x1xf32>
    %cst_107 = arith.constant 3.200000e+01 : f32
    %431 = vector.broadcast %cst_107 : f32 to vector<16x1xf32>
    %432 = arith.divf %430, %431 : vector<16x1xf32>
    %433 = vector.broadcast %432 : vector<16x1xf32> to vector<16x32xf32>
    %434 = arith.subf %372, %433 : vector<16x32xf32>
    %435 = arith.mulf %434, %434 : vector<16x32xf32>
    %cst_108 = arith.constant dense<0.000000e+00> : vector<16xf32>
    %436 = vector.multi_reduction <add>, %435, %cst_108 [1] : vector<16x32xf32> to vector<16xf32>
    %437 = vector.shape_cast %436 : vector<16xf32> to vector<16x1xf32>
    %cst_109 = arith.constant 3.200000e+01 : f32
    %438 = vector.broadcast %cst_109 : f32 to vector<16x1xf32>
    %439 = arith.divf %437, %438 : vector<16x1xf32>
    %440 = vector.broadcast %432 : vector<16x1xf32> to vector<16x32xf32>
    %441 = arith.subf %372, %440 : vector<16x32xf32>
    %cst_110 = arith.constant 9.99999974E-6 : f32
    %442 = vector.broadcast %cst_110 : f32 to vector<16x1xf32>
    %443 = arith.addf %439, %442 : vector<16x1xf32>
    %444 = math.rsqrt %443 : vector<16x1xf32>
    %445 = vector.broadcast %444 : vector<16x1xf32> to vector<16x32xf32>
    %446 = arith.mulf %441, %445 : vector<16x32xf32>
    %447 = vector.broadcast %423 : vector<1x32xf32> to vector<16x32xf32>
    %448 = arith.mulf %446, %447 : vector<16x32xf32>
    %449 = vector.broadcast %424 : vector<1x32xf32> to vector<16x32xf32>
    %450 = arith.addf %448, %449 : vector<16x32xf32>
    %451 = arith.truncf %450 : vector<16x32xf32> to vector<16x32xbf16>
    %cst_111 = arith.constant dense<0.000000e+00> : vector<16x64xf32>
    %452 = tpu.matmul %451, %425, %cst_111 {dimension_numbers = #tpu.dot_dimension_numbers<[1], [0], [0], [1], [0, 0, 1, 1], [], []>} : vector<16x32xbf16>, vector<32x64xbf16>, vector<16x64xf32> -> vector<16x64xf32>
    %453 = vector.broadcast %426 : vector<1x64xf32> to vector<16x64xf32>
    %454 = arith.addf %452, %453 : vector<16x64xf32>
    %455 = arith.mulf %454, %454 : vector<16x64xf32>
    %456 = arith.mulf %454, %455 : vector<16x64xf32>
    %cst_112 = arith.constant 4.471500e-02 : f32
    %457 = vector.broadcast %cst_112 : f32 to vector<16x64xf32>
    %458 = arith.mulf %457, %456 : vector<16x64xf32>
    %459 = arith.addf %454, %458 : vector<16x64xf32>
    %cst_113 = arith.constant 0.797884583 : f32
    %460 = vector.broadcast %cst_113 : f32 to vector<16x64xf32>
    %461 = arith.mulf %460, %459 : vector<16x64xf32>
    %462 = math.tanh %461 : vector<16x64xf32>
    %cst_114 = arith.constant 1.000000e+00 : f32
    %463 = vector.broadcast %cst_114 : f32 to vector<16x64xf32>
    %464 = arith.addf %463, %462 : vector<16x64xf32>
    %cst_115 = arith.constant 5.000000e-01 : f32
    %465 = vector.broadcast %cst_115 : f32 to vector<16x64xf32>
    %466 = arith.mulf %465, %464 : vector<16x64xf32>
    %467 = arith.mulf %454, %466 : vector<16x64xf32>
    %468 = arith.truncf %467 : vector<16x64xf32> to vector<16x64xbf16>
    %cst_116 = arith.constant dense<0.000000e+00> : vector<16x32xf32>
    %469 = tpu.matmul %468, %427, %cst_116 {dimension_numbers = #tpu.dot_dimension_numbers<[1], [0], [0], [1], [0, 0, 1, 1], [], []>} : vector<16x64xbf16>, vector<64x32xbf16>, vector<16x32xf32> -> vector<16x32xf32>
    %470 = arith.addf %372, %469 : vector<16x32xf32>
    %471 = vector.broadcast %428 : vector<1x32xf32> to vector<16x32xf32>
    %472 = arith.addf %470, %471 : vector<16x32xf32>
    %c0_117 = arith.constant 0 : index
    %c0_118 = arith.constant 0 : index
    %473 = vector.load %arg10[%c0_117, %c0_118] : memref<8x32xf32, #tpu.memory_space<vmem>>, vector<8x32xf32>
    tpu.vector_store %arg10[%c0_117, %c0_118], %422 {strides = array<i32>} : memref<8x32xf32, #tpu.memory_space<vmem>>, vector<8x32xf32>,
    %c0_119 = arith.constant 0 : index
    %c0_120 = arith.constant 0 : index
    %474 = vector.load %arg11[%c0_119, %c0_120] : memref<16x32xf32, #tpu.memory_space<vmem>>, vector<16x32xf32>
    tpu.vector_store %arg11[%c0_119, %c0_120], %472 {strides = array<i32>} : memref<16x32xf32, #tpu.memory_space<vmem>>, vector<16x32xf32>,
    %c1_i32 = arith.constant 1 : i32
    %475 = arith.cmpi eq, %arg1, %c1_i32 : i32
    %476 = arith.extui %475 : i1 to i32
    %c0_i32_121 = arith.constant 0 : i32
    %477 = arith.cmpi ne, %476, %c0_i32_121 : i32
    scf.if %477 {
      %c0_122 = arith.constant 0 : index
      %c0_123 = arith.constant 0 : index
      %c0_124 = arith.constant 0 : index
      %478 = vector.load %arg8[%c0_122, %c0_123, %c0_124] : memref<1x8x32xf32, #tpu.memory_space<vmem>>, vector<1x8x32xf32>
      %479 = vector.shape_cast %478 : vector<1x8x32xf32> to vector<8x32xf32>
      %480 = vector.shape_cast %422 : vector<8x32xf32> to vector<1x8x32xf32>
      tpu.vector_store %arg8[%c0_122, %c0_123, %c0_124], %480 {strides = array<i32>} : memref<1x8x32xf32, #tpu.memory_space<vmem>>, vector<1x8x32xf32>,
      %c0_125 = arith.constant 0 : index
      %c0_126 = arith.constant 0 : index
      %c0_127 = arith.constant 0 : index
      %481 = vector.load %arg9[%c0_125, %c0_126, %c0_127] : memref<1x16x32xf32, #tpu.memory_space<vmem>>, vector<1x16x32xf32>
      %482 = vector.shape_cast %481 : vector<1x16x32xf32> to vector<16x32xf32>
      %483 = vector.shape_cast %472 : vector<16x32xf32> to vector<1x16x32xf32>
      tpu.vector_store %arg9[%c0_125, %c0_126, %c0_127], %483 {strides = array<i32>} : memref<1x16x32xf32, #tpu.memory_space<vmem>>, vector<1x16x32xf32>,
    } else {
    }
    return
  }
  func.func @transform_0(%arg0: i32, %arg1: i32) -> (i32, i32, i32) {
    %c0_i32 = arith.constant 0 : i32
    %c0_i32_0 = arith.constant 0 : i32
    %c0_i32_1 = arith.constant 0 : i32
    return %arg0, %c0_i32, %c0_i32_0 : i32, i32, i32
  }
  func.func @transform_1(%arg0: i32, %arg1: i32) -> (i32, i32, i32) {
    %c0_i32 = arith.constant 0 : i32
    %c0_i32_0 = arith.constant 0 : i32
    %c0_i32_1 = arith.constant 0 : i32
    return %arg0, %c0_i32, %c0_i32_0 : i32, i32, i32
  }
  func.func @transform_2(%arg0: i32, %arg1: i32) -> (i32, i32, i32) {
    %c0_i32 = arith.constant 0 : i32
    %c0_i32_0 = arith.constant 0 : i32
    %c0_i32_1 = arith.constant 0 : i32
    return %arg0, %c0_i32, %c0_i32_0 : i32, i32, i32
  }
  func.func @transform_3(%arg0: i32, %arg1: i32) -> (i32, i32, i32) {
    %c0_i32 = arith.constant 0 : i32
    %c0_i32_0 = arith.constant 0 : i32
    %c0_i32_1 = arith.constant 0 : i32
    return %arg1, %c0_i32, %c0_i32_0 : i32, i32, i32
  }
  func.func @transform_4(%arg0: i32, %arg1: i32) -> (i32, i32, i32) {
    %c0_i32 = arith.constant 0 : i32
    %c0_i32_0 = arith.constant 0 : i32
    %c0_i32_1 = arith.constant 0 : i32
    return %arg1, %c0_i32, %c0_i32_0 : i32, i32, i32
  }
  func.func @transform_5(%arg0: i32, %arg1: i32) -> (i32, i32, i32) {
    %c0_i32 = arith.constant 0 : i32
    %c0_i32_0 = arith.constant 0 : i32
    %c0_i32_1 = arith.constant 0 : i32
    return %arg1, %c0_i32, %c0_i32_0 : i32, i32, i32
  }
  func.func @transform_6(%arg0: i32, %arg1: i32) -> (i32, i32, i32) {
    %c0_i32 = arith.constant 0 : i32
    %c0_i32_0 = arith.constant 0 : i32
    %c0_i32_1 = arith.constant 0 : i32
    return %arg0, %c0_i32, %c0_i32_0 : i32, i32, i32
  }
  func.func @transform_7(%arg0: i32, %arg1: i32) -> (i32, i32, i32) {
    %c0_i32 = arith.constant 0 : i32
    %c0_i32_0 = arith.constant 0 : i32
    %c0_i32_1 = arith.constant 0 : i32
    return %arg0, %c0_i32, %c0_i32_0 : i32, i32, i32
  }
}

</mosaic_0001>

<llo_original>
// kernel: tpu_custom_call.1
$region0: #{tpu_custom_call.1}
  #allocation0 [shape = 'u32[]', space=smem, size = 0x4, offset = 0x4, fixed_abs, tag = 'smem constant byte address 0x4 - core index']
  #allocation1 [shape = 'u32[144,128]{1,0:T(1,128)}', space=vmem, size = 0x12000, scoped, tag = 'internal scratch']
  #allocation2 [shape = 'f32[8,32]{1,0:T(8,128)}', space=vmem, size = 0x1000, scoped, tag = 'scratch operand']
  #allocation3 [shape = 'f32[16,32]{1,0:T(8,128)}', space=vmem, size = 0x2000, scoped, tag = 'scratch operand']
  %s0 = inlined_call_operand.hbm [shape: f32[2,8,32], index: 0, kind: input, shape index: {}, may-alias: {0,6}]
  %s1 = inlined_call_operand.hbm [shape: f32[2,16,32], index: 1, kind: input, shape index: {}, may-alias: {1,7}]
  %s2 = inlined_call_operand.vmem [shape: f32[2,24,24], index: 2, kind: input, shape index: {}]
  %s3 = inlined_call_operand.vmem [shape: f32[2,20,64], index: 3, kind: input, shape index: {}]
  %s4 = inlined_call_operand.vmem [shape: bf16[2,32,512], index: 4, kind: input, shape index: {}]
  %s5 = inlined_call_operand.vmem [shape: bf16[2,256,32], index: 5, kind: input, shape index: {}]
  %s6 = inlined_call_operand.hbm [shape: f32[2,8,32], index: 6, kind: output, shape index: {0}, may-alias: {0,6}]
  %s7 = inlined_call_operand.hbm [shape: f32[2,16,32], index: 7, kind: output, shape index: {1}, may-alias: {1,7}]
  %8 = xla_tuple %s6, %s7
  %s9 = sld [smem:[#allocation0]]
  $region81: #{tpu_custom_call.1} parent=0
    _
  %s11 = ssub.s32 1, %s9
  %s12 = scalar_select 0, %s11, %s9
  $region1: #{tpu_custom_call.1} parent=0
    #allocation4 [shape = 'u8[8192]{0}', space=vmem, size = 0x2000, scoped, tag = 'input window, operand 0']
    #allocation5 [shape = 's32[2]{0}', space=sflag, size = 0x8, scoped, tag = 'scoped memory for tpu_custom_call.1']
    #allocation6 [shape = 's32[2]{0}', space=sflag, size = 0x8, scoped, tag = 'scoped memory for tpu_custom_call.1']
    #allocation7 [shape = 'u8[16384]{0}', space=vmem, size = 0x4000, scoped, tag = 'input window, operand 1']
    #allocation8 [shape = 's32[2]{0}', space=sflag, size = 0x8, scoped, tag = 'scoped memory for tpu_custom_call.1']
    #allocation9 [shape = 'u8[8192]{0}', space=vmem, size = 0x2000, scoped, tag = 'output window, operand 0']
    #allocation10 [shape = 'u8[16384]{0}', space=vmem, size = 0x4000, scoped, tag = 'output window, operand 1']
    #allocation11 [shape = 's32[2]{0}', space=sflag, size = 0x8, scoped, tag = 'scoped memory for tpu_custom_call.1']
    %13 = vsyncpa [#allocation5], 0
    %s14 = scalar_lea.sflag [#allocation5], 1
    %15 = vsyncpa %s14, 0
    %16 = vsyncpa [#allocation8], 0
    %s17 = scalar_lea.sflag [#allocation8], 1
    %18 = vsyncpa %s17, 0
    %19 = vsyncpa [#allocation6], 0
    %s20 = scalar_lea.sflag [#allocation6], 1
    %21 = vsyncpa %s20, 0
    %22 = vsyncpa [#allocation11], 0
    %s23 = scalar_lea.sflag [#allocation11], 1
    %24 = vsyncpa %s23, 0
    loop: start=0, step=1, limit=6
    $region2: #{tpu_custom_call.1} parent=1 // loop_pre_header
      _
    $region3: #{tpu_custom_call.1} parent=1 // loop_header
      %s26 = sphi 0, %s30
      %p27 = scmp.ge.s32.totalorder %s26, 6
      %s33 = sphi 0, %s45
      %s34 = sphi 0, %s41
      %s35 = sphi 0, %s33
      %s36 = sphi 0, %s34
      %s37 = sphi 0, %s35
      %s38 = sphi 0, %s36
      %s48 = sphi 0, %s50
      %s51 = sphi 0, %s48
      %s52 = sphi 0, %s51
      %s68 = sphi 0, %s52
      %s74 = sphi 0, %s76
      %s77 = sphi 0, %s74
      %s78 = sphi 0, %s77
      %s94 = sphi 0, %s78
      %s100 = sphi 0, %s102
      %s103 = sphi 0, %s100
      %s104 = sphi 0, %s103
      %s120 = sphi 0, %s104
      %s126 = sphi 0, %s128
      %s129 = sphi 0, %s126
      %s130 = sphi 0, %s129
      %s146 = sphi 0, %s130
      %s152 = sphi 0, %s154
      %s155 = sphi 0, %s152
      %s156 = sphi 0, %s155
      %s172 = sphi 0, %s156
      %s178 = sphi 0, %s180
      %s181 = sphi 0, %s178
      %s182 = sphi 0, %s181
      %s198 = sphi 0, %s182
      %s204 = sphi 0, %s206
      %s207 = sphi 0, %s204
      %s208 = sphi 0, %s207
      %s224 = sphi 0, %s208
      %s230 = sphi 0, %s232
      %s233 = sphi 0, %s230
      %s234 = sphi 0, %s233
      %s250 = sphi 0, %s234
    $region4: #{tpu_custom_call.1} parent=1 // loop_header_branch
      %29 = sbr.rel (%p27) target = $region8
    $region5: #{tpu_custom_call.1} parent=1 // loop_body
      %s31 = ssub.s32 %s26, 1
      %s32 = ssub.s32 %s26, 2
      %s39 = sadd.s32 1, %s34
      %p40 = scmp.ge.s32.totalorder %s39, 2
      %s41 = scalar_select %p40, 0, %s39
      %s42 = sadd.s32 1, %s33
      %s43 = scalar_select %p40, %s42, %s33
      %p44 = scmp.ge.s32.totalorder %s43, 2
      %s45 = scalar_select %p44, 0, %s43
      %s46 = ssub.s32 %s33, %s45
      %p47 = scmp.eq.s32.totalorder %s46, 0
      %s49 = sadd.s32 %s48, 1
      %s50 = scalar_select %p47, %s48, %s49
      %p53 = pneg %p47
      %p54 = scmp.eq.s32.totalorder %s26, 3
      %p55 = por %p53, %p54
      %p56 = scmp.ne.s32.totalorder %s48, %s51
      %p57 = scmp.eq.s32.totalorder %s26, 0
      %p58 = por %p56, %p57
      %p59 = scmp.ne.s32.totalorder %s48, %s51
      %p60 = scmp.eq.s32.totalorder %s31, 3
      %p61 = por %p59, %p60
      %p62 = scmp.ne.s32.totalorder %s51, %s52
      %p63 = scmp.eq.s32.totalorder %s31, 0
      %p64 = por %p62, %p63
      %p65 = scmp.ne.s32.totalorder %s51, %s52
      %p66 = scmp.eq.s32.totalorder %s32, 3
      %p67 = por %p65, %p66
      %p69 = scmp.ne.s32.totalorder %s52, %s68
      %p70 = scmp.eq.s32.totalorder %s32, 0
      %p71 = por %p69, %p70
      %s72 = ssub.s32 %s33, %s45
      %p73 = scmp.eq.s32.totalorder %s72, 0
      %s75 = sadd.s32 %s74, 1
      %s76 = scalar_select %p73, %s74, %s75
      %p79 = pneg %p73
      %p80 = scmp.eq.s32.totalorder %s26, 3
      %p81 = por %p79, %p80
      %p82 = scmp.ne.s32.totalorder %s74, %s77
      %p83 = scmp.eq.s32.totalorder %s26, 0
      %p84 = por %p82, %p83
      %p85 = scmp.ne.s32.totalorder %s74, %s77
      %p86 = scmp.eq.s32.totalorder %s31, 3
      %p87 = por %p85, %p86
      %p88 = scmp.ne.s32.totalorder %s77, %s78
      %p89 = scmp.eq.s32.totalorder %s31, 0
      %p90 = por %p88, %p89
      %p91 = scmp.ne.s32.totalorder %s77, %s78
      %p92 = scmp.eq.s32.totalorder %s32, 3
      %p93 = por %p91, %p92
      %p95 = scmp.ne.s32.totalorder %s78, %s94
      %p96 = scmp.eq.s32.totalorder %s32, 0
      %p97 = por %p95, %p96
      %s98 = ssub.s32 %s33, %s45
      %p99 = scmp.eq.s32.totalorder %s98, 0
      %s101 = sadd.s32 %s100, 1
      %s102 = scalar_select %p99, %s100, %s101
      %p105 = pneg %p99
      %p106 = scmp.eq.s32.totalorder %s26, 3
      %p107 = por %p105, %p106
      %p108 = scmp.ne.s32.totalorder %s100, %s103
      %p109 = scmp.eq.s32.totalorder %s26, 0
      %p110 = por %p108, %p109
      %p111 = scmp.ne.s32.totalorder %s100, %s103
      %p112 = scmp.eq.s32.totalorder %s31, 3
      %p113 = por %p111, %p112
      %p114 = scmp.ne.s32.totalorder %s103, %s104
      %p115 = scmp.eq.s32.totalorder %s31, 0
      %p116 = por %p114, %p115
      %p117 = scmp.ne.s32.totalorder %s103, %s104
      %p118 = scmp.eq.s32.totalorder %s32, 3
      %p119 = por %p117, %p118
      %p121 = scmp.ne.s32.totalorder %s104, %s120
      %p122 = scmp.eq.s32.totalorder %s32, 0
      %p123 = por %p121, %p122
      %s124 = ssub.s32 %s34, %s41
      %p125 = scmp.eq.s32.totalorder %s124, 0
      %s127 = sadd.s32 %s126, 1
      %s128 = scalar_select %p125, %s126, %s127
      %p131 = pneg %p125
      %p132 = scmp.eq.s32.totalorder %s26, 3
      %p133 = por %p131, %p132
      %p134 = scmp.ne.s32.totalorder %s126, %s129
      %p135 = scmp.eq.s32.totalorder %s26, 0
      %p136 = por %p134, %p135
      %p137 = scmp.ne.s32.totalorder %s126, %s129
      %p138 = scmp.eq.s32.totalorder %s31, 3
      %p139 = por %p137, %p138
      %p140 = scmp.ne.s32.totalorder %s129, %s130
      %p141 = scmp.eq.s32.totalorder %s31, 0
      %p142 = por %p140, %p141
      %p143 = scmp.ne.s32.totalorder %s129, %s130
      %p144 = scmp.eq.s32.totalorder %s32, 3
      %p145 = por %p143, %p144
      %p147 = scmp.ne.s32.totalorder %s130, %s146
      %p148 = scmp.eq.s32.totalorder %s32, 0
      %p149 = por %p147, %p148
      %s150 = ssub.s32 %s34, %s41
      %p151 = scmp.eq.s32.totalorder %s150, 0
      %s153 = sadd.s32 %s152, 1
      %s154 = scalar_select %p151, %s152, %s153
      %p157 = pneg %p151
      %p158 = scmp.eq.s32.totalorder %s26, 3
      %p159 = por %p157, %p158
      %p160 = scmp.ne.s32.totalorder %s152, %s155
      %p161 = scmp.eq.s32.totalorder %s26, 0
      %p162 = por %p160, %p161
      %p163 = scmp.ne.s32.totalorder %s152, %s155
      %p164 = scmp.eq.s32.totalorder %s31, 3
      %p165 = por %p163, %p164
      %p166 = scmp.ne.s32.totalorder %s155, %s156
      %p167 = scmp.eq.s32.totalorder %s31, 0
      %p168 = por %p166, %p167
      %p169 = scmp.ne.s32.totalorder %s155, %s156
      %p170 = scmp.eq.s32.totalorder %s32, 3
      %p171 = por %p169, %p170
      %p173 = scmp.ne.s32.totalorder %s156, %s172
      %p174 = scmp.eq.s32.totalorder %s32, 0
      %p175 = por %p173, %p174
      %s176 = ssub.s32 %s34, %s41
      %p177 = scmp.eq.s32.totalorder %s176, 0
      %s179 = sadd.s32 %s178, 1
      %s180 = scalar_select %p177, %s178, %s179
      %p183 = pneg %p177
      %p184 = scmp.eq.s32.totalorder %s26, 3
      %p185 = por %p183, %p184
      %p186 = scmp.ne.s32.totalorder %s178, %s181
      %p187 = scmp.eq.s32.totalorder %s26, 0
      %p188 = por %p186, %p187
      %p189 = scmp.ne.s32.totalorder %s178, %s181
      %p190 = scmp.eq.s32.totalorder %s31, 3
      %p191 = por %p189, %p190
      %p192 = scmp.ne.s32.totalorder %s181, %s182
      %p193 = scmp.eq.s32.totalorder %s31, 0
      %p194 = por %p192, %p193
      %p195 = scmp.ne.s32.totalorder %s181, %s182
      %p196 = scmp.eq.s32.totalorder %s32, 3
      %p197 = por %p195, %p196
      %p199 = scmp.ne.s32.totalorder %s182, %s198
      %p200 = scmp.eq.s32.totalorder %s32, 0
      %p201 = por %p199, %p200
      %s202 = ssub.s32 %s33, %s45
      %p203 = scmp.eq.s32.totalorder %s202, 0
      %s205 = sadd.s32 %s204, 1
      %s206 = scalar_select %p203, %s204, %s205
      %p209 = pneg %p203
      %p210 = scmp.eq.s32.totalorder %s26, 3
      %p211 = por %p209, %p210
      %p212 = scmp.ne.s32.totalorder %s204, %s207
      %p213 = scmp.eq.s32.totalorder %s26, 0
      %p214 = por %p212, %p213
      %p215 = scmp.ne.s32.totalorder %s204, %s207
      %p216 = scmp.eq.s32.totalorder %s31, 3
      %p217 = por %p215, %p216
      %p218 = scmp.ne.s32.totalorder %s207, %s208
      %p219 = scmp.eq.s32.totalorder %s31, 0
      %p220 = por %p218, %p219
      %p221 = scmp.ne.s32.totalorder %s207, %s208
      %p222 = scmp.eq.s32.totalorder %s32, 3
      %p223 = por %p221, %p222
      %p225 = scmp.ne.s32.totalorder %s208, %s224
      %p226 = scmp.eq.s32.totalorder %s32, 0
      %p227 = por %p225, %p226
      %s228 = ssub.s32 %s33, %s45
      %p229 = scmp.eq.s32.totalorder %s228, 0
      %s231 = sadd.s32 %s230, 1
      %s232 = scalar_select %p229, %s230, %s231
      %p235 = pneg %p229
      %p236 = scmp.eq.s32.totalorder %s26, 3
      %p237 = por %p235, %p236
      %p238 = scmp.ne.s32.totalorder %s230, %s233
      %p239 = scmp.eq.s32.totalorder %s26, 0
      %p240 = por %p238, %p239
      %p241 = scmp.ne.s32.totalorder %s230, %s233
      %p242 = scmp.eq.s32.totalorder %s31, 3
      %p243 = por %p241, %p242
      %p244 = scmp.ne.s32.totalorder %s233, %s234
      %p245 = scmp.eq.s32.totalorder %s31, 0
      %p246 = por %p244, %p245
      %p247 = scmp.ne.s32.totalorder %s233, %s234
      %p248 = scmp.eq.s32.totalorder %s32, 3
      %p249 = por %p247, %p248
      %p251 = scmp.ne.s32.totalorder %s234, %s250
      %p252 = scmp.eq.s32.totalorder %s32, 0
      %p253 = por %p251, %p252
      %p254 = scmp.le.s32.totalorder 1, %s26
      %p255 = scmp.lt.s32.totalorder %s26, 5
      %p256 = pnand %p254, %p255
      %p257 = pneg %p256
      // Predicated region
      $region9: #{tpu_custom_call.1} parent=5 // pred_check
        _
      $region10: #{tpu_custom_call.1} parent=5 // pred_check_branch
        %259 = sbr.rel (%p256) target = $region12
      $region11: #{tpu_custom_call.1} parent=5 // pred_region
        %s260 = ssub.s32 %s26, 1
      $region12: #{tpu_custom_call.1} parent=5 // pred_fallthru
        _
      %p261 = scmp.lt.s32.totalorder %s26, 4
      // Predicated region
      $region13: #{tpu_custom_call.1} parent=5 // pred_check
        %p262 = pneg %p261
      $region14: #{tpu_custom_call.1} parent=5 // pred_check_branch
        %264 = sbr.rel (%p262) target = $region16
      $region15: #{tpu_custom_call.1} parent=5 // pred_region
        // Predicated region
        $region17: #{tpu_custom_call.1} parent=15 // pred_check
          %p265 = pneg %p58
        $region18: #{tpu_custom_call.1} parent=15 // pred_check_branch
          %267 = sbr.rel (%p265) target = $region20
        $region19: #{tpu_custom_call.1} parent=15 // pred_region
          %s268 = sand.u32 %s48, 1
          %s269 = scalar_lea.sflag [#allocation5], %s268
          %s270 = sand.u32 %s48, 1
          %s271 = smul.addr %s270, 8
          %s272 = scalar_lea.vmem [#allocation4], %s271
          %s274 = ssub.s32 128, 128
          %275 = vsyncadd %s269, %s274
          %s276 = smul.addr %s33, 128
          %s277 = scalar_lea.hbm %s0, %s276
          %s279 = sshll.u32 %s272, 4
          %s280 = int_to_ptr.vmem [resolvable:$true] %s279
          %282 = dma.hbm_to_vmem [thread:$0]  %s277, 128, %s280, %s269
        $region20: #{tpu_custom_call.1} parent=15 // pred_fallthru
          _
        // Predicated region
        $region21: #{tpu_custom_call.1} parent=15 // pred_check
          %p283 = pneg %p84
        $region22: #{tpu_custom_call.1} parent=15 // pred_check_branch
          %285 = sbr.rel (%p283) target = $region24
        $region23: #{tpu_custom_call.1} parent=15 // pred_region
          %s286 = sand.u32 %s74, 1
          %s287 = scalar_lea.sflag [#allocation8], %s286
          %s288 = sand.u32 %s74, 1
          %s289 = smul.addr %s288, 16
          %s290 = scalar_lea.vmem [#allocation7], %s289
          %s292 = ssub.s32 256, 256
          %293 = vsyncadd %s287, %s292
          %s294 = smul.addr %s33, 2
          %s295 = smul.addr %s294, 128
          %s296 = scalar_lea.hbm %s1, %s295
          %s297 = sshll.u32 %s290, 4
          %s298 = int_to_ptr.vmem [resolvable:$true] %s297
          %303 = dma.hbm_to_vmem [thread:$0]  %s296, 256, %s298, %s287, 128, 128, 8
        $region24: #{tpu_custom_call.1} parent=15 // pred_fallthru
          _
        // Predicated region
        $region25: #{tpu_custom_call.1} parent=15 // pred_check
          %p304 = pneg %p110
        $region26: #{tpu_custom_call.1} parent=15 // pred_check_branch
          %306 = sbr.rel (%p304) target = $region28
        $region27: #{tpu_custom_call.1} parent=15 // pred_region
          %p307 = scmp.lt.s32.totalorder %s33, 1
          %s308 = scalar_select %p307, %s33, 1
          %s309 = smul.addr %s308, 3
          %s310 = smul.addr %s309, 8
          %s311 = scalar_lea.vmem %s2, %s310
        $region28: #{tpu_custom_call.1} parent=15 // pred_fallthru
          _
        // Predicated region
        $region29: #{tpu_custom_call.1} parent=15 // pred_check
          %p312 = pneg %p136
        $region30: #{tpu_custom_call.1} parent=15 // pred_check_branch
          %314 = sbr.rel (%p312) target = $region32
        $region31: #{tpu_custom_call.1} parent=15 // pred_region
          %p315 = scmp.lt.s32.totalorder %s34, 1
          %s316 = scalar_select %p315, %s34, 1
          %s317 = smul.addr %s316, 3
          %s318 = smul.addr %s317, 8
          %s319 = scalar_lea.vmem %s3, %s318
        $region32: #{tpu_custom_call.1} parent=15 // pred_fallthru
          _
        // Predicated region
        $region33: #{tpu_custom_call.1} parent=15 // pred_check
          %p320 = pneg %p162
        $region34: #{tpu_custom_call.1} parent=15 // pred_check_branch
          %322 = sbr.rel (%p320) target = $region36
        $region35: #{tpu_custom_call.1} parent=15 // pred_region
          %p323 = scmp.lt.s32.totalorder %s34, 1
          %s324 = scalar_select %p323, %s34, 1
          %s325 = smul.addr %s324, 16
          %s326 = smul.addr %s325, 4
          %s327 = scalar_lea.vmem %s4, %s326
        $region36: #{tpu_custom_call.1} parent=15 // pred_fallthru
          _
        // Predicated region
        $region37: #{tpu_custom_call.1} parent=15 // pred_check
          %p328 = pneg %p188
        $region38: #{tpu_custom_call.1} parent=15 // pred_check_branch
          %330 = sbr.rel (%p328) target = $region40
        $region39: #{tpu_custom_call.1} parent=15 // pred_region
          %p331 = scmp.lt.s32.totalorder %s34, 1
          %s332 = scalar_select %p331, %s34, 1
          %s333 = smul.addr %s332, 32
          %s334 = smul.addr %s333, 4
          %s335 = scalar_lea.vmem %s5, %s334
        $region40: #{tpu_custom_call.1} parent=15 // pred_fallthru
          _
      $region16: #{tpu_custom_call.1} parent=5 // pred_fallthru
        _
      %p336 = scmp.le.s32.totalorder 1, %s26
      %p337 = scmp.lt.s32.totalorder %s26, 5
      %p338 = pnand %p336, %p337
      %p339 = pneg %p338
      // Predicated region
      $region41: #{tpu_custom_call.1} parent=5 // pred_check
        _
      $region42: #{tpu_custom_call.1} parent=5 // pred_check_branch
        %341 = sbr.rel (%p338) target = $region44
      $region43: #{tpu_custom_call.1} parent=5 // pred_region
        %s342 = ssub.s32 %s26, 1
        %s343 = sand.u32 %s51, 1
        %s344 = scalar_lea.sflag [#allocation5], %s343
        %s345 = sand.u32 %s51, 1
        %s346 = smul.addr %s345, 8
        %s347 = scalar_lea.vmem [#allocation4], %s346
        // Predicated region
        $region45: #{tpu_custom_call.1} parent=43 // pred_check
          %p348 = pneg %p64
        $region46: #{tpu_custom_call.1} parent=43 // pred_check_branch
          %350 = sbr.rel (%p348) target = $region48
        $region47: #{tpu_custom_call.1} parent=43 // pred_region
          %351 = dma.done %s344, 128
        $region48: #{tpu_custom_call.1} parent=43 // pred_fallthru
          _
        %s352 = sand.u32 %s77, 1
        %s353 = scalar_lea.sflag [#allocation8], %s352
        %s354 = sand.u32 %s77, 1
        %s355 = smul.addr %s354, 16
        %s356 = scalar_lea.vmem [#allocation7], %s355
        // Predicated region
        $region49: #{tpu_custom_call.1} parent=43 // pred_check
          %p357 = pneg %p90
        $region50: #{tpu_custom_call.1} parent=43 // pred_check_branch
          %359 = sbr.rel (%p357) target = $region52
        $region51: #{tpu_custom_call.1} parent=43 // pred_region
          %360 = dma.done %s353, 256
        $region52: #{tpu_custom_call.1} parent=43 // pred_fallthru
          _
        %s361 = sand.u32 %s51, 1
        %s362 = scalar_lea.sflag [#allocation5], %s361
        %s363 = sand.u32 %s51, 1
        %s364 = smul.addr %s363, 8
        %s365 = scalar_lea.vmem [#allocation4], %s364
        %p366 = pneg %p64
        %p367 = pneg %p61
        %s368 = sand.u32 %s77, 1
        %s369 = scalar_lea.sflag [#allocation8], %s368
        %s370 = sand.u32 %s77, 1
        %s371 = smul.addr %s370, 16
        %s372 = scalar_lea.vmem [#allocation7], %s371
        %p373 = pneg %p90
        %p374 = pneg %p87
        %p375 = scmp.lt.s32.totalorder %s35, 1
        %s376 = scalar_select %p375, %s35, 1
        %s377 = smul.addr %s376, 3
        %s378 = smul.addr %s377, 8
        %s379 = scalar_lea.vmem %s2, %s378
        %p380 = pneg %p116
        %p381 = pneg %p113
        %p382 = scmp.lt.s32.totalorder %s36, 1
        %s383 = scalar_select %p382, %s36, 1
        %s384 = smul.addr %s383, 3
        %s385 = smul.addr %s384, 8
        %s386 = scalar_lea.vmem %s3, %s385
        %p387 = pneg %p142
        %p388 = pneg %p139
        %p389 = scmp.lt.s32.totalorder %s36, 1
        %s390 = scalar_select %p389, %s36, 1
        %s391 = smul.addr %s390, 16
        %s392 = smul.addr %s391, 4
        %s393 = scalar_lea.vmem %s4, %s392
        %p394 = pneg %p168
        %p395 = pneg %p165
        %p396 = scmp.lt.s32.totalorder %s36, 1
        %s397 = scalar_select %p396, %s36, 1
        %s398 = smul.addr %s397, 32
        %s399 = smul.addr %s398, 4
        %s400 = scalar_lea.vmem %s5, %s399
        %p401 = pneg %p194
        %p402 = pneg %p191
        %p403 = pneg %p220
        %p404 = pneg %p217
        %s405 = sand.u32 %s207, 1
        %s406 = scalar_lea.sflag [#allocation6], %s405
        %s407 = sand.u32 %s207, 1
        %s408 = smul.addr %s407, 8
        %s409 = scalar_lea.vmem [#allocation9], %s408
        %p410 = pneg %p246
        %p411 = pneg %p243
        %s412 = sand.u32 %s233, 1
        %s413 = scalar_lea.sflag [#allocation11], %s412
        %s414 = sand.u32 %s233, 1
        %s415 = smul.addr %s414, 16
        %s416 = scalar_lea.vmem [#allocation10], %s415
        %p417 = scmp.lt.s32.totalorder %s35, 1
        %s418 = scalar_select %p417, %s35, 1
        %s419 = smul.addr %s418, 3
        %s420 = smul.addr %s419, 8
        %s421 = scalar_lea.vmem %s2, %s420
        %p422 = scmp.lt.s32.totalorder %s36, 1
        %s423 = scalar_select %p422, %s36, 1
        %s424 = smul.addr %s423, 3
        %s425 = smul.addr %s424, 8
        %s426 = scalar_lea.vmem %s3, %s425
        %p427 = scmp.lt.s32.totalorder %s36, 1
        %s428 = scalar_select %p427, %s36, 1
        %s429 = smul.addr %s428, 16
        %s430 = smul.addr %s429, 4
        %s431 = scalar_lea.vmem %s4, %s430
        %p432 = scmp.lt.s32.totalorder %s36, 1
        %s433 = scalar_select %p432, %s36, 1
        %s434 = smul.addr %s433, 32
        %s435 = smul.addr %s434, 4
        %s436 = scalar_lea.vmem %s5, %s435
        %p438 = scmp.eq.s32.totalorder %s36, 0
        // Predicated region
        $region53: #{tpu_custom_call.1} parent=43 // pred_check
          %p439 = pneg %p438
        $region54: #{tpu_custom_call.1} parent=43 // pred_check_branch
          %441 = sbr.rel (%p439) target = $region56
        $region55: #{tpu_custom_call.1} parent=43 // pred_region
          %v442 = vld [vmem:[%s347] sm:$0xff]
          %vm443 = vcmask 261120
          %444 = vst.msk [vmem:[#allocation2] sm:$0xff] %vm443, %v442
          %v445 = vld [vmem:[%s356] sm:$0xff]
          %v446 = vld [vmem:[%s356 + $0x8] sm:$0xff]
          %447 = vst.msk [vmem:[#allocation3] sm:$0xff] %vm443, %v445
          %448 = vst.msk [vmem:[#allocation3 + $0x8] sm:$0xff] %vm443, %v446
        $region56: #{tpu_custom_call.1} parent=43 // pred_fallthru
          _
        %v449 = vld [vmem:[#allocation2] sm:$0xff]
        %v450 = vld [vmem:[#allocation3] sm:$0xff]
        %v451 = vld [vmem:[#allocation3 + $0x8] sm:$0xff]
        %v452 = vld [vmem:[%s426] sm:$0xff]
        %v453 = vld [vmem:[%s426 + $0x8] sm:$0xff]
        %v454 = vld [vmem:[%s426 + $0x10] sm:$0xf]
        %v455 = vld [vmem:[%s431] sm:$0xff]
        %v456 = vld [vmem:[%s431 + $0x8] sm:$0xff]
        %v457 = vld [vmem:[%s431 + $0x10] sm:$0xff]
        %v458 = vld [vmem:[%s431 + $0x18] sm:$0xff]
        %v459 = vld [vmem:[%s431 + $0x20] sm:$0xff]
        %v460 = vld [vmem:[%s431 + $0x28] sm:$0xff]
        %v461 = vld [vmem:[%s431 + $0x30] sm:$0xff]
        %v462 = vld [vmem:[%s431 + $0x38] sm:$0xff]
        %v463 = vld [vmem:[%s436] sm:$0xf]
        %v464 = vld [vmem:[%s436 + $0x4] sm:$0xf]
        %v465 = vld [vmem:[%s436 + $0x8] sm:$0xf]
        %v466 = vld [vmem:[%s436 + $0xc] sm:$0xf]
        %v467 = vld [vmem:[%s436 + $0x10] sm:$0xf]
        %v468 = vld [vmem:[%s436 + $0x14] sm:$0xf]
        %v469 = vld [vmem:[%s436 + $0x18] sm:$0xf]
        %v470 = vld [vmem:[%s436 + $0x1c] sm:$0xf]
        %v471 = vld [vmem:[%s436 + $0x20] sm:$0xf]
        %v472 = vld [vmem:[%s436 + $0x24] sm:$0xf]
        %v473 = vld [vmem:[%s436 + $0x28] sm:$0xf]
        %v474 = vld [vmem:[%s436 + $0x2c] sm:$0xf]
        %v475 = vld [vmem:[%s436 + $0x30] sm:$0xf]
        %v476 = vld [vmem:[%s436 + $0x34] sm:$0xf]
        %v477 = vld [vmem:[%s436 + $0x38] sm:$0xf]
        %v478 = vld [vmem:[%s436 + $0x3c] sm:$0xf]
        %v479 = vld [vmem:[%s436 + $0x40] sm:$0xf]
        %v480 = vld [vmem:[%s436 + $0x44] sm:$0xf]
        %v481 = vld [vmem:[%s436 + $0x48] sm:$0xf]
        %v482 = vld [vmem:[%s436 + $0x4c] sm:$0xf]
        %v483 = vld [vmem:[%s436 + $0x50] sm:$0xf]
        %v484 = vld [vmem:[%s436 + $0x54] sm:$0xf]
        %v485 = vld [vmem:[%s436 + $0x58] sm:$0xf]
        %v486 = vld [vmem:[%s436 + $0x5c] sm:$0xf]
        %v487 = vld [vmem:[%s436 + $0x60] sm:$0xf]
        %v488 = vld [vmem:[%s436 + $0x64] sm:$0xf]
        %v489 = vld [vmem:[%s436 + $0x68] sm:$0xf]
        %v490 = vld [vmem:[%s436 + $0x6c] sm:$0xf]
        %v491 = vld [vmem:[%s436 + $0x70] sm:$0xf]
        %v492 = vld [vmem:[%s436 + $0x74] sm:$0xf]
        %v493 = vld [vmem:[%s436 + $0x78] sm:$0xf]
        %v494 = vld [vmem:[%s436 + $0x7c] sm:$0xf]
        %v495 = vld [vmem:[%s421] sm:$0xff]
        %v496 = vld [vmem:[%s421 + $0x8] sm:$0xff]
        %v497 = vld [vmem:[%s421 + $0x10] sm:$0xff]
        %vm498 = vcmask 261120
        %v499 = vsel %vm498, %v449, 0.0
        %500 = vadd.xlane.f32.xlu0 %v499
        %v501 = vpop.xlane.xlu0 %500
        %v502 = vrcp.pop 32.0
        %v503 = vmul.f32 %v501, %v502
        %v504 = vsub.f32 %v449, %v503
        %v505 = vmul.f32 %v504, %v504
        %v506 = vsel %vm498, %v505, 0.0
        %507 = vadd.xlane.f32.xlu0 %v506
        %v508 = vpop.xlane.xlu0 %507
        %v509 = vmul.f32 %v508, %v502
        %v510 = vadd.f32 %v509, 1e-05
        %v511 = vrsqrt.pop %v510
        %v512 = vmul.f32 %v504, %v511
        %v513 = vlaneseq
        %v514 = vshrl.u32 %v513, 7
        %v515 = vsub.s32 0, %v514
        %v516 = vrot.slane %v452, %v515
        %v517 = vmul.f32 %v512, %v516
        %v518 = vlaneseq
        %v519 = vshrl.u32 %v518, 7
        %v520 = vsub.s32 1, %v519
        %v521 = vrot.slane %v452, %v520
        %v522 = vadd.f32 %v517, %v521
        %v523 = vpack.c.bf16 %v522, %v522
        %v528 = vunpack.c.l.b16 %v455
        %v529 = vunpack.c.l.b16 %v457
        %v530 = vunpack.c.l.b16 %v459
        %v531 = vunpack.c.l.b16 %v461
        %v532 = vpack.c.b16 %v529, %v528
        %v533 = vpack.c.b16 %v531, %v530
        %v537 = vsel %vm498, %v523, 0
        %539 = vmatprep.subr.bf16.mxu0 0
        %540 = vmatpush1.bf16.msra.mxu0 %v532
        %541 = vmatprep.subr.bf16.mxu0 0
        %542 = vmatpush1.bf16.msra.mxu0 %v533
        %543 = vmatprep.subr.bf16.mxu0 0
        %544 = vmatpush1.bf16.msra.mxu0 0
        %545 = vmatprep.subr.bf16.mxu0 0
        %546 = vmatpush1.bf16.msra.mxu0 0
        %547 = vmatprep.subr.bf16.mxu0 0
        %548 = vmatpush1.bf16.msra.mxu0 0
        %549 = vmatprep.subr.bf16.mxu0 0
        %550 = vmatpush1.bf16.msra.mxu0 0
        %551 = vmatprep.subr.bf16.mxu0 0
        %552 = vmatpush1.bf16.msra.mxu0 0
        %553 = vmatprep.subr.bf16.mxu0 0
        %554 = vmatpush1.bf16.msra.mxu0 0
        %555 = vmatprep.subr.bf16.mxu0 0
        %556 = vmatpush1.bf16.msra.mxu0 0
        %557 = vmatprep.subr.bf16.mxu0 0
        %558 = vmatpush1.bf16.msra.mxu0 0
        %559 = vmatprep.subr.bf16.mxu0 0
        %560 = vmatpush1.bf16.msra.mxu0 0
        %561 = vmatprep.subr.bf16.mxu0 0
        %562 = vmatpush1.bf16.msra.mxu0 0
        %563 = vmatprep.subr.bf16.mxu0 0
        %564 = vmatpush1.bf16.msra.mxu0 0
        %565 = vmatprep.subr.bf16.mxu0 0
        %566 = vmatpush1.bf16.msra.mxu0 0
        %567 = vmatprep.subr.bf16.mxu0 0
        %568 = vmatpush1.bf16.msra.mxu0 0
        %569 = vmatprep.subr.bf16.mxu0 0
        %570 = vmatpush1.bf16.msra.mxu0 0
        %571 = vmatprep.mubr.bf16.mxu0 0
        %572 = vmatmul.mubr.bf16.gmra.mrb[0].mxu0 %v537
        %v573 = vpop.f32.mrb[0].mxu0
        %v574 = vadd.f32 0.0, %v573
        %v575 = vpop.f32.mrb[0].mxu0
        %v576 = vpop.f32.mrb[0].mxu0
        %v577 = vpop.f32.mrb[0].mxu0
        %578 = vdwg.mxu0
        %v579 = vpack.c.bf16 %v574, %v574
        %581 = vrot.lane.b32.xlu0 %v579, 96
        %v582 = vpop.permute.xlu0 %581
        %vm583 = vcmask 130048
        %v585 = vsel %vm583, %v579, 0
        %v588 = vsel %vm583, %v582, 0
        %590 = vmatprep.subr.bf16.mxu0 0
        %591 = vmatpush1.bf16.xpose.msra.mxu0 %v588
        %592 = vmatprep.subr.bf16.mxu0 0
        %593 = vmatpush1.bf16.xpose.msra.mxu0 0
        %594 = vmatprep.subr.bf16.mxu0 0
        %595 = vmatpush1.bf16.xpose.msra.mxu0 0
        %596 = vmatprep.subr.bf16.mxu0 0
        %597 = vmatpush1.bf16.xpose.msra.mxu0 0
        %598 = vmatprep.subr.bf16.mxu0 0
        %599 = vmatpush1.bf16.xpose.msra.mxu0 0
        %600 = vmatprep.subr.bf16.mxu0 0
        %601 = vmatpush1.bf16.xpose.msra.mxu0 0
        %602 = vmatprep.subr.bf16.mxu0 0
        %603 = vmatpush1.bf16.xpose.msra.mxu0 0
        %604 = vmatprep.subr.bf16.mxu0 0
        %605 = vmatpush1.bf16.xpose.msra.mxu0 0
        %606 = vmatprep.subr.bf16.mxu0 0
        %607 = vmatpush1.bf16.xpose.msra.mxu0 0
        %608 = vmatprep.subr.bf16.mxu0 0
        %609 = vmatpush1.bf16.xpose.msra.mxu0 0
        %610 = vmatprep.subr.bf16.mxu0 0
        %611 = vmatpush1.bf16.xpose.msra.mxu0 0
        %612 = vmatprep.subr.bf16.mxu0 0
        %613 = vmatpush1.bf16.xpose.msra.mxu0 0
        %614 = vmatprep.subr.bf16.mxu0 0
        %615 = vmatpush1.bf16.xpose.msra.mxu0 0
        %616 = vmatprep.subr.bf16.mxu0 0
        %617 = vmatpush1.bf16.xpose.msra.mxu0 0
        %618 = vmatprep.subr.bf16.mxu0 0
        %619 = vmatpush1.bf16.xpose.msra.mxu0 0
        %620 = vmatprep.subr.bf16.mxu0 0
        %621 = vmatpush1.bf16.xpose.msra.mxu0 0
        %622 = vmatprep.mubr.bf16.mxu0 0
        %623 = vmatmul.mubr.bf16.gmra.mrb[0].mxu0 %v585
        %v624 = vpop.f32.mrb[0].mxu0
        %v625 = vadd.f32 %v495, %v624
        %v626 = vpop.f32.mrb[0].mxu0
        %v627 = vpop.f32.mrb[0].mxu0
        %v628 = vpop.f32.mrb[0].mxu0
        %629 = vdwg.mxu0
        %vm630 = vcmask 64512
        %v631 = vsel %vm630, %v625, -inf
        %632 = vmax.xlane.f32.xlu0 %v631
        %v633 = vpop.xlane.xlu0 %632
        %v634 = vsub.f32 %v625, %v633
        %v635 = vmul.f32 %v634, 1.442695
        %v636 = vpow.pop %v635
        %v637 = vsel %vm630, %v636, 0.0
        %638 = vadd.xlane.f32.xlu0 %v637
        %v639 = vpop.xlane.xlu0 %638
        %v640 = vrcp.pop %v639
        %v641 = vmul.f32 %v636, %v640
        %v642 = vpack.c.bf16 %v641, %v641
        %643 = vrot.lane.b32.xlu0 %v579, 64
        %v644 = vpop.permute.xlu0 %643
        %v646 = vsel %vm630, %v642, 0
        %vm648 = vcmask 1043456
        %v650 = vsel %vm648, %v644, 0
        %652 = vmatprep.subr.bf16.mxu0 0
        %653 = vmatpush1.bf16.msra.mxu0 %v650
        %654 = vmatprep.subr.bf16.mxu0 0
        %655 = vmatpush1.bf16.msra.mxu0 0
        %656 = vmatprep.subr.bf16.mxu0 0
        %657 = vmatpush1.bf16.msra.mxu0 0
        %658 = vmatprep.subr.bf16.mxu0 0
        %659 = vmatpush1.bf16.msra.mxu0 0
        %660 = vmatprep.subr.bf16.mxu0 0
        %661 = vmatpush1.bf16.msra.mxu0 0
        %662 = vmatprep.subr.bf16.mxu0 0
        %663 = vmatpush1.bf16.msra.mxu0 0
        %664 = vmatprep.subr.bf16.mxu0 0
        %665 = vmatpush1.bf16.msra.mxu0 0
        %666 = vmatprep.subr.bf16.mxu0 0
        %667 = vmatpush1.bf16.msra.mxu0 0
        %668 = vmatprep.subr.bf16.mxu0 0
        %669 = vmatpush1.bf16.msra.mxu0 0
        %670 = vmatprep.subr.bf16.mxu0 0
        %671 = vmatpush1.bf16.msra.mxu0 0
        %672 = vmatprep.subr.bf16.mxu0 0
        %673 = vmatpush1.bf16.msra.mxu0 0
        %674 = vmatprep.subr.bf16.mxu0 0
        %675 = vmatpush1.bf16.msra.mxu0 0
        %676 = vmatprep.subr.bf16.mxu0 0
        %677 = vmatpush1.bf16.msra.mxu0 0
        %678 = vmatprep.subr.bf16.mxu0 0
        %679 = vmatpush1.bf16.msra.mxu0 0
        %680 = vmatprep.subr.bf16.mxu0 0
        %681 = vmatpush1.bf16.msra.mxu0 0
        %682 = vmatprep.subr.bf16.mxu0 0
        %683 = vmatpush1.bf16.msra.mxu0 0
        %684 = vmatprep.mubr.bf16.mxu0 0
        %685 = vmatmul.mubr.bf16.gmra.mrb[0].mxu0 %v646
        %v686 = vpop.f32.mrb[0].mxu0
        %v687 = vadd.f32 0.0, %v686
        %v688 = vpop.f32.mrb[0].mxu0
        %v689 = vpop.f32.mrb[0].mxu0
        %v690 = vpop.f32.mrb[0].mxu0
        %691 = vdwg.mxu0
        %v692 = vpack.c.bf16 %v687, %v687
        %693 = vrot.lane.b32.xlu0 %v579, 112
        %v694 = vpop.permute.xlu0 %693
        %695 = vrot.lane.b32.xlu0 %v579, 80
        %v696 = vpop.permute.xlu0 %695
        %v698 = vsel %vm583, %v694, 0
        %v701 = vsel %vm583, %v696, 0
        %703 = vmatprep.subr.bf16.mxu0 0
        %704 = vmatpush1.bf16.xpose.msra.mxu0 %v701
        %705 = vmatprep.subr.bf16.mxu0 0
        %706 = vmatpush1.bf16.xpose.msra.mxu0 0
        %707 = vmatprep.subr.bf16.mxu0 0
        %708 = vmatpush1.bf16.xpose.msra.mxu0 0
        %709 = vmatprep.subr.bf16.mxu0 0
        %710 = vmatpush1.bf16.xpose.msra.mxu0 0
        %711 = vmatprep.subr.bf16.mxu0 0
        %712 = vmatpush1.bf16.xpose.msra.mxu0 0
        %713 = vmatprep.subr.bf16.mxu0 0
        %714 = vmatpush1.bf16.xpose.msra.mxu0 0
        %715 = vmatprep.subr.bf16.mxu0 0
        %716 = vmatpush1.bf16.xpose.msra.mxu0 0
        %717 = vmatprep.subr.bf16.mxu0 0
        %718 = vmatpush1.bf16.xpose.msra.mxu0 0
        %719 = vmatprep.subr.bf16.mxu0 0
        %720 = vmatpush1.bf16.xpose.msra.mxu0 0
        %721 = vmatprep.subr.bf16.mxu0 0
        %722 = vmatpush1.bf16.xpose.msra.mxu0 0
        %723 = vmatprep.subr.bf16.mxu0 0
        %724 = vmatpush1.bf16.xpose.msra.mxu0 0
        %725 = vmatprep.subr.bf16.mxu0 0
        %726 = vmatpush1.bf16.xpose.msra.mxu0 0
        %727 = vmatprep.subr.bf16.mxu0 0
        %728 = vmatpush1.bf16.xpose.msra.mxu0 0
        %729 = vmatprep.subr.bf16.mxu0 0
        %730 = vmatpush1.bf16.xpose.msra.mxu0 0
        %731 = vmatprep.subr.bf16.mxu0 0
        %732 = vmatpush1.bf16.xpose.msra.mxu0 0
        %733 = vmatprep.subr.bf16.mxu0 0
        %734 = vmatpush1.bf16.xpose.msra.mxu0 0
        %735 = vmatprep.mubr.bf16.mxu0 0
        %736 = vmatmul.mubr.bf16.gmra.mrb[0].mxu0 %v698
        %v737 = vpop.f32.mrb[0].mxu0
        %v738 = vadd.f32 %v495, %v737
        %v739 = vpop.f32.mrb[0].mxu0
        %v740 = vpop.f32.mrb[0].mxu0
        %v741 = vpop.f32.mrb[0].mxu0
        %742 = vdwg.mxu0
        %v743 = vsel %vm630, %v738, -inf
        %744 = vmax.xlane.f32.xlu0 %v743
        %v745 = vpop.xlane.xlu0 %744
        %v746 = vsub.f32 %v738, %v745
        %v747 = vmul.f32 %v746, 1.442695
        %v748 = vpow.pop %v747
        %v749 = vsel %vm630, %v748, 0.0
        %750 = vadd.xlane.f32.xlu0 %v749
        %v751 = vpop.xlane.xlu0 %750
        %v752 = vrcp.pop %v751
        %v753 = vmul.f32 %v748, %v752
        %v754 = vpack.c.bf16 %v753, %v753
        %755 = vrot.lane.b32.xlu0 %v579, 48
        %v756 = vpop.permute.xlu0 %755
        %v758 = vsel %vm630, %v754, 0
        %v761 = vsel %vm648, %v756, 0
        %763 = vmatprep.subr.bf16.mxu0 0
        %764 = vmatpush1.bf16.msra.mxu0 %v761
        %765 = vmatprep.subr.bf16.mxu0 0
        %766 = vmatpush1.bf16.msra.mxu0 0
        %767 = vmatprep.subr.bf16.mxu0 0
        %768 = vmatpush1.bf16.msra.mxu0 0
        %769 = vmatprep.subr.bf16.mxu0 0
        %770 = vmatpush1.bf16.msra.mxu0 0
        %771 = vmatprep.subr.bf16.mxu0 0
        %772 = vmatpush1.bf16.msra.mxu0 0
        %773 = vmatprep.subr.bf16.mxu0 0
        %774 = vmatpush1.bf16.msra.mxu0 0
        %775 = vmatprep.subr.bf16.mxu0 0
        %776 = vmatpush1.bf16.msra.mxu0 0
        %777 = vmatprep.subr.bf16.mxu0 0
        %778 = vmatpush1.bf16.msra.mxu0 0
        %779 = vmatprep.subr.bf16.mxu0 0
        %780 = vmatpush1.bf16.msra.mxu0 0
        %781 = vmatprep.subr.bf16.mxu0 0
        %782 = vmatpush1.bf16.msra.mxu0 0
        %783 = vmatprep.subr.bf16.mxu0 0
        %784 = vmatpush1.bf16.msra.mxu0 0
        %785 = vmatprep.subr.bf16.mxu0 0
        %786 = vmatpush1.bf16.msra.mxu0 0
        %787 = vmatprep.subr.bf16.mxu0 0
        %788 = vmatpush1.bf16.msra.mxu0 0
        %789 = vmatprep.subr.bf16.mxu0 0
        %790 = vmatpush1.bf16.msra.mxu0 0
        %791 = vmatprep.subr.bf16.mxu0 0
        %792 = vmatpush1.bf16.msra.mxu0 0
        %793 = vmatprep.subr.bf16.mxu0 0
        %794 = vmatpush1.bf16.msra.mxu0 0
        %795 = vmatprep.mubr.bf16.mxu0 0
        %796 = vmatmul.mubr.bf16.gmra.mrb[0].mxu0 %v758
        %v797 = vpop.f32.mrb[0].mxu0
        %v798 = vadd.f32 0.0, %v797
        %v799 = vpop.f32.mrb[0].mxu0
        %v800 = vpop.f32.mrb[0].mxu0
        %v801 = vpop.f32.mrb[0].mxu0
        %802 = vdwg.mxu0
        %v803 = vpack.c.bf16 %v798, %v798
        %v806 = vunpack.c.l.b16 %v465
        %v807 = vunpack.c.l.b16 %v466
        %v808 = vpack.c.b16 %v807, %v806
        %v811 = vsel %vm583, %v803, 0
        %813 = vmatprep.subr.bf16.mxu0 0
        %814 = vmatpush1.bf16.msra.mxu0 %v808
        %815 = vmatprep.subr.bf16.mxu0 0
        %816 = vmatpush1.bf16.msra.mxu0 0
        %817 = vmatprep.subr.bf16.mxu0 0
        %818 = vmatpush1.bf16.msra.mxu0 0
        %819 = vmatprep.subr.bf16.mxu0 0
        %820 = vmatpush1.bf16.msra.mxu0 0
        %821 = vmatprep.subr.bf16.mxu0 0
        %822 = vmatpush1.bf16.msra.mxu0 0
        %823 = vmatprep.subr.bf16.mxu0 0
        %824 = vmatpush1.bf16.msra.mxu0 0
        %825 = vmatprep.subr.bf16.mxu0 0
        %826 = vmatpush1.bf16.msra.mxu0 0
        %827 = vmatprep.subr.bf16.mxu0 0
        %828 = vmatpush1.bf16.msra.mxu0 0
        %829 = vmatprep.subr.bf16.mxu0 0
        %830 = vmatpush1.bf16.msra.mxu0 0
        %831 = vmatprep.subr.bf16.mxu0 0
        %832 = vmatpush1.bf16.msra.mxu0 0
        %833 = vmatprep.subr.bf16.mxu0 0
        %834 = vmatpush1.bf16.msra.mxu0 0
        %835 = vmatprep.subr.bf16.mxu0 0
        %836 = vmatpush1.bf16.msra.mxu0 0
        %837 = vmatprep.subr.bf16.mxu0 0
        %838 = vmatpush1.bf16.msra.mxu0 0
        %839 = vmatprep.subr.bf16.mxu0 0
        %840 = vmatpush1.bf16.msra.mxu0 0
        %841 = vmatprep.subr.bf16.mxu0 0
        %842 = vmatpush1.bf16.msra.mxu0 0
        %843 = vmatprep.subr.bf16.mxu0 0
        %844 = vmatpush1.bf16.msra.mxu0 0
        %845 = vmatprep.mubr.bf16.mxu0 0
        %846 = vmatmul.mubr.bf16.gmra.mrb[0].mxu0 %v811
        %v847 = vpop.f32.mrb[0].mxu0
        %v848 = vadd.f32 0.0, %v847
        %v849 = vpop.f32.mrb[0].mxu0
        %v850 = vpop.f32.mrb[0].mxu0
        %v851 = vpop.f32.mrb[0].mxu0
        %852 = vdwg.mxu0
        %v855 = vunpack.c.l.b16 %v463
        %v856 = vunpack.c.l.b16 %v464
        %v857 = vpack.c.b16 %v856, %v855
        %v860 = vsel %vm583, %v692, 0
        %862 = vmatprep.subr.bf16.mxu0 0
        %863 = vmatpush1.bf16.msra.mxu0 %v857
        %864 = vmatprep.subr.bf16.mxu0 0
        %865 = vmatpush1.bf16.msra.mxu0 0
        %866 = vmatprep.subr.bf16.mxu0 0
        %867 = vmatpush1.bf16.msra.mxu0 0
        %868 = vmatprep.subr.bf16.mxu0 0
        %869 = vmatpush1.bf16.msra.mxu0 0
        %870 = vmatprep.subr.bf16.mxu0 0
        %871 = vmatpush1.bf16.msra.mxu0 0
        %872 = vmatprep.subr.bf16.mxu0 0
        %873 = vmatpush1.bf16.msra.mxu0 0
        %874 = vmatprep.subr.bf16.mxu0 0
        %875 = vmatpush1.bf16.msra.mxu0 0
        %876 = vmatprep.subr.bf16.mxu0 0
        %877 = vmatpush1.bf16.msra.mxu0 0
        %878 = vmatprep.subr.bf16.mxu0 0
        %879 = vmatpush1.bf16.msra.mxu0 0
        %880 = vmatprep.subr.bf16.mxu0 0
        %881 = vmatpush1.bf16.msra.mxu0 0
        %882 = vmatprep.subr.bf16.mxu0 0
        %883 = vmatpush1.bf16.msra.mxu0 0
        %884 = vmatprep.subr.bf16.mxu0 0
        %885 = vmatpush1.bf16.msra.mxu0 0
        %886 = vmatprep.subr.bf16.mxu0 0
        %887 = vmatpush1.bf16.msra.mxu0 0
        %888 = vmatprep.subr.bf16.mxu0 0
        %889 = vmatpush1.bf16.msra.mxu0 0
        %890 = vmatprep.subr.bf16.mxu0 0
        %891 = vmatpush1.bf16.msra.mxu0 0
        %892 = vmatprep.subr.bf16.mxu0 0
        %893 = vmatpush1.bf16.msra.mxu0 0
        %894 = vmatprep.mubr.bf16.mxu0 0
        %895 = vmatmul.mubr.bf16.gmra.mrb[0].mxu0 %v860
        %v896 = vpop.f32.mrb[0].mxu0
        %v897 = vadd.f32 %v848, %v896
        %v898 = vpop.f32.mrb[0].mxu0
        %v899 = vpop.f32.mrb[0].mxu0
        %v900 = vpop.f32.mrb[0].mxu0
        %901 = vdwg.mxu0
        %v902 = vadd.f32 %v449, %v897
        %v903 = vsel %vm498, %v450, 0.0
        %904 = vadd.xlane.f32.xlu0 %v903
        %v905 = vpop.xlane.xlu0 %904
        %v906 = vsel %vm498, %v451, 0.0
        %907 = vadd.xlane.f32.xlu0 %v906
        %v908 = vpop.xlane.xlu0 %907
        %v909 = vmul.f32 %v905, %v502
        %v910 = vmul.f32 %v908, %v502
        %v911 = vsub.f32 %v450, %v909
        %v912 = vsub.f32 %v451, %v910
        %v913 = vmul.f32 %v911, %v911
        %v914 = vmul.f32 %v912, %v912
        %v915 = vsel %vm498, %v913, 0.0
        %916 = vadd.xlane.f32.xlu0 %v915
        %v917 = vpop.xlane.xlu0 %916
        %v918 = vsel %vm498, %v914, 0.0
        %919 = vadd.xlane.f32.xlu0 %v918
        %v920 = vpop.xlane.xlu0 %919
        %v921 = vmul.f32 %v917, %v502
        %v922 = vmul.f32 %v920, %v502
        %v923 = vadd.f32 %v921, 1e-05
        %v924 = vadd.f32 %v922, 1e-05
        %v925 = vrsqrt.pop %v923
        %v926 = vrsqrt.pop %v924
        %v927 = vmul.f32 %v911, %v925
        %v928 = vmul.f32 %v912, %v926
        %v929 = vlaneseq
        %v930 = vshrl.u32 %v929, 7
        %v931 = vsub.s32 2, %v930
        %v932 = vrot.slane %v452, %v931
        %v933 = vmul.f32 %v927, %v932
        %v934 = vmul.f32 %v928, %v932
        %v935 = vlaneseq
        %v936 = vshrl.u32 %v935, 7
        %v937 = vsub.s32 3, %v936
        %v938 = vrot.slane %v452, %v937
        %v939 = vadd.f32 %v933, %v938
        %v940 = vadd.f32 %v934, %v938
        %v941 = vpack.c.bf16 %v940, %v939
        %v942 = vunpack.c.h.b16 %v455
        %v943 = vunpack.c.h.b16 %v457
        %v944 = vunpack.c.h.b16 %v459
        %v945 = vunpack.c.h.b16 %v461
        %v946 = vpack.c.b16 %v943, %v942
        %v947 = vpack.c.b16 %v945, %v944
        %948 = vrot.lane.b32.xlu0 %v532, 32
        %v949 = vpop.permute.xlu0 %948
        %950 = vrot.lane.b32.xlu0 %v946, 32
        %v951 = vpop.permute.xlu0 %950
        %952 = vrot.lane.b32.xlu0 %v533, 32
        %v953 = vpop.permute.xlu0 %952
        %954 = vrot.lane.b32.xlu0 %v947, 32
        %v955 = vpop.permute.xlu0 %954
        %vm956 = vcmask 261120
        %v957 = vsel %vm956, %v949, %v951
        %v958 = vsel %vm956, %v953, %v955
        %v962 = vsel %vm498, %v941, 0
        %964 = vmatprep.subr.bf16.mxu0 0
        %965 = vmatpush1.bf16.msra.mxu0 %v957
        %966 = vmatprep.subr.bf16.mxu0 0
        %967 = vmatpush1.bf16.msra.mxu0 %v958
        %968 = vmatprep.subr.bf16.mxu0 0
        %969 = vmatpush1.bf16.msra.mxu0 0
        %970 = vmatprep.subr.bf16.mxu0 0
        %971 = vmatpush1.bf16.msra.mxu0 0
        %972 = vmatprep.subr.bf16.mxu0 0
        %973 = vmatpush1.bf16.msra.mxu0 0
        %974 = vmatprep.subr.bf16.mxu0 0
        %975 = vmatpush1.bf16.msra.mxu0 0
        %976 = vmatprep.subr.bf16.mxu0 0
        %977 = vmatpush1.bf16.msra.mxu0 0
        %978 = vmatprep.subr.bf16.mxu0 0
        %979 = vmatpush1.bf16.msra.mxu0 0
        %980 = vmatprep.subr.bf16.mxu0 0
        %981 = vmatpush1.bf16.msra.mxu0 0
        %982 = vmatprep.subr.bf16.mxu0 0
        %983 = vmatpush1.bf16.msra.mxu0 0
        %984 = vmatprep.subr.bf16.mxu0 0
        %985 = vmatpush1.bf16.msra.mxu0 0
        %986 = vmatprep.subr.bf16.mxu0 0
        %987 = vmatpush1.bf16.msra.mxu0 0
        %988 = vmatprep.subr.bf16.mxu0 0
        %989 = vmatpush1.bf16.msra.mxu0 0
        %990 = vmatprep.subr.bf16.mxu0 0
        %991 = vmatpush1.bf16.msra.mxu0 0
        %992 = vmatprep.subr.bf16.mxu0 0
        %993 = vmatpush1.bf16.msra.mxu0 0
        %994 = vmatprep.subr.bf16.mxu0 0
        %995 = vmatpush1.bf16.msra.mxu0 0
        %996 = vmatprep.mubr.bf16.mxu0 0
        %997 = vmatmul.mubr.bf16.gmra.mrb[0].mxu0 %v962
        %v998 = vpop.f32.mrb[0].mxu0
        %v999 = vadd.f32 0.0, %v998
        %v1000 = vpop.f32.mrb[0].mxu0
        %v1001 = vpop.f32.mrb[0].mxu0
        %v1002 = vadd.f32 0.0, %v1001
        %v1003 = vpop.f32.mrb[0].mxu0
        %1004 = vdwg.mxu0
        %v1005 = vpack.c.bf16 %v1002, %v999
        %1007 = vrot.lane.b32.xlu0 %v1005, 96
        %v1008 = vpop.permute.xlu0 %1007
        %1011 = vrot.lane.b32.xlu0 %v496, 120
        %v1012 = vpop.permute.xlu0 %1011
        %1013 = vrot.lane.b32.xlu0 %v497, 120
        %v1014 = vpop.permute.xlu0 %1013
        %v1018 = vsel %vm583, %v1005, 0
        %v1021 = vsel %vm583, %v1008, 0
        %1023 = vmatprep.subr.bf16.mxu0 0
        %1024 = vmatpush1.bf16.xpose.msra.mxu0 %v1021
        %1025 = vmatprep.subr.bf16.mxu0 0
        %1026 = vmatpush1.bf16.xpose.msra.mxu0 0
        %1027 = vmatprep.subr.bf16.mxu0 0
        %1028 = vmatpush1.bf16.xpose.msra.mxu0 0
        %1029 = vmatprep.subr.bf16.mxu0 0
        %1030 = vmatpush1.bf16.xpose.msra.mxu0 0
        %1031 = vmatprep.subr.bf16.mxu0 0
        %1032 = vmatpush1.bf16.xpose.msra.mxu0 0
        %1033 = vmatprep.subr.bf16.mxu0 0
        %1034 = vmatpush1.bf16.xpose.msra.mxu0 0
        %1035 = vmatprep.subr.bf16.mxu0 0
        %1036 = vmatpush1.bf16.xpose.msra.mxu0 0
        %1037 = vmatprep.subr.bf16.mxu0 0
        %1038 = vmatpush1.bf16.xpose.msra.mxu0 0
        %1039 = vmatprep.subr.bf16.mxu0 0
        %1040 = vmatpush1.bf16.xpose.msra.mxu0 0
        %1041 = vmatprep.subr.bf16.mxu0 0
        %1042 = vmatpush1.bf16.xpose.msra.mxu0 0
        %1043 = vmatprep.subr.bf16.mxu0 0
        %1044 = vmatpush1.bf16.xpose.msra.mxu0 0
        %1045 = vmatprep.subr.bf16.mxu0 0
        %1046 = vmatpush1.bf16.xpose.msra.mxu0 0
        %1047 = vmatprep.subr.bf16.mxu0 0
        %1048 = vmatpush1.bf16.xpose.msra.mxu0 0
        %1049 = vmatprep.subr.bf16.mxu0 0
        %1050 = vmatpush1.bf16.xpose.msra.mxu0 0
        %1051 = vmatprep.subr.bf16.mxu0 0
        %1052 = vmatpush1.bf16.xpose.msra.mxu0 0
        %1053 = vmatprep.subr.bf16.mxu0 0
        %1054 = vmatpush1.bf16.xpose.msra.mxu0 0
        %1055 = vmatprep.mubr.bf16.mxu0 0
        %1056 = vmatmul.mubr.bf16.gmra.mrb[0].mxu0 %v1018
        %v1057 = vpop.f32.mrb[0].mxu0
        %v1058 = vadd.f32 %v1012, %v1057
        %v1059 = vpop.f32.mrb[0].mxu0
        %v1060 = vpop.f32.mrb[0].mxu0
        %v1061 = vadd.f32 %v1014, %v1060
        %v1062 = vpop.f32.mrb[0].mxu0
        %1063 = vdwg.mxu0
        %v1064 = vsel %vm583, %v1058, -inf
        %1065 = vmax.xlane.f32.xlu0 %v1064
        %v1066 = vpop.xlane.xlu0 %1065
        %v1067 = vsel %vm583, %v1061, -inf
        %1068 = vmax.xlane.f32.xlu0 %v1067
        %v1069 = vpop.xlane.xlu0 %1068
        %v1070 = vsub.f32 %v1058, %v1066
        %v1071 = vsub.f32 %v1061, %v1069
        %v1072 = vmul.f32 %v1070, 1.442695
        %v1073 = vpow.pop %v1072
        %v1074 = vmul.f32 %v1071, 1.442695
        %v1075 = vpow.pop %v1074
        %v1076 = vsel %vm583, %v1073, 0.0
        %1077 = vadd.xlane.f32.xlu0 %v1076
        %v1078 = vpop.xlane.xlu0 %1077
        %v1079 = vsel %vm583, %v1075, 0.0
        %1080 = vadd.xlane.f32.xlu0 %v1079
        %v1081 = vpop.xlane.xlu0 %1080
        %v1082 = vrcp.pop %v1078
        %v1083 = vmul.f32 %v1073, %v1082
        %v1084 = vrcp.pop %v1081
        %v1085 = vmul.f32 %v1075, %v1084
        %v1086 = vpack.c.bf16 %v1085, %v1083
        %1087 = vrot.lane.b32.xlu0 %v1005, 64
        %v1088 = vpop.permute.xlu0 %1087
        %v1091 = vsel %vm583, %v1086, 0
        %1093 = vmatprep.subr.bf16.mxu0 0
        %1094 = vmatpush1.bf16.msra.mxu0 %v1088
        %1095 = vmatprep.subr.bf16.mxu0 0
        %1096 = vmatpush1.bf16.msra.mxu0 0
        %1097 = vmatprep.subr.bf16.mxu0 0
        %1098 = vmatpush1.bf16.msra.mxu0 0
        %1099 = vmatprep.subr.bf16.mxu0 0
        %1100 = vmatpush1.bf16.msra.mxu0 0
        %1101 = vmatprep.subr.bf16.mxu0 0
        %1102 = vmatpush1.bf16.msra.mxu0 0
        %1103 = vmatprep.subr.bf16.mxu0 0
        %1104 = vmatpush1.bf16.msra.mxu0 0
        %1105 = vmatprep.subr.bf16.mxu0 0
        %1106 = vmatpush1.bf16.msra.mxu0 0
        %1107 = vmatprep.subr.bf16.mxu0 0
        %1108 = vmatpush1.bf16.msra.mxu0 0
        %1109 = vmatprep.subr.bf16.mxu0 0
        %1110 = vmatpush1.bf16.msra.mxu0 0
        %1111 = vmatprep.subr.bf16.mxu0 0
        %1112 = vmatpush1.bf16.msra.mxu0 0
        %1113 = vmatprep.subr.bf16.mxu0 0
        %1114 = vmatpush1.bf16.msra.mxu0 0
        %1115 = vmatprep.subr.bf16.mxu0 0
        %1116 = vmatpush1.bf16.msra.mxu0 0
        %1117 = vmatprep.subr.bf16.mxu0 0
        %1118 = vmatpush1.bf16.msra.mxu0 0
        %1119 = vmatprep.subr.bf16.mxu0 0
        %1120 = vmatpush1.bf16.msra.mxu0 0
        %1121 = vmatprep.subr.bf16.mxu0 0
        %1122 = vmatpush1.bf16.msra.mxu0 0
        %1123 = vmatprep.subr.bf16.mxu0 0
        %1124 = vmatpush1.bf16.msra.mxu0 0
        %1125 = vmatprep.mubr.bf16.mxu0 0
        %1126 = vmatmul.mubr.bf16.gmra.mrb[0].mxu0 %v1091
        %v1127 = vpop.f32.mrb[0].mxu0
        %v1128 = vadd.f32 0.0, %v1127
        %v1129 = vpop.f32.mrb[0].mxu0
        %v1130 = vpop.f32.mrb[0].mxu0
        %v1131 = vadd.f32 0.0, %v1130
        %v1132 = vpop.f32.mrb[0].mxu0
        %1133 = vdwg.mxu0
        %v1134 = vpack.c.bf16 %v1131, %v1128
        %1135 = vrot.lane.b32.xlu0 %v1005, 112
        %v1136 = vpop.permute.xlu0 %1135
        %1137 = vrot.lane.b32.xlu0 %v1005, 80
        %v1138 = vpop.permute.xlu0 %1137
        %v1140 = vsel %vm583, %v1136, 0
        %v1143 = vsel %vm583, %v1138, 0
        %1145 = vmatprep.subr.bf16.mxu0 0
        %1146 = vmatpush1.bf16.xpose.msra.mxu0 %v1143
        %1147 = vmatprep.subr.bf16.mxu0 0
        %1148 = vmatpush1.bf16.xpose.msra.mxu0 0
        %1149 = vmatprep.subr.bf16.mxu0 0
        %1150 = vmatpush1.bf16.xpose.msra.mxu0 0
        %1151 = vmatprep.subr.bf16.mxu0 0
        %1152 = vmatpush1.bf16.xpose.msra.mxu0 0
        %1153 = vmatprep.subr.bf16.mxu0 0
        %1154 = vmatpush1.bf16.xpose.msra.mxu0 0
        %1155 = vmatprep.subr.bf16.mxu0 0
        %1156 = vmatpush1.bf16.xpose.msra.mxu0 0
        %1157 = vmatprep.subr.bf16.mxu0 0
        %1158 = vmatpush1.bf16.xpose.msra.mxu0 0
        %1159 = vmatprep.subr.bf16.mxu0 0
        %1160 = vmatpush1.bf16.xpose.msra.mxu0 0
        %1161 = vmatprep.subr.bf16.mxu0 0
        %1162 = vmatpush1.bf16.xpose.msra.mxu0 0
        %1163 = vmatprep.subr.bf16.mxu0 0
        %1164 = vmatpush1.bf16.xpose.msra.mxu0 0
        %1165 = vmatprep.subr.bf16.mxu0 0
        %1166 = vmatpush1.bf16.xpose.msra.mxu0 0
        %1167 = vmatprep.subr.bf16.mxu0 0
        %1168 = vmatpush1.bf16.xpose.msra.mxu0 0
        %1169 = vmatprep.subr.bf16.mxu0 0
        %1170 = vmatpush1.bf16.xpose.msra.mxu0 0
        %1171 = vmatprep.subr.bf16.mxu0 0
        %1172 = vmatpush1.bf16.xpose.msra.mxu0 0
        %1173 = vmatprep.subr.bf16.mxu0 0
        %1174 = vmatpush1.bf16.xpose.msra.mxu0 0
        %1175 = vmatprep.subr.bf16.mxu0 0
        %1176 = vmatpush1.bf16.xpose.msra.mxu0 0
        %1177 = vmatprep.mubr.bf16.mxu0 0
        %1178 = vmatmul.mubr.bf16.gmra.mrb[0].mxu0 %v1140
        %v1179 = vpop.f32.mrb[0].mxu0
        %v1180 = vadd.f32 %v1012, %v1179
        %v1181 = vpop.f32.mrb[0].mxu0
        %v1182 = vpop.f32.mrb[0].mxu0
        %v1183 = vadd.f32 %v1014, %v1182
        %v1184 = vpop.f32.mrb[0].mxu0
        %1185 = vdwg.mxu0
        %v1186 = vsel %vm583, %v1180, -inf
        %1187 = vmax.xlane.f32.xlu0 %v1186
        %v1188 = vpop.xlane.xlu0 %1187
        %v1189 = vsel %vm583, %v1183, -inf
        %1190 = vmax.xlane.f32.xlu0 %v1189
        %v1191 = vpop.xlane.xlu0 %1190
        %v1192 = vsub.f32 %v1180, %v1188
        %v1193 = vsub.f32 %v1183, %v1191
        %v1194 = vmul.f32 %v1192, 1.442695
        %v1195 = vpow.pop %v1194
        %v1196 = vmul.f32 %v1193, 1.442695
        %v1197 = vpow.pop %v1196
        %v1198 = vsel %vm583, %v1195, 0.0
        %1199 = vadd.xlane.f32.xlu0 %v1198
        %v1200 = vpop.xlane.xlu0 %1199
        %v1201 = vsel %vm583, %v1197, 0.0
        %1202 = vadd.xlane.f32.xlu0 %v1201
        %v1203 = vpop.xlane.xlu0 %1202
        %v1204 = vrcp.pop %v1200
        %v1205 = vmul.f32 %v1195, %v1204
        %v1206 = vrcp.pop %v1203
        %v1207 = vmul.f32 %v1197, %v1206
        %v1208 = vpack.c.bf16 %v1207, %v1205
        %1209 = vrot.lane.b32.xlu0 %v1005, 48
        %v1210 = vpop.permute.xlu0 %1209
        %v1213 = vsel %vm583, %v1208, 0
        %1215 = vmatprep.subr.bf16.mxu0 0
        %1216 = vmatpush1.bf16.msra.mxu0 %v1210
        %1217 = vmatprep.subr.bf16.mxu0 0
        %1218 = vmatpush1.bf16.msra.mxu0 0
        %1219 = vmatprep.subr.bf16.mxu0 0
        %1220 = vmatpush1.bf16.msra.mxu0 0
        %1221 = vmatprep.subr.bf16.mxu0 0
        %1222 = vmatpush1.bf16.msra.mxu0 0
        %1223 = vmatprep.subr.bf16.mxu0 0
        %1224 = vmatpush1.bf16.msra.mxu0 0
        %1225 = vmatprep.subr.bf16.mxu0 0
        %1226 = vmatpush1.bf16.msra.mxu0 0
        %1227 = vmatprep.subr.bf16.mxu0 0
        %1228 = vmatpush1.bf16.msra.mxu0 0
        %1229 = vmatprep.subr.bf16.mxu0 0
        %1230 = vmatpush1.bf16.msra.mxu0 0
        %1231 = vmatprep.subr.bf16.mxu0 0
        %1232 = vmatpush1.bf16.msra.mxu0 0
        %1233 = vmatprep.subr.bf16.mxu0 0
        %1234 = vmatpush1.bf16.msra.mxu0 0
        %1235 = vmatprep.subr.bf16.mxu0 0
        %1236 = vmatpush1.bf16.msra.mxu0 0
        %1237 = vmatprep.subr.bf16.mxu0 0
        %1238 = vmatpush1.bf16.msra.mxu0 0
        %1239 = vmatprep.subr.bf16.mxu0 0
        %1240 = vmatpush1.bf16.msra.mxu0 0
        %1241 = vmatprep.subr.bf16.mxu0 0
        %1242 = vmatpush1.bf16.msra.mxu0 0
        %1243 = vmatprep.subr.bf16.mxu0 0
        %1244 = vmatpush1.bf16.msra.mxu0 0
        %1245 = vmatprep.subr.bf16.mxu0 0
        %1246 = vmatpush1.bf16.msra.mxu0 0
        %1247 = vmatprep.mubr.bf16.mxu0 0
        %1248 = vmatmul.mubr.bf16.gmra.mrb[0].mxu0 %v1213
        %v1249 = vpop.f32.mrb[0].mxu0
        %v1250 = vadd.f32 0.0, %v1249
        %v1251 = vpop.f32.mrb[0].mxu0
        %v1252 = vpop.f32.mrb[0].mxu0
        %v1253 = vadd.f32 0.0, %v1252
        %v1254 = vpop.f32.mrb[0].mxu0
        %1255 = vdwg.mxu0
        %v1256 = vpack.c.bf16 %v1253, %v1250
        %v1259 = vunpack.c.l.b16 %v469
        %v1260 = vunpack.c.l.b16 %v470
        %v1261 = vpack.c.b16 %v1260, %v1259
        %v1264 = vsel %vm583, %v1256, 0
        %1266 = vmatprep.subr.bf16.mxu0 0
        %1267 = vmatpush1.bf16.msra.mxu0 %v1261
        %1268 = vmatprep.subr.bf16.mxu0 0
        %1269 = vmatpush1.bf16.msra.mxu0 0
        %1270 = vmatprep.subr.bf16.mxu0 0
        %1271 = vmatpush1.bf16.msra.mxu0 0
        %1272 = vmatprep.subr.bf16.mxu0 0
        %1273 = vmatpush1.bf16.msra.mxu0 0
        %1274 = vmatprep.subr.bf16.mxu0 0
        %1275 = vmatpush1.bf16.msra.mxu0 0
        %1276 = vmatprep.subr.bf16.mxu0 0
        %1277 = vmatpush1.bf16.msra.mxu0 0
        %1278 = vmatprep.subr.bf16.mxu0 0
        %1279 = vmatpush1.bf16.msra.mxu0 0
        %1280 = vmatprep.subr.bf16.mxu0 0
        %1281 = vmatpush1.bf16.msra.mxu0 0
        %1282 = vmatprep.subr.bf16.mxu0 0
        %1283 = vmatpush1.bf16.msra.mxu0 0
        %1284 = vmatprep.subr.bf16.mxu0 0
        %1285 = vmatpush1.bf16.msra.mxu0 0
        %1286 = vmatprep.subr.bf16.mxu0 0
        %1287 = vmatpush1.bf16.msra.mxu0 0
        %1288 = vmatprep.subr.bf16.mxu0 0
        %1289 = vmatpush1.bf16.msra.mxu0 0
        %1290 = vmatprep.subr.bf16.mxu0 0
        %1291 = vmatpush1.bf16.msra.mxu0 0
        %1292 = vmatprep.subr.bf16.mxu0 0
        %1293 = vmatpush1.bf16.msra.mxu0 0
        %1294 = vmatprep.subr.bf16.mxu0 0
        %1295 = vmatpush1.bf16.msra.mxu0 0
        %1296 = vmatprep.subr.bf16.mxu0 0
        %1297 = vmatpush1.bf16.msra.mxu0 0
        %1298 = vmatprep.mubr.bf16.mxu0 0
        %1299 = vmatmul.mubr.bf16.gmra.mrb[0].mxu0 %v1264
        %v1300 = vpop.f32.mrb[0].mxu0
        %v1301 = vadd.f32 0.0, %v1300
        %v1302 = vpop.f32.mrb[0].mxu0
        %v1303 = vpop.f32.mrb[0].mxu0
        %v1304 = vadd.f32 0.0, %v1303
        %v1305 = vpop.f32.mrb[0].mxu0
        %1306 = vdwg.mxu0
        %v1309 = vunpack.c.l.b16 %v467
        %v1310 = vunpack.c.l.b16 %v468
        %v1311 = vpack.c.b16 %v1310, %v1309
        %v1314 = vsel %vm583, %v1134, 0
        %1316 = vmatprep.subr.bf16.mxu0 0
        %1317 = vmatpush1.bf16.msra.mxu0 %v1311
        %1318 = vmatprep.subr.bf16.mxu0 0
        %1319 = vmatpush1.bf16.msra.mxu0 0
        %1320 = vmatprep.subr.bf16.mxu0 0
        %1321 = vmatpush1.bf16.msra.mxu0 0
        %1322 = vmatprep.subr.bf16.mxu0 0
        %1323 = vmatpush1.bf16.msra.mxu0 0
        %1324 = vmatprep.subr.bf16.mxu0 0
        %1325 = vmatpush1.bf16.msra.mxu0 0
        %1326 = vmatprep.subr.bf16.mxu0 0
        %1327 = vmatpush1.bf16.msra.mxu0 0
        %1328 = vmatprep.subr.bf16.mxu0 0
        %1329 = vmatpush1.bf16.msra.mxu0 0
        %1330 = vmatprep.subr.bf16.mxu0 0
        %1331 = vmatpush1.bf16.msra.mxu0 0
        %1332 = vmatprep.subr.bf16.mxu0 0
        %1333 = vmatpush1.bf16.msra.mxu0 0
        %1334 = vmatprep.subr.bf16.mxu0 0
        %1335 = vmatpush1.bf16.msra.mxu0 0
        %1336 = vmatprep.subr.bf16.mxu0 0
        %1337 = vmatpush1.bf16.msra.mxu0 0
        %1338 = vmatprep.subr.bf16.mxu0 0
        %1339 = vmatpush1.bf16.msra.mxu0 0
        %1340 = vmatprep.subr.bf16.mxu0 0
        %1341 = vmatpush1.bf16.msra.mxu0 0
        %1342 = vmatprep.subr.bf16.mxu0 0
        %1343 = vmatpush1.bf16.msra.mxu0 0
        %1344 = vmatprep.subr.bf16.mxu0 0
        %1345 = vmatpush1.bf16.msra.mxu0 0
        %1346 = vmatprep.subr.bf16.mxu0 0
        %1347 = vmatpush1.bf16.msra.mxu0 0
        %1348 = vmatprep.mubr.bf16.mxu0 0
        %1349 = vmatmul.mubr.bf16.gmra.mrb[0].mxu0 %v1314
        %v1350 = vpop.f32.mrb[0].mxu0
        %v1351 = vadd.f32 %v1301, %v1350
        %v1352 = vpop.f32.mrb[0].mxu0
        %v1353 = vpop.f32.mrb[0].mxu0
        %v1354 = vadd.f32 %v1304, %v1353
        %v1355 = vpop.f32.mrb[0].mxu0
        %1356 = vdwg.mxu0
        %v1357 = vadd.f32 %v450, %v1351
        %v1358 = vadd.f32 %v451, %v1354
        %v1359 = vsel %vm498, %v902, 0.0
        %1360 = vadd.xlane.f32.xlu0 %v1359
        %v1361 = vpop.xlane.xlu0 %1360
        %v1362 = vmul.f32 %v1361, %v502
        %v1363 = vsub.f32 %v902, %v1362
        %v1364 = vmul.f32 %v1363, %v1363
        %v1365 = vsel %vm498, %v1364, 0.0
        %1366 = vadd.xlane.f32.xlu0 %v1365
        %v1367 = vpop.xlane.xlu0 %1366
        %v1368 = vmul.f32 %v1367, %v502
        %v1369 = vadd.f32 %v1368, 1e-05
        %v1370 = vrsqrt.pop %v1369
        %v1371 = vmul.f32 %v1363, %v1370
        %v1372 = vlaneseq
        %v1373 = vshrl.u32 %v1372, 7
        %v1374 = vsub.s32 4, %v1373
        %v1375 = vrot.slane %v452, %v1374
        %v1376 = vmul.f32 %v1371, %v1375
        %v1377 = vlaneseq
        %v1378 = vshrl.u32 %v1377, 7
        %v1379 = vsub.s32 5, %v1378
        %v1380 = vrot.slane %v452, %v1379
        %v1381 = vadd.f32 %v1376, %v1380
        %v1382 = vsel %vm498, %v1357, 0.0
        %1383 = vadd.xlane.f32.xlu0 %v1382
        %v1384 = vpop.xlane.xlu0 %1383
        %v1385 = vsel %vm498, %v1358, 0.0
        %1386 = vadd.xlane.f32.xlu0 %v1385
        %v1387 = vpop.xlane.xlu0 %1386
        %v1388 = vmul.f32 %v1384, %v502
        %v1389 = vmul.f32 %v1387, %v502
        %v1390 = vsub.f32 %v1357, %v1388
        %v1391 = vsub.f32 %v1358, %v1389
        %v1392 = vmul.f32 %v1390, %v1390
        %v1393 = vmul.f32 %v1391, %v1391
        %v1394 = vsel %vm498, %v1392, 0.0
        %1395 = vadd.xlane.f32.xlu0 %v1394
        %v1396 = vpop.xlane.xlu0 %1395
        %v1397 = vsel %vm498, %v1393, 0.0
        %1398 = vadd.xlane.f32.xlu0 %v1397
        %v1399 = vpop.xlane.xlu0 %1398
        %v1400 = vmul.f32 %v1396, %v502
        %v1401 = vmul.f32 %v1399, %v502
        %v1402 = vadd.f32 %v1400, 1e-05
        %v1403 = vadd.f32 %v1401, 1e-05
        %v1404 = vrsqrt.pop %v1402
        %v1405 = vrsqrt.pop %v1403
        %v1406 = vmul.f32 %v1390, %v1404
        %v1407 = vmul.f32 %v1391, %v1405
        %v1408 = vlaneseq
        %v1409 = vshrl.u32 %v1408, 7
        %v1410 = vsub.s32 6, %v1409
        %v1411 = vrot.slane %v452, %v1410
        %v1412 = vmul.f32 %v1406, %v1411
        %v1413 = vmul.f32 %v1407, %v1411
        %v1414 = vlaneseq
        %v1415 = vshrl.u32 %v1414, 7
        %v1416 = vsub.s32 7, %v1415
        %v1417 = vrot.slane %v452, %v1416
        %v1418 = vadd.f32 %v1412, %v1417
        %v1419 = vadd.f32 %v1413, %v1417
        %v1420 = vpack.c.bf16 %v1381, %v1381
        %1421 = vrot.lane.b32.xlu0 %v946, 64
        %v1422 = vpop.permute.xlu0 %1421
        %1423 = vrot.lane.b32.xlu0 %v947, 64
        %v1424 = vpop.permute.xlu0 %1423
        %v1428 = vsel %vm498, %v1420, 0
        %1430 = vmatprep.subr.bf16.mxu0 0
        %1431 = vmatpush1.bf16.msra.mxu0 %v1422
        %1432 = vmatprep.subr.bf16.mxu0 0
        %1433 = vmatpush1.bf16.msra.mxu0 %v1424
        %1434 = vmatprep.subr.bf16.mxu0 0
        %1435 = vmatpush1.bf16.msra.mxu0 0
        %1436 = vmatprep.subr.bf16.mxu0 0
        %1437 = vmatpush1.bf16.msra.mxu0 0
        %1438 = vmatprep.subr.bf16.mxu0 0
        %1439 = vmatpush1.bf16.msra.mxu0 0
        %1440 = vmatprep.subr.bf16.mxu0 0
        %1441 = vmatpush1.bf16.msra.mxu0 0
        %1442 = vmatprep.subr.bf16.mxu0 0
        %1443 = vmatpush1.bf16.msra.mxu0 0
        %1444 = vmatprep.subr.bf16.mxu0 0
        %1445 = vmatpush1.bf16.msra.mxu0 0
        %1446 = vmatprep.subr.bf16.mxu0 0
        %1447 = vmatpush1.bf16.msra.mxu0 0
        %1448 = vmatprep.subr.bf16.mxu0 0
        %1449 = vmatpush1.bf16.msra.mxu0 0
        %1450 = vmatprep.subr.bf16.mxu0 0
        %1451 = vmatpush1.bf16.msra.mxu0 0
        %1452 = vmatprep.subr.bf16.mxu0 0
        %1453 = vmatpush1.bf16.msra.mxu0 0
        %1454 = vmatprep.subr.bf16.mxu0 0
        %1455 = vmatpush1.bf16.msra.mxu0 0
        %1456 = vmatprep.subr.bf16.mxu0 0
        %1457 = vmatpush1.bf16.msra.mxu0 0
        %1458 = vmatprep.subr.bf16.mxu0 0
        %1459 = vmatpush1.bf16.msra.mxu0 0
        %1460 = vmatprep.subr.bf16.mxu0 0
        %1461 = vmatpush1.bf16.msra.mxu0 0
        %1462 = vmatprep.mubr.bf16.mxu0 0
        %1463 = vmatmul.mubr.bf16.gmra.mrb[0].mxu0 %v1428
        %v1464 = vpop.f32.mrb[0].mxu0
        %v1465 = vadd.f32 0.0, %v1464
        %v1466 = vpop.f32.mrb[0].mxu0
        %v1467 = vpop.f32.mrb[0].mxu0
        %v1468 = vpop.f32.mrb[0].mxu0
        %1469 = vdwg.mxu0
        %v1470 = vpack.c.bf16 %v1419, %v1418
        %v1475 = vunpack.c.l.b16 %v456
        %v1476 = vunpack.c.l.b16 %v458
        %v1477 = vunpack.c.l.b16 %v460
        %v1478 = vunpack.c.l.b16 %v462
        %v1479 = vpack.c.b16 %v1476, %v1475
        %v1480 = vpack.c.b16 %v1478, %v1477
        %1481 = vrot.lane.b32.xlu0 %v1479, 32
        %v1482 = vpop.permute.xlu0 %1481
        %1483 = vrot.lane.b32.xlu0 %v1480, 32
        %v1484 = vpop.permute.xlu0 %1483
        %v1485 = vsel %vm956, %v951, %v1482
        %v1486 = vsel %vm956, %v955, %v1484
        %v1490 = vsel %vm498, %v1470, 0
        %1492 = vmatprep.subr.bf16.mxu0 0
        %1493 = vmatpush1.bf16.msra.mxu0 %v1485
        %1494 = vmatprep.subr.bf16.mxu0 0
        %1495 = vmatpush1.bf16.msra.mxu0 %v1486
        %1496 = vmatprep.subr.bf16.mxu0 0
        %1497 = vmatpush1.bf16.msra.mxu0 0
        %1498 = vmatprep.subr.bf16.mxu0 0
        %1499 = vmatpush1.bf16.msra.mxu0 0
        %1500 = vmatprep.subr.bf16.mxu0 0
        %1501 = vmatpush1.bf16.msra.mxu0 0
        %1502 = vmatprep.subr.bf16.mxu0 0
        %1503 = vmatpush1.bf16.msra.mxu0 0
        %1504 = vmatprep.subr.bf16.mxu0 0
        %1505 = vmatpush1.bf16.msra.mxu0 0
        %1506 = vmatprep.subr.bf16.mxu0 0
        %1507 = vmatpush1.bf16.msra.mxu0 0
        %1508 = vmatprep.subr.bf16.mxu0 0
        %1509 = vmatpush1.bf16.msra.mxu0 0
        %1510 = vmatprep.subr.bf16.mxu0 0
        %1511 = vmatpush1.bf16.msra.mxu0 0
        %1512 = vmatprep.subr.bf16.mxu0 0
        %1513 = vmatpush1.bf16.msra.mxu0 0
        %1514 = vmatprep.subr.bf16.mxu0 0
        %1515 = vmatpush1.bf16.msra.mxu0 0
        %1516 = vmatprep.subr.bf16.mxu0 0
        %1517 = vmatpush1.bf16.msra.mxu0 0
        %1518 = vmatprep.subr.bf16.mxu0 0
        %1519 = vmatpush1.bf16.msra.mxu0 0
        %1520 = vmatprep.subr.bf16.mxu0 0
        %1521 = vmatpush1.bf16.msra.mxu0 0
        %1522 = vmatprep.subr.bf16.mxu0 0
        %1523 = vmatpush1.bf16.msra.mxu0 0
        %1524 = vmatprep.mubr.bf16.mxu0 0
        %1525 = vmatmul.mubr.bf16.gmra.mrb[0].mxu0 %v1490
        %v1526 = vpop.f32.mrb[0].mxu0
        %v1527 = vadd.f32 0.0, %v1526
        %v1528 = vpop.f32.mrb[0].mxu0
        %v1529 = vpop.f32.mrb[0].mxu0
        %v1530 = vadd.f32 0.0, %v1529
        %v1531 = vpop.f32.mrb[0].mxu0
        %1532 = vdwg.mxu0
        %v1533 = vpack.c.bf16 %v1465, %v1465
        %v1534 = vpack.c.bf16 %v1530, %v1527
        %1536 = vrot.lane.b32.xlu0 %v495, 120
        %v1537 = vpop.permute.xlu0 %1536
        %v1540 = vsel %vm583, %v1533, 0
        %v1543 = vsel %vm583, %v1534, 0
        %1545 = vmatprep.subr.bf16.mxu0 0
        %1546 = vmatpush1.bf16.xpose.msra.mxu0 %v1543
        %1547 = vmatprep.subr.bf16.mxu0 0
        %1548 = vmatpush1.bf16.xpose.msra.mxu0 0
        %1549 = vmatprep.subr.bf16.mxu0 0
        %1550 = vmatpush1.bf16.xpose.msra.mxu0 0
        %1551 = vmatprep.subr.bf16.mxu0 0
        %1552 = vmatpush1.bf16.xpose.msra.mxu0 0
        %1553 = vmatprep.subr.bf16.mxu0 0
        %1554 = vmatpush1.bf16.xpose.msra.mxu0 0
        %1555 = vmatprep.subr.bf16.mxu0 0
        %1556 = vmatpush1.bf16.xpose.msra.mxu0 0
        %1557 = vmatprep.subr.bf16.mxu0 0
        %1558 = vmatpush1.bf16.xpose.msra.mxu0 0
        %1559 = vmatprep.subr.bf16.mxu0 0
        %1560 = vmatpush1.bf16.xpose.msra.mxu0 0
        %1561 = vmatprep.subr.bf16.mxu0 0
        %1562 = vmatpush1.bf16.xpose.msra.mxu0 0
        %1563 = vmatprep.subr.bf16.mxu0 0
        %1564 = vmatpush1.bf16.xpose.msra.mxu0 0
        %1565 = vmatprep.subr.bf16.mxu0 0
        %1566 = vmatpush1.bf16.xpose.msra.mxu0 0
        %1567 = vmatprep.subr.bf16.mxu0 0
        %1568 = vmatpush1.bf16.xpose.msra.mxu0 0
        %1569 = vmatprep.subr.bf16.mxu0 0
        %1570 = vmatpush1.bf16.xpose.msra.mxu0 0
        %1571 = vmatprep.subr.bf16.mxu0 0
        %1572 = vmatpush1.bf16.xpose.msra.mxu0 0
        %1573 = vmatprep.subr.bf16.mxu0 0
        %1574 = vmatpush1.bf16.xpose.msra.mxu0 0
        %1575 = vmatprep.subr.bf16.mxu0 0
        %1576 = vmatpush1.bf16.xpose.msra.mxu0 0
        %1577 = vmatprep.mubr.bf16.mxu0 0
        %1578 = vmatmul.mubr.bf16.gmra.mrb[0].mxu0 %v1540
        %v1579 = vpop.f32.mrb[0].mxu0
        %v1580 = vadd.f32 %v1537, %v1579
        %v1581 = vpop.f32.mrb[0].mxu0
        %v1582 = vpop.f32.mrb[0].mxu0
        %v1583 = vpop.f32.mrb[0].mxu0
        %1584 = vdwg.mxu0
        %v1585 = vsel %vm583, %v1580, -inf
        %1586 = vmax.xlane.f32.xlu0 %v1585
        %v1587 = vpop.xlane.xlu0 %1586
        %v1588 = vsub.f32 %v1580, %v1587
        %v1589 = vmul.f32 %v1588, 1.442695
        %v1590 = vpow.pop %v1589
        %v1591 = vsel %vm583, %v1590, 0.0
        %1592 = vadd.xlane.f32.xlu0 %v1591
        %v1593 = vpop.xlane.xlu0 %1592
        %v1594 = vrcp.pop %v1593
        %v1595 = vmul.f32 %v1590, %v1594
        %v1596 = vpack.c.bf16 %v1595, %v1595
        %1598 = vrot.lane.b32.xlu0 %v1534, 96
        %v1599 = vpop.permute.xlu0 %1598
        %v1602 = vsel %vm583, %v1596, 0
        %1604 = vmatprep.subr.bf16.mxu0 0
        %1605 = vmatpush1.bf16.msra.mxu0 %v1599
        %1606 = vmatprep.subr.bf16.mxu0 0
        %1607 = vmatpush1.bf16.msra.mxu0 0
        %1608 = vmatprep.subr.bf16.mxu0 0
        %1609 = vmatpush1.bf16.msra.mxu0 0
        %1610 = vmatprep.subr.bf16.mxu0 0
        %1611 = vmatpush1.bf16.msra.mxu0 0
        %1612 = vmatprep.subr.bf16.mxu0 0
        %1613 = vmatpush1.bf16.msra.mxu0 0
        %1614 = vmatprep.subr.bf16.mxu0 0
        %1615 = vmatpush1.bf16.msra.mxu0 0
        %1616 = vmatprep.subr.bf16.mxu0 0
        %1617 = vmatpush1.bf16.msra.mxu0 0
        %1618 = vmatprep.subr.bf16.mxu0 0
        %1619 = vmatpush1.bf16.msra.mxu0 0
        %1620 = vmatprep.subr.bf16.mxu0 0
        %1621 = vmatpush1.bf16.msra.mxu0 0
        %1622 = vmatprep.subr.bf16.mxu0 0
        %1623 = vmatpush1.bf16.msra.mxu0 0
        %1624 = vmatprep.subr.bf16.mxu0 0
        %1625 = vmatpush1.bf16.msra.mxu0 0
        %1626 = vmatprep.subr.bf16.mxu0 0
        %1627 = vmatpush1.bf16.msra.mxu0 0
        %1628 = vmatprep.subr.bf16.mxu0 0
        %1629 = vmatpush1.bf16.msra.mxu0 0
        %1630 = vmatprep.subr.bf16.mxu0 0
        %1631 = vmatpush1.bf16.msra.mxu0 0
        %1632 = vmatprep.subr.bf16.mxu0 0
        %1633 = vmatpush1.bf16.msra.mxu0 0
        %1634 = vmatprep.subr.bf16.mxu0 0
        %1635 = vmatpush1.bf16.msra.mxu0 0
        %1636 = vmatprep.mubr.bf16.mxu0 0
        %1637 = vmatmul.mubr.bf16.gmra.mrb[0].mxu0 %v1602
        %v1638 = vpop.f32.mrb[0].mxu0
        %v1639 = vadd.f32 0.0, %v1638
        %v1640 = vpop.f32.mrb[0].mxu0
        %v1641 = vpop.f32.mrb[0].mxu0
        %v1642 = vpop.f32.mrb[0].mxu0
        %1643 = vdwg.mxu0
        %v1644 = vpack.c.bf16 %v1639, %v1639
        %1646 = vrot.lane.b32.xlu0 %v1533, 112
        %v1647 = vpop.permute.xlu0 %1646
        %1648 = vrot.lane.b32.xlu0 %v1534, 112
        %v1649 = vpop.permute.xlu0 %1648
        %v1651 = vsel %vm583, %v1647, 0
        %v1654 = vsel %vm583, %v1649, 0
        %1656 = vmatprep.subr.bf16.mxu0 0
        %1657 = vmatpush1.bf16.xpose.msra.mxu0 %v1654
        %1658 = vmatprep.subr.bf16.mxu0 0
        %1659 = vmatpush1.bf16.xpose.msra.mxu0 0
        %1660 = vmatprep.subr.bf16.mxu0 0
        %1661 = vmatpush1.bf16.xpose.msra.mxu0 0
        %1662 = vmatprep.subr.bf16.mxu0 0
        %1663 = vmatpush1.bf16.xpose.msra.mxu0 0
        %1664 = vmatprep.subr.bf16.mxu0 0
        %1665 = vmatpush1.bf16.xpose.msra.mxu0 0
        %1666 = vmatprep.subr.bf16.mxu0 0
        %1667 = vmatpush1.bf16.xpose.msra.mxu0 0
        %1668 = vmatprep.subr.bf16.mxu0 0
        %1669 = vmatpush1.bf16.xpose.msra.mxu0 0
        %1670 = vmatprep.subr.bf16.mxu0 0
        %1671 = vmatpush1.bf16.xpose.msra.mxu0 0
        %1672 = vmatprep.subr.bf16.mxu0 0
        %1673 = vmatpush1.bf16.xpose.msra.mxu0 0
        %1674 = vmatprep.subr.bf16.mxu0 0
        %1675 = vmatpush1.bf16.xpose.msra.mxu0 0
        %1676 = vmatprep.subr.bf16.mxu0 0
        %1677 = vmatpush1.bf16.xpose.msra.mxu0 0
        %1678 = vmatprep.subr.bf16.mxu0 0
        %1679 = vmatpush1.bf16.xpose.msra.mxu0 0
        %1680 = vmatprep.subr.bf16.mxu0 0
        %1681 = vmatpush1.bf16.xpose.msra.mxu0 0
        %1682 = vmatprep.subr.bf16.mxu0 0
        %1683 = vmatpush1.bf16.xpose.msra.mxu0 0
        %1684 = vmatprep.subr.bf16.mxu0 0
        %1685 = vmatpush1.bf16.xpose.msra.mxu0 0
        %1686 = vmatprep.subr.bf16.mxu0 0
        %1687 = vmatpush1.bf16.xpose.msra.mxu0 0
        %1688 = vmatprep.mubr.bf16.mxu0 0
        %1689 = vmatmul.mubr.bf16.gmra.mrb[0].mxu0 %v1651
        %v1690 = vpop.f32.mrb[0].mxu0
        %v1691 = vadd.f32 %v1537, %v1690
        %v1692 = vpop.f32.mrb[0].mxu0
        %v1693 = vpop.f32.mrb[0].mxu0
        %v1694 = vpop.f32.mrb[0].mxu0
        %1695 = vdwg.mxu0
        %v1696 = vsel %vm583, %v1691, -inf
        %1697 = vmax.xlane.f32.xlu0 %v1696
        %v1698 = vpop.xlane.xlu0 %1697
        %v1699 = vsub.f32 %v1691, %v1698
        %v1700 = vmul.f32 %v1699, 1.442695
        %v1701 = vpow.pop %v1700
        %v1702 = vsel %vm583, %v1701, 0.0
        %1703 = vadd.xlane.f32.xlu0 %v1702
        %v1704 = vpop.xlane.xlu0 %1703
        %v1705 = vrcp.pop %v1704
        %v1706 = vmul.f32 %v1701, %v1705
        %v1707 = vpack.c.bf16 %v1706, %v1706
        %1708 = vrot.lane.b32.xlu0 %v1534, 80
        %v1709 = vpop.permute.xlu0 %1708
        %v1712 = vsel %vm583, %v1707, 0
        %1714 = vmatprep.subr.bf16.mxu0 0
        %1715 = vmatpush1.bf16.msra.mxu0 %v1709
        %1716 = vmatprep.subr.bf16.mxu0 0
        %1717 = vmatpush1.bf16.msra.mxu0 0
        %1718 = vmatprep.subr.bf16.mxu0 0
        %1719 = vmatpush1.bf16.msra.mxu0 0
        %1720 = vmatprep.subr.bf16.mxu0 0
        %1721 = vmatpush1.bf16.msra.mxu0 0
        %1722 = vmatprep.subr.bf16.mxu0 0
        %1723 = vmatpush1.bf16.msra.mxu0 0
        %1724 = vmatprep.subr.bf16.mxu0 0
        %1725 = vmatpush1.bf16.msra.mxu0 0
        %1726 = vmatprep.subr.bf16.mxu0 0
        %1727 = vmatpush1.bf16.msra.mxu0 0
        %1728 = vmatprep.subr.bf16.mxu0 0
        %1729 = vmatpush1.bf16.msra.mxu0 0
        %1730 = vmatprep.subr.bf16.mxu0 0
        %1731 = vmatpush1.bf16.msra.mxu0 0
        %1732 = vmatprep.subr.bf16.mxu0 0
        %1733 = vmatpush1.bf16.msra.mxu0 0
        %1734 = vmatprep.subr.bf16.mxu0 0
        %1735 = vmatpush1.bf16.msra.mxu0 0
        %1736 = vmatprep.subr.bf16.mxu0 0
        %1737 = vmatpush1.bf16.msra.mxu0 0
        %1738 = vmatprep.subr.bf16.mxu0 0
        %1739 = vmatpush1.bf16.msra.mxu0 0
        %1740 = vmatprep.subr.bf16.mxu0 0
        %1741 = vmatpush1.bf16.msra.mxu0 0
        %1742 = vmatprep.subr.bf16.mxu0 0
        %1743 = vmatpush1.bf16.msra.mxu0 0
        %1744 = vmatprep.subr.bf16.mxu0 0
        %1745 = vmatpush1.bf16.msra.mxu0 0
        %1746 = vmatprep.mubr.bf16.mxu0 0
        %1747 = vmatmul.mubr.bf16.gmra.mrb[0].mxu0 %v1712
        %v1748 = vpop.f32.mrb[0].mxu0
        %v1749 = vadd.f32 0.0, %v1748
        %v1750 = vpop.f32.mrb[0].mxu0
        %v1751 = vpop.f32.mrb[0].mxu0
        %v1752 = vpop.f32.mrb[0].mxu0
        %1753 = vdwg.mxu0
        %v1754 = vpack.c.bf16 %v1749, %v1749
        %v1757 = vunpack.c.l.b16 %v473
        %v1758 = vunpack.c.l.b16 %v474
        %v1759 = vpack.c.b16 %v1758, %v1757
        %v1762 = vsel %vm583, %v1754, 0
        %1764 = vmatprep.subr.bf16.mxu0 0
        %1765 = vmatpush1.bf16.msra.mxu0 %v1759
        %1766 = vmatprep.subr.bf16.mxu0 0
        %1767 = vmatpush1.bf16.msra.mxu0 0
        %1768 = vmatprep.subr.bf16.mxu0 0
        %1769 = vmatpush1.bf16.msra.mxu0 0
        %1770 = vmatprep.subr.bf16.mxu0 0
        %1771 = vmatpush1.bf16.msra.mxu0 0
        %1772 = vmatprep.subr.bf16.mxu0 0
        %1773 = vmatpush1.bf16.msra.mxu0 0
        %1774 = vmatprep.subr.bf16.mxu0 0
        %1775 = vmatpush1.bf16.msra.mxu0 0
        %1776 = vmatprep.subr.bf16.mxu0 0
        %1777 = vmatpush1.bf16.msra.mxu0 0
        %1778 = vmatprep.subr.bf16.mxu0 0
        %1779 = vmatpush1.bf16.msra.mxu0 0
        %1780 = vmatprep.subr.bf16.mxu0 0
        %1781 = vmatpush1.bf16.msra.mxu0 0
        %1782 = vmatprep.subr.bf16.mxu0 0
        %1783 = vmatpush1.bf16.msra.mxu0 0
        %1784 = vmatprep.subr.bf16.mxu0 0
        %1785 = vmatpush1.bf16.msra.mxu0 0
        %1786 = vmatprep.subr.bf16.mxu0 0
        %1787 = vmatpush1.bf16.msra.mxu0 0
        %1788 = vmatprep.subr.bf16.mxu0 0
        %1789 = vmatpush1.bf16.msra.mxu0 0
        %1790 = vmatprep.subr.bf16.mxu0 0
        %1791 = vmatpush1.bf16.msra.mxu0 0
        %1792 = vmatprep.subr.bf16.mxu0 0
        %1793 = vmatpush1.bf16.msra.mxu0 0
        %1794 = vmatprep.subr.bf16.mxu0 0
        %1795 = vmatpush1.bf16.msra.mxu0 0
        %1796 = vmatprep.mubr.bf16.mxu0 0
        %1797 = vmatmul.mubr.bf16.gmra.mrb[0].mxu0 %v1762
        %v1798 = vpop.f32.mrb[0].mxu0
        %v1799 = vadd.f32 0.0, %v1798
        %v1800 = vpop.f32.mrb[0].mxu0
        %v1801 = vpop.f32.mrb[0].mxu0
        %v1802 = vpop.f32.mrb[0].mxu0
        %1803 = vdwg.mxu0
        %v1806 = vunpack.c.l.b16 %v471
        %v1807 = vunpack.c.l.b16 %v472
        %v1808 = vpack.c.b16 %v1807, %v1806
        %v1811 = vsel %vm583, %v1644, 0
        %1813 = vmatprep.subr.bf16.mxu0 0
        %1814 = vmatpush1.bf16.msra.mxu0 %v1808
        %1815 = vmatprep.subr.bf16.mxu0 0
        %1816 = vmatpush1.bf16.msra.mxu0 0
        %1817 = vmatprep.subr.bf16.mxu0 0
        %1818 = vmatpush1.bf16.msra.mxu0 0
        %1819 = vmatprep.subr.bf16.mxu0 0
        %1820 = vmatpush1.bf16.msra.mxu0 0
        %1821 = vmatprep.subr.bf16.mxu0 0
        %1822 = vmatpush1.bf16.msra.mxu0 0
        %1823 = vmatprep.subr.bf16.mxu0 0
        %1824 = vmatpush1.bf16.msra.mxu0 0
        %1825 = vmatprep.subr.bf16.mxu0 0
        %1826 = vmatpush1.bf16.msra.mxu0 0
        %1827 = vmatprep.subr.bf16.mxu0 0
        %1828 = vmatpush1.bf16.msra.mxu0 0
        %1829 = vmatprep.subr.bf16.mxu0 0
        %1830 = vmatpush1.bf16.msra.mxu0 0
        %1831 = vmatprep.subr.bf16.mxu0 0
        %1832 = vmatpush1.bf16.msra.mxu0 0
        %1833 = vmatprep.subr.bf16.mxu0 0
        %1834 = vmatpush1.bf16.msra.mxu0 0
        %1835 = vmatprep.subr.bf16.mxu0 0
        %1836 = vmatpush1.bf16.msra.mxu0 0
        %1837 = vmatprep.subr.bf16.mxu0 0
        %1838 = vmatpush1.bf16.msra.mxu0 0
        %1839 = vmatprep.subr.bf16.mxu0 0
        %1840 = vmatpush1.bf16.msra.mxu0 0
        %1841 = vmatprep.subr.bf16.mxu0 0
        %1842 = vmatpush1.bf16.msra.mxu0 0
        %1843 = vmatprep.subr.bf16.mxu0 0
        %1844 = vmatpush1.bf16.msra.mxu0 0
        %1845 = vmatprep.mubr.bf16.mxu0 0
        %1846 = vmatmul.mubr.bf16.gmra.mrb[0].mxu0 %v1811
        %v1847 = vpop.f32.mrb[0].mxu0
        %v1848 = vadd.f32 %v1799, %v1847
        %v1849 = vpop.f32.mrb[0].mxu0
        %v1850 = vpop.f32.mrb[0].mxu0
        %v1851 = vpop.f32.mrb[0].mxu0
        %1852 = vdwg.mxu0
        %v1853 = vadd.f32 %v902, %v1848
        %v1854 = vlaneseq
        %v1855 = vshrl.u32 %v1854, 7
        %v1856 = vsub.s32 0, %v1855
        %v1857 = vrot.slane %v453, %v1856
        %v1858 = vmul.f32 %v1406, %v1857
        %v1859 = vmul.f32 %v1407, %v1857
        %v1860 = vlaneseq
        %v1861 = vshrl.u32 %v1860, 7
        %v1862 = vsub.s32 1, %v1861
        %v1863 = vrot.slane %v453, %v1862
        %v1864 = vadd.f32 %v1858, %v1863
        %v1865 = vadd.f32 %v1859, %v1863
        %v1866 = vsel %vm498, %v1853, 0.0
        %1867 = vadd.xlane.f32.xlu0 %v1866
        %v1868 = vpop.xlane.xlu0 %1867
        %v1869 = vmul.f32 %v1868, %v502
        %v1870 = vsub.f32 %v1853, %v1869
        %v1871 = vmul.f32 %v1870, %v1870
        %v1872 = vsel %vm498, %v1871, 0.0
        %1873 = vadd.xlane.f32.xlu0 %v1872
        %v1874 = vpop.xlane.xlu0 %1873
        %v1875 = vmul.f32 %v1874, %v502
        %v1876 = vadd.f32 %v1875, 1e-05
        %v1877 = vrsqrt.pop %v1876
        %v1878 = vmul.f32 %v1870, %v1877
        %v1879 = vlaneseq
        %v1880 = vshrl.u32 %v1879, 7
        %v1881 = vsub.s32 2, %v1880
        %v1882 = vrot.slane %v453, %v1881
        %v1883 = vmul.f32 %v1878, %v1882
        %v1884 = vlaneseq
        %v1885 = vshrl.u32 %v1884, 7
        %v1886 = vsub.s32 3, %v1885
        %v1887 = vrot.slane %v453, %v1886
        %v1888 = vadd.f32 %v1883, %v1887
        %v1889 = vpack.c.bf16 %v1865, %v1864
        %1890 = vrot.lane.b32.xlu0 %v1479, 96
        %v1891 = vpop.permute.xlu0 %1890
        %1892 = vrot.lane.b32.xlu0 %v1480, 96
        %v1893 = vpop.permute.xlu0 %1892
        %v1897 = vsel %vm498, %v1889, 0
        %1899 = vmatprep.subr.bf16.mxu0 0
        %1900 = vmatpush1.bf16.msra.mxu0 %v1891
        %1901 = vmatprep.subr.bf16.mxu0 0
        %1902 = vmatpush1.bf16.msra.mxu0 %v1893
        %1903 = vmatprep.subr.bf16.mxu0 0
        %1904 = vmatpush1.bf16.msra.mxu0 0
        %1905 = vmatprep.subr.bf16.mxu0 0
        %1906 = vmatpush1.bf16.msra.mxu0 0
        %1907 = vmatprep.subr.bf16.mxu0 0
        %1908 = vmatpush1.bf16.msra.mxu0 0
        %1909 = vmatprep.subr.bf16.mxu0 0
        %1910 = vmatpush1.bf16.msra.mxu0 0
        %1911 = vmatprep.subr.bf16.mxu0 0
        %1912 = vmatpush1.bf16.msra.mxu0 0
        %1913 = vmatprep.subr.bf16.mxu0 0
        %1914 = vmatpush1.bf16.msra.mxu0 0
        %1915 = vmatprep.subr.bf16.mxu0 0
        %1916 = vmatpush1.bf16.msra.mxu0 0
        %1917 = vmatprep.subr.bf16.mxu0 0
        %1918 = vmatpush1.bf16.msra.mxu0 0
        %1919 = vmatprep.subr.bf16.mxu0 0
        %1920 = vmatpush1.bf16.msra.mxu0 0
        %1921 = vmatprep.subr.bf16.mxu0 0
        %1922 = vmatpush1.bf16.msra.mxu0 0
        %1923 = vmatprep.subr.bf16.mxu0 0
        %1924 = vmatpush1.bf16.msra.mxu0 0
        %1925 = vmatprep.subr.bf16.mxu0 0
        %1926 = vmatpush1.bf16.msra.mxu0 0
        %1927 = vmatprep.subr.bf16.mxu0 0
        %1928 = vmatpush1.bf16.msra.mxu0 0
        %1929 = vmatprep.subr.bf16.mxu0 0
        %1930 = vmatpush1.bf16.msra.mxu0 0
        %1931 = vmatprep.mubr.bf16.mxu0 0
        %1932 = vmatmul.mubr.bf16.gmra.mrb[0].mxu0 %v1897
        %v1933 = vpop.f32.mrb[0].mxu0
        %v1934 = vadd.f32 0.0, %v1933
        %v1935 = vpop.f32.mrb[0].mxu0
        %v1936 = vpop.f32.mrb[0].mxu0
        %v1937 = vadd.f32 0.0, %v1936
        %v1938 = vpop.f32.mrb[0].mxu0
        %1939 = vdwg.mxu0
        %v1940 = vpack.c.bf16 %v1888, %v1888
        %1941 = vrot.lane.b32.xlu0 %v1479, 64
        %v1942 = vpop.permute.xlu0 %1941
        %1943 = vrot.lane.b32.xlu0 %v1480, 64
        %v1944 = vpop.permute.xlu0 %1943
        %v1948 = vsel %vm498, %v1940, 0
        %1950 = vmatprep.subr.bf16.mxu0 0
        %1951 = vmatpush1.bf16.msra.mxu0 %v1942
        %1952 = vmatprep.subr.bf16.mxu0 0
        %1953 = vmatpush1.bf16.msra.mxu0 %v1944
        %1954 = vmatprep.subr.bf16.mxu0 0
        %1955 = vmatpush1.bf16.msra.mxu0 0
        %1956 = vmatprep.subr.bf16.mxu0 0
        %1957 = vmatpush1.bf16.msra.mxu0 0
        %1958 = vmatprep.subr.bf16.mxu0 0
        %1959 = vmatpush1.bf16.msra.mxu0 0
        %1960 = vmatprep.subr.bf16.mxu0 0
        %1961 = vmatpush1.bf16.msra.mxu0 0
        %1962 = vmatprep.subr.bf16.mxu0 0
        %1963 = vmatpush1.bf16.msra.mxu0 0
        %1964 = vmatprep.subr.bf16.mxu0 0
        %1965 = vmatpush1.bf16.msra.mxu0 0
        %1966 = vmatprep.subr.bf16.mxu0 0
        %1967 = vmatpush1.bf16.msra.mxu0 0
        %1968 = vmatprep.subr.bf16.mxu0 0
        %1969 = vmatpush1.bf16.msra.mxu0 0
        %1970 = vmatprep.subr.bf16.mxu0 0
        %1971 = vmatpush1.bf16.msra.mxu0 0
        %1972 = vmatprep.subr.bf16.mxu0 0
        %1973 = vmatpush1.bf16.msra.mxu0 0
        %1974 = vmatprep.subr.bf16.mxu0 0
        %1975 = vmatpush1.bf16.msra.mxu0 0
        %1976 = vmatprep.subr.bf16.mxu0 0
        %1977 = vmatpush1.bf16.msra.mxu0 0
        %1978 = vmatprep.subr.bf16.mxu0 0
        %1979 = vmatpush1.bf16.msra.mxu0 0
        %1980 = vmatprep.subr.bf16.mxu0 0
        %1981 = vmatpush1.bf16.msra.mxu0 0
        %1982 = vmatprep.mubr.bf16.mxu0 0
        %1983 = vmatmul.mubr.bf16.gmra.mrb[0].mxu0 %v1948
        %v1984 = vpop.f32.mrb[0].mxu0
        %v1985 = vadd.f32 0.0, %v1984
        %v1986 = vpop.f32.mrb[0].mxu0
        %v1987 = vpop.f32.mrb[0].mxu0
        %v1988 = vpop.f32.mrb[0].mxu0
        %1989 = vdwg.mxu0
        %v1990 = vpack.c.bf16 %v1937, %v1934
        %v1991 = vpack.c.bf16 %v1985, %v1985
        %v1993 = vsel %vm583, %v1990, 0
        %v1996 = vsel %vm583, %v1991, 0
        %1998 = vmatprep.subr.bf16.mxu0 0
        %1999 = vmatpush1.bf16.xpose.msra.mxu0 %v1996
        %2000 = vmatprep.subr.bf16.mxu0 0
        %2001 = vmatpush1.bf16.xpose.msra.mxu0 0
        %2002 = vmatprep.subr.bf16.mxu0 0
        %2003 = vmatpush1.bf16.xpose.msra.mxu0 0
        %2004 = vmatprep.subr.bf16.mxu0 0
        %2005 = vmatpush1.bf16.xpose.msra.mxu0 0
        %2006 = vmatprep.subr.bf16.mxu0 0
        %2007 = vmatpush1.bf16.xpose.msra.mxu0 0
        %2008 = vmatprep.subr.bf16.mxu0 0
        %2009 = vmatpush1.bf16.xpose.msra.mxu0 0
        %2010 = vmatprep.subr.bf16.mxu0 0
        %2011 = vmatpush1.bf16.xpose.msra.mxu0 0
        %2012 = vmatprep.subr.bf16.mxu0 0
        %2013 = vmatpush1.bf16.xpose.msra.mxu0 0
        %2014 = vmatprep.subr.bf16.mxu0 0
        %2015 = vmatpush1.bf16.xpose.msra.mxu0 0
        %2016 = vmatprep.subr.bf16.mxu0 0
        %2017 = vmatpush1.bf16.xpose.msra.mxu0 0
        %2018 = vmatprep.subr.bf16.mxu0 0
        %2019 = vmatpush1.bf16.xpose.msra.mxu0 0
        %2020 = vmatprep.subr.bf16.mxu0 0
        %2021 = vmatpush1.bf16.xpose.msra.mxu0 0
        %2022 = vmatprep.subr.bf16.mxu0 0
        %2023 = vmatpush1.bf16.xpose.msra.mxu0 0
        %2024 = vmatprep.subr.bf16.mxu0 0
        %2025 = vmatpush1.bf16.xpose.msra.mxu0 0
        %2026 = vmatprep.subr.bf16.mxu0 0
        %2027 = vmatpush1.bf16.xpose.msra.mxu0 0
        %2028 = vmatprep.subr.bf16.mxu0 0
        %2029 = vmatpush1.bf16.xpose.msra.mxu0 0
        %2030 = vmatprep.mubr.bf16.mxu0 0
        %2031 = vmatmul.mubr.bf16.gmra.mrb[0].mxu0 %v1993
        %v2032 = vpop.f32.mrb[0].mxu0
        %v2033 = vadd.f32 %v496, %v2032
        %v2034 = vpop.f32.mrb[0].mxu0
        %v2035 = vpop.f32.mrb[0].mxu0
        %v2036 = vadd.f32 %v497, %v2035
        %v2037 = vpop.f32.mrb[0].mxu0
        %2038 = vdwg.mxu0
        %v2039 = vsel %vm630, %v2033, -inf
        %2040 = vmax.xlane.f32.xlu0 %v2039
        %v2041 = vpop.xlane.xlu0 %2040
        %v2042 = vsel %vm630, %v2036, -inf
        %2043 = vmax.xlane.f32.xlu0 %v2042
        %v2044 = vpop.xlane.xlu0 %2043
        %v2045 = vsub.f32 %v2033, %v2041
        %v2046 = vsub.f32 %v2036, %v2044
        %v2047 = vmul.f32 %v2045, 1.442695
        %v2048 = vpow.pop %v2047
        %v2049 = vmul.f32 %v2046, 1.442695
        %v2050 = vpow.pop %v2049
        %v2051 = vsel %vm630, %v2048, 0.0
        %2052 = vadd.xlane.f32.xlu0 %v2051
        %v2053 = vpop.xlane.xlu0 %2052
        %v2054 = vsel %vm630, %v2050, 0.0
        %2055 = vadd.xlane.f32.xlu0 %v2054
        %v2056 = vpop.xlane.xlu0 %2055
        %v2057 = vrcp.pop %v2053
        %v2058 = vmul.f32 %v2048, %v2057
        %v2059 = vrcp.pop %v2056
        %v2060 = vmul.f32 %v2050, %v2059
        %v2061 = vpack.c.bf16 %v2060, %v2058
        %2063 = vrot.lane.b32.xlu0 %v1991, 96
        %v2064 = vpop.permute.xlu0 %2063
        %v2066 = vsel %vm630, %v2061, 0
        %v2069 = vsel %vm648, %v2064, 0
        %2071 = vmatprep.subr.bf16.mxu0 0
        %2072 = vmatpush1.bf16.msra.mxu0 %v2069
        %2073 = vmatprep.subr.bf16.mxu0 0
        %2074 = vmatpush1.bf16.msra.mxu0 0
        %2075 = vmatprep.subr.bf16.mxu0 0
        %2076 = vmatpush1.bf16.msra.mxu0 0
        %2077 = vmatprep.subr.bf16.mxu0 0
        %2078 = vmatpush1.bf16.msra.mxu0 0
        %2079 = vmatprep.subr.bf16.mxu0 0
        %2080 = vmatpush1.bf16.msra.mxu0 0
        %2081 = vmatprep.subr.bf16.mxu0 0
        %2082 = vmatpush1.bf16.msra.mxu0 0
        %2083 = vmatprep.subr.bf16.mxu0 0
        %2084 = vmatpush1.bf16.msra.mxu0 0
        %2085 = vmatprep.subr.bf16.mxu0 0
        %2086 = vmatpush1.bf16.msra.mxu0 0
        %2087 = vmatprep.subr.bf16.mxu0 0
        %2088 = vmatpush1.bf16.msra.mxu0 0
        %2089 = vmatprep.subr.bf16.mxu0 0
        %2090 = vmatpush1.bf16.msra.mxu0 0
        %2091 = vmatprep.subr.bf16.mxu0 0
        %2092 = vmatpush1.bf16.msra.mxu0 0
        %2093 = vmatprep.subr.bf16.mxu0 0
        %2094 = vmatpush1.bf16.msra.mxu0 0
        %2095 = vmatprep.subr.bf16.mxu0 0
        %2096 = vmatpush1.bf16.msra.mxu0 0
        %2097 = vmatprep.subr.bf16.mxu0 0
        %2098 = vmatpush1.bf16.msra.mxu0 0
        %2099 = vmatprep.subr.bf16.mxu0 0
        %2100 = vmatpush1.bf16.msra.mxu0 0
        %2101 = vmatprep.subr.bf16.mxu0 0
        %2102 = vmatpush1.bf16.msra.mxu0 0
        %2103 = vmatprep.mubr.bf16.mxu0 0
        %2104 = vmatmul.mubr.bf16.gmra.mrb[0].mxu0 %v2066
        %v2105 = vpop.f32.mrb[0].mxu0
        %v2106 = vadd.f32 0.0, %v2105
        %v2107 = vpop.f32.mrb[0].mxu0
        %v2108 = vpop.f32.mrb[0].mxu0
        %v2109 = vadd.f32 0.0, %v2108
        %v2110 = vpop.f32.mrb[0].mxu0
        %2111 = vdwg.mxu0
        %v2112 = vpack.c.bf16 %v2109, %v2106
        %2114 = vrot.lane.b32.xlu0 %v1990, 112
        %v2115 = vpop.permute.xlu0 %2114
        %2116 = vrot.lane.b32.xlu0 %v1991, 112
        %v2117 = vpop.permute.xlu0 %2116
        %v2119 = vsel %vm583, %v2115, 0
        %v2122 = vsel %vm583, %v2117, 0
        %2124 = vmatprep.subr.bf16.mxu0 0
        %2125 = vmatpush1.bf16.xpose.msra.mxu0 %v2122
        %2126 = vmatprep.subr.bf16.mxu0 0
        %2127 = vmatpush1.bf16.xpose.msra.mxu0 0
        %2128 = vmatprep.subr.bf16.mxu0 0
        %2129 = vmatpush1.bf16.xpose.msra.mxu0 0
        %2130 = vmatprep.subr.bf16.mxu0 0
        %2131 = vmatpush1.bf16.xpose.msra.mxu0 0
        %2132 = vmatprep.subr.bf16.mxu0 0
        %2133 = vmatpush1.bf16.xpose.msra.mxu0 0
        %2134 = vmatprep.subr.bf16.mxu0 0
        %2135 = vmatpush1.bf16.xpose.msra.mxu0 0
        %2136 = vmatprep.subr.bf16.mxu0 0
        %2137 = vmatpush1.bf16.xpose.msra.mxu0 0
        %2138 = vmatprep.subr.bf16.mxu0 0
        %2139 = vmatpush1.bf16.xpose.msra.mxu0 0
        %2140 = vmatprep.subr.bf16.mxu0 0
        %2141 = vmatpush1.bf16.xpose.msra.mxu0 0
        %2142 = vmatprep.subr.bf16.mxu0 0
        %2143 = vmatpush1.bf16.xpose.msra.mxu0 0
        %2144 = vmatprep.subr.bf16.mxu0 0
        %2145 = vmatpush1.bf16.xpose.msra.mxu0 0
        %2146 = vmatprep.subr.bf16.mxu0 0
        %2147 = vmatpush1.bf16.xpose.msra.mxu0 0
        %2148 = vmatprep.subr.bf16.mxu0 0
        %2149 = vmatpush1.bf16.xpose.msra.mxu0 0
        %2150 = vmatprep.subr.bf16.mxu0 0
        %2151 = vmatpush1.bf16.xpose.msra.mxu0 0
        %2152 = vmatprep.subr.bf16.mxu0 0
        %2153 = vmatpush1.bf16.xpose.msra.mxu0 0
        %2154 = vmatprep.subr.bf16.mxu0 0
        %2155 = vmatpush1.bf16.xpose.msra.mxu0 0
        %2156 = vmatprep.mubr.bf16.mxu0 0
        %2157 = vmatmul.mubr.bf16.gmra.mrb[0].mxu0 %v2119
        %v2158 = vpop.f32.mrb[0].mxu0
        %v2159 = vadd.f32 %v496, %v2158
        %v2160 = vpop.f32.mrb[0].mxu0
        %v2161 = vpop.f32.mrb[0].mxu0
        %v2162 = vadd.f32 %v497, %v2161
        %v2163 = vpop.f32.mrb[0].mxu0
        %2164 = vdwg.mxu0
        %v2165 = vsel %vm630, %v2159, -inf
        %2166 = vmax.xlane.f32.xlu0 %v2165
        %v2167 = vpop.xlane.xlu0 %2166
        %v2168 = vsel %vm630, %v2162, -inf
        %2169 = vmax.xlane.f32.xlu0 %v2168
        %v2170 = vpop.xlane.xlu0 %2169
        %v2171 = vsub.f32 %v2159, %v2167
        %v2172 = vsub.f32 %v2162, %v2170
        %v2173 = vmul.f32 %v2171, 1.442695
        %v2174 = vpow.pop %v2173
        %v2175 = vmul.f32 %v2172, 1.442695
        %v2176 = vpow.pop %v2175
        %v2177 = vsel %vm630, %v2174, 0.0
        %2178 = vadd.xlane.f32.xlu0 %v2177
        %v2179 = vpop.xlane.xlu0 %2178
        %v2180 = vsel %vm630, %v2176, 0.0
        %2181 = vadd.xlane.f32.xlu0 %v2180
        %v2182 = vpop.xlane.xlu0 %2181
        %v2183 = vrcp.pop %v2179
        %v2184 = vmul.f32 %v2174, %v2183
        %v2185 = vrcp.pop %v2182
        %v2186 = vmul.f32 %v2176, %v2185
        %v2187 = vpack.c.bf16 %v2186, %v2184
        %2188 = vrot.lane.b32.xlu0 %v1991, 80
        %v2189 = vpop.permute.xlu0 %2188
        %v2191 = vsel %vm630, %v2187, 0
        %v2194 = vsel %vm648, %v2189, 0
        %2196 = vmatprep.subr.bf16.mxu0 0
        %2197 = vmatpush1.bf16.msra.mxu0 %v2194
        %2198 = vmatprep.subr.bf16.mxu0 0
        %2199 = vmatpush1.bf16.msra.mxu0 0
        %2200 = vmatprep.subr.bf16.mxu0 0
        %2201 = vmatpush1.bf16.msra.mxu0 0
        %2202 = vmatprep.subr.bf16.mxu0 0
        %2203 = vmatpush1.bf16.msra.mxu0 0
        %2204 = vmatprep.subr.bf16.mxu0 0
        %2205 = vmatpush1.bf16.msra.mxu0 0
        %2206 = vmatprep.subr.bf16.mxu0 0
        %2207 = vmatpush1.bf16.msra.mxu0 0
        %2208 = vmatprep.subr.bf16.mxu0 0
        %2209 = vmatpush1.bf16.msra.mxu0 0
        %2210 = vmatprep.subr.bf16.mxu0 0
        %2211 = vmatpush1.bf16.msra.mxu0 0
        %2212 = vmatprep.subr.bf16.mxu0 0
        %2213 = vmatpush1.bf16.msra.mxu0 0
        %2214 = vmatprep.subr.bf16.mxu0 0
        %2215 = vmatpush1.bf16.msra.mxu0 0
        %2216 = vmatprep.subr.bf16.mxu0 0
        %2217 = vmatpush1.bf16.msra.mxu0 0
        %2218 = vmatprep.subr.bf16.mxu0 0
        %2219 = vmatpush1.bf16.msra.mxu0 0
        %2220 = vmatprep.subr.bf16.mxu0 0
        %2221 = vmatpush1.bf16.msra.mxu0 0
        %2222 = vmatprep.subr.bf16.mxu0 0
        %2223 = vmatpush1.bf16.msra.mxu0 0
        %2224 = vmatprep.subr.bf16.mxu0 0
        %2225 = vmatpush1.bf16.msra.mxu0 0
        %2226 = vmatprep.subr.bf16.mxu0 0
        %2227 = vmatpush1.bf16.msra.mxu0 0
        %2228 = vmatprep.mubr.bf16.mxu0 0
        %2229 = vmatmul.mubr.bf16.gmra.mrb[0].mxu0 %v2191
        %v2230 = vpop.f32.mrb[0].mxu0
        %v2231 = vadd.f32 0.0, %v2230
        %v2232 = vpop.f32.mrb[0].mxu0
        %v2233 = vpop.f32.mrb[0].mxu0
        %v2234 = vadd.f32 0.0, %v2233
        %v2235 = vpop.f32.mrb[0].mxu0
        %2236 = vdwg.mxu0
        %v2237 = vpack.c.bf16 %v2234, %v2231
        %v2240 = vunpack.c.l.b16 %v477
        %v2241 = vunpack.c.l.b16 %v478
        %v2242 = vpack.c.b16 %v2241, %v2240
        %v2245 = vsel %vm583, %v2237, 0
        %2247 = vmatprep.subr.bf16.mxu0 0
        %2248 = vmatpush1.bf16.msra.mxu0 %v2242
        %2249 = vmatprep.subr.bf16.mxu0 0
        %2250 = vmatpush1.bf16.msra.mxu0 0
        %2251 = vmatprep.subr.bf16.mxu0 0
        %2252 = vmatpush1.bf16.msra.mxu0 0
        %2253 = vmatprep.subr.bf16.mxu0 0
        %2254 = vmatpush1.bf16.msra.mxu0 0
        %2255 = vmatprep.subr.bf16.mxu0 0
        %2256 = vmatpush1.bf16.msra.mxu0 0
        %2257 = vmatprep.subr.bf16.mxu0 0
        %2258 = vmatpush1.bf16.msra.mxu0 0
        %2259 = vmatprep.subr.bf16.mxu0 0
        %2260 = vmatpush1.bf16.msra.mxu0 0
        %2261 = vmatprep.subr.bf16.mxu0 0
        %2262 = vmatpush1.bf16.msra.mxu0 0
        %2263 = vmatprep.subr.bf16.mxu0 0
        %2264 = vmatpush1.bf16.msra.mxu0 0
        %2265 = vmatprep.subr.bf16.mxu0 0
        %2266 = vmatpush1.bf16.msra.mxu0 0
        %2267 = vmatprep.subr.bf16.mxu0 0
        %2268 = vmatpush1.bf16.msra.mxu0 0
        %2269 = vmatprep.subr.bf16.mxu0 0
        %2270 = vmatpush1.bf16.msra.mxu0 0
        %2271 = vmatprep.subr.bf16.mxu0 0
        %2272 = vmatpush1.bf16.msra.mxu0 0
        %2273 = vmatprep.subr.bf16.mxu0 0
        %2274 = vmatpush1.bf16.msra.mxu0 0
        %2275 = vmatprep.subr.bf16.mxu0 0
        %2276 = vmatpush1.bf16.msra.mxu0 0
        %2277 = vmatprep.subr.bf16.mxu0 0
        %2278 = vmatpush1.bf16.msra.mxu0 0
        %2279 = vmatprep.mubr.bf16.mxu0 0
        %2280 = vmatmul.mubr.bf16.gmra.mrb[0].mxu0 %v2245
        %v2281 = vpop.f32.mrb[0].mxu0
        %v2282 = vadd.f32 0.0, %v2281
        %v2283 = vpop.f32.mrb[0].mxu0
        %v2284 = vpop.f32.mrb[0].mxu0
        %v2285 = vadd.f32 0.0, %v2284
        %v2286 = vpop.f32.mrb[0].mxu0
        %2287 = vdwg.mxu0
        %v2290 = vunpack.c.l.b16 %v475
        %v2291 = vunpack.c.l.b16 %v476
        %v2292 = vpack.c.b16 %v2291, %v2290
        %v2295 = vsel %vm583, %v2112, 0
        %2297 = vmatprep.subr.bf16.mxu0 0
        %2298 = vmatpush1.bf16.msra.mxu0 %v2292
        %2299 = vmatprep.subr.bf16.mxu0 0
        %2300 = vmatpush1.bf16.msra.mxu0 0
        %2301 = vmatprep.subr.bf16.mxu0 0
        %2302 = vmatpush1.bf16.msra.mxu0 0
        %2303 = vmatprep.subr.bf16.mxu0 0
        %2304 = vmatpush1.bf16.msra.mxu0 0
        %2305 = vmatprep.subr.bf16.mxu0 0
        %2306 = vmatpush1.bf16.msra.mxu0 0
        %2307 = vmatprep.subr.bf16.mxu0 0
        %2308 = vmatpush1.bf16.msra.mxu0 0
        %2309 = vmatprep.subr.bf16.mxu0 0
        %2310 = vmatpush1.bf16.msra.mxu0 0
        %2311 = vmatprep.subr.bf16.mxu0 0
        %2312 = vmatpush1.bf16.msra.mxu0 0
        %2313 = vmatprep.subr.bf16.mxu0 0
        %2314 = vmatpush1.bf16.msra.mxu0 0
        %2315 = vmatprep.subr.bf16.mxu0 0
        %2316 = vmatpush1.bf16.msra.mxu0 0
        %2317 = vmatprep.subr.bf16.mxu0 0
        %2318 = vmatpush1.bf16.msra.mxu0 0
        %2319 = vmatprep.subr.bf16.mxu0 0
        %2320 = vmatpush1.bf16.msra.mxu0 0
        %2321 = vmatprep.subr.bf16.mxu0 0
        %2322 = vmatpush1.bf16.msra.mxu0 0
        %2323 = vmatprep.subr.bf16.mxu0 0
        %2324 = vmatpush1.bf16.msra.mxu0 0
        %2325 = vmatprep.subr.bf16.mxu0 0
        %2326 = vmatpush1.bf16.msra.mxu0 0
        %2327 = vmatprep.subr.bf16.mxu0 0
        %2328 = vmatpush1.bf16.msra.mxu0 0
        %2329 = vmatprep.mubr.bf16.mxu0 0
        %2330 = vmatmul.mubr.bf16.gmra.mrb[0].mxu0 %v2295
        %v2331 = vpop.f32.mrb[0].mxu0
        %v2332 = vadd.f32 %v2282, %v2331
        %v2333 = vpop.f32.mrb[0].mxu0
        %v2334 = vpop.f32.mrb[0].mxu0
        %v2335 = vadd.f32 %v2285, %v2334
        %v2336 = vpop.f32.mrb[0].mxu0
        %2337 = vdwg.mxu0
        %v2338 = vadd.f32 %v1357, %v2332
        %v2339 = vadd.f32 %v1358, %v2335
        %v2340 = vlaneseq
        %v2341 = vshrl.u32 %v2340, 7
        %v2342 = vsub.s32 4, %v2341
        %v2343 = vrot.slane %v453, %v2342
        %v2344 = vmul.f32 %v1878, %v2343
        %v2345 = vlaneseq
        %v2346 = vshrl.u32 %v2345, 7
        %v2347 = vsub.s32 5, %v2346
        %v2348 = vrot.slane %v453, %v2347
        %v2349 = vadd.f32 %v2344, %v2348
        %v2350 = vpack.c.bf16 %v2349, %v2349
        %v2351 = vlaneseq
        %v2352 = vshrl.u32 %v2351, 7
        %v2353 = vsub.s32 2, %v2352
        %v2354 = vrot.slane %v454, %v2353
        %v2355 = vunpack.c.h.b16 %v456
        %v2356 = vunpack.c.h.b16 %v458
        %v2357 = vunpack.c.h.b16 %v460
        %v2358 = vunpack.c.h.b16 %v462
        %v2359 = vpack.c.b16 %v2356, %v2355
        %v2360 = vpack.c.b16 %v2358, %v2357
        %v2364 = vsel %vm498, %v2350, 0
        %2366 = vmatprep.subr.bf16.mxu0 0
        %2367 = vmatpush1.bf16.msra.mxu0 %v2359
        %2368 = vmatprep.subr.bf16.mxu0 0
        %2369 = vmatpush1.bf16.msra.mxu0 %v2360
        %2370 = vmatprep.subr.bf16.mxu0 0
        %2371 = vmatpush1.bf16.msra.mxu0 0
        %2372 = vmatprep.subr.bf16.mxu0 0
        %2373 = vmatpush1.bf16.msra.mxu0 0
        %2374 = vmatprep.subr.bf16.mxu0 0
        %2375 = vmatpush1.bf16.msra.mxu0 0
        %2376 = vmatprep.subr.bf16.mxu0 0
        %2377 = vmatpush1.bf16.msra.mxu0 0
        %2378 = vmatprep.subr.bf16.mxu0 0
        %2379 = vmatpush1.bf16.msra.mxu0 0
        %2380 = vmatprep.subr.bf16.mxu0 0
        %2381 = vmatpush1.bf16.msra.mxu0 0
        %2382 = vmatprep.subr.bf16.mxu0 0
        %2383 = vmatpush1.bf16.msra.mxu0 0
        %2384 = vmatprep.subr.bf16.mxu0 0
        %2385 = vmatpush1.bf16.msra.mxu0 0
        %2386 = vmatprep.subr.bf16.mxu0 0
        %2387 = vmatpush1.bf16.msra.mxu0 0
        %2388 = vmatprep.subr.bf16.mxu0 0
        %2389 = vmatpush1.bf16.msra.mxu0 0
        %2390 = vmatprep.subr.bf16.mxu0 0
        %2391 = vmatpush1.bf16.msra.mxu0 0
        %2392 = vmatprep.subr.bf16.mxu0 0
        %2393 = vmatpush1.bf16.msra.mxu0 0
        %2394 = vmatprep.subr.bf16.mxu0 0
        %2395 = vmatpush1.bf16.msra.mxu0 0
        %2396 = vmatprep.subr.bf16.mxu0 0
        %2397 = vmatpush1.bf16.msra.mxu0 0
        %2398 = vmatprep.mubr.bf16.mxu0 0
        %2399 = vmatmul.mubr.bf16.gmra.mrb[0].mxu0 %v2364
        %v2400 = vpop.f32.mrb[0].mxu0
        %v2401 = vadd.f32 %v2354, %v2400
        %v2402 = vpop.f32.mrb[0].mxu0
        %v2403 = vpop.f32.mrb[0].mxu0
        %v2404 = vpop.f32.mrb[0].mxu0
        %2405 = vdwg.mxu0
        %v2406 = vmul.f32 %v2401, %v2401
        %v2407 = vmul.f32 %v2401, %v2406
        %v2408 = vmul.f32 %v2407, 0.044715
        %v2409 = vadd.f32 %v2401, %v2408
        %v2410 = vmul.f32 %v2409, 0.7978846
        %v2411 = vtanh.pop %v2410
        %v2412 = vadd.f32 %v2411, 1.0
        %v2413 = vmul.f32 %v2412, 0.5
        %v2414 = vmul.f32 %v2401, %v2413
        %v2415 = vpack.c.bf16 %v2414, %v2414
        %v2424 = vunpack.c.l.b16 %v479
        %v2425 = vunpack.c.l.b16 %v480
        %v2426 = vunpack.c.l.b16 %v481
        %v2427 = vunpack.c.l.b16 %v482
        %v2428 = vunpack.c.l.b16 %v483
        %v2429 = vunpack.c.l.b16 %v484
        %v2430 = vunpack.c.l.b16 %v485
        %v2431 = vunpack.c.l.b16 %v486
        %v2432 = vpack.c.b16 %v2425, %v2424
        %v2433 = vpack.c.b16 %v2427, %v2426
        %v2434 = vpack.c.b16 %v2429, %v2428
        %v2435 = vpack.c.b16 %v2431, %v2430
        %vm2440 = vcmask 523264
        %v2442 = vsel %vm2440, %v2415, 0
        %2444 = vmatprep.subr.bf16.mxu0 0
        %2445 = vmatpush1.bf16.msra.mxu0 %v2432
        %2446 = vmatprep.subr.bf16.mxu0 0
        %2447 = vmatpush1.bf16.msra.mxu0 %v2433
        %2448 = vmatprep.subr.bf16.mxu0 0
        %2449 = vmatpush1.bf16.msra.mxu0 %v2434
        %2450 = vmatprep.subr.bf16.mxu0 0
        %2451 = vmatpush1.bf16.msra.mxu0 %v2435
        %2452 = vmatprep.subr.bf16.mxu0 0
        %2453 = vmatpush1.bf16.msra.mxu0 0
        %2454 = vmatprep.subr.bf16.mxu0 0
        %2455 = vmatpush1.bf16.msra.mxu0 0
        %2456 = vmatprep.subr.bf16.mxu0 0
        %2457 = vmatpush1.bf16.msra.mxu0 0
        %2458 = vmatprep.subr.bf16.mxu0 0
        %2459 = vmatpush1.bf16.msra.mxu0 0
        %2460 = vmatprep.subr.bf16.mxu0 0
        %2461 = vmatpush1.bf16.msra.mxu0 0
        %2462 = vmatprep.subr.bf16.mxu0 0
        %2463 = vmatpush1.bf16.msra.mxu0 0
        %2464 = vmatprep.subr.bf16.mxu0 0
        %2465 = vmatpush1.bf16.msra.mxu0 0
        %2466 = vmatprep.subr.bf16.mxu0 0
        %2467 = vmatpush1.bf16.msra.mxu0 0
        %2468 = vmatprep.subr.bf16.mxu0 0
        %2469 = vmatpush1.bf16.msra.mxu0 0
        %2470 = vmatprep.subr.bf16.mxu0 0
        %2471 = vmatpush1.bf16.msra.mxu0 0
        %2472 = vmatprep.subr.bf16.mxu0 0
        %2473 = vmatpush1.bf16.msra.mxu0 0
        %2474 = vmatprep.subr.bf16.mxu0 0
        %2475 = vmatpush1.bf16.msra.mxu0 0
        %2476 = vmatprep.mubr.bf16.mxu0 0
        %2477 = vmatmul.mubr.bf16.gmra.mrb[0].mxu0 %v2442
        %v2478 = vpop.f32.mrb[0].mxu0
        %v2479 = vadd.f32 0.0, %v2478
        %v2480 = vpop.f32.mrb[0].mxu0
        %v2481 = vpop.f32.mrb[0].mxu0
        %v2482 = vpop.f32.mrb[0].mxu0
        %2483 = vdwg.mxu0
        %v2484 = vadd.f32 %v1853, %v2479
        %v2485 = vlaneseq
        %v2486 = vshrl.u32 %v2485, 7
        %v2487 = vsub.s32 6, %v2486
        %v2488 = vrot.slane %v453, %v2487
        %v2489 = vadd.f32 %v2484, %v2488
        %v2490 = vsel %vm498, %v2338, 0.0
        %2491 = vadd.xlane.f32.xlu0 %v2490
        %v2492 = vpop.xlane.xlu0 %2491
        %v2493 = vsel %vm498, %v2339, 0.0
        %2494 = vadd.xlane.f32.xlu0 %v2493
        %v2495 = vpop.xlane.xlu0 %2494
        %v2496 = vmul.f32 %v2492, %v502
        %v2497 = vmul.f32 %v2495, %v502
        %v2498 = vsub.f32 %v2338, %v2496
        %v2499 = vsub.f32 %v2339, %v2497
        %v2500 = vmul.f32 %v2498, %v2498
        %v2501 = vmul.f32 %v2499, %v2499
        %v2502 = vsel %vm498, %v2500, 0.0
        %2503 = vadd.xlane.f32.xlu0 %v2502
        %v2504 = vpop.xlane.xlu0 %2503
        %v2505 = vsel %vm498, %v2501, 0.0
        %2506 = vadd.xlane.f32.xlu0 %v2505
        %v2507 = vpop.xlane.xlu0 %2506
        %v2508 = vmul.f32 %v2504, %v502
        %v2509 = vmul.f32 %v2507, %v502
        %v2510 = vadd.f32 %v2508, 1e-05
        %v2511 = vadd.f32 %v2509, 1e-05
        %v2512 = vrsqrt.pop %v2510
        %v2513 = vrsqrt.pop %v2511
        %v2514 = vmul.f32 %v2498, %v2512
        %v2515 = vmul.f32 %v2499, %v2513
        %v2516 = vlaneseq
        %v2517 = vshrl.u32 %v2516, 7
        %v2518 = vsub.s32 7, %v2517
        %v2519 = vrot.slane %v453, %v2518
        %v2520 = vmul.f32 %v2514, %v2519
        %v2521 = vmul.f32 %v2515, %v2519
        %v2522 = vlaneseq
        %v2523 = vshrl.u32 %v2522, 7
        %v2524 = vsub.s32 0, %v2523
        %v2525 = vrot.slane %v454, %v2524
        %v2526 = vadd.f32 %v2520, %v2525
        %v2527 = vadd.f32 %v2521, %v2525
        %v2528 = vpack.c.bf16 %v2527, %v2526
        %v2529 = vlaneseq
        %v2530 = vshrl.u32 %v2529, 7
        %v2531 = vsub.s32 3, %v2530
        %v2532 = vrot.slane %v454, %v2531
        %2533 = vrot.lane.b32.xlu0 %v2359, 64
        %v2534 = vpop.permute.xlu0 %2533
        %2535 = vrot.lane.b32.xlu0 %v2360, 64
        %v2536 = vpop.permute.xlu0 %2535
        %v2540 = vsel %vm498, %v2528, 0
        %2542 = vmatprep.subr.bf16.mxu0 0
        %2543 = vmatpush1.bf16.msra.mxu0 %v2534
        %2544 = vmatprep.subr.bf16.mxu0 0
        %2545 = vmatpush1.bf16.msra.mxu0 %v2536
        %2546 = vmatprep.subr.bf16.mxu0 0
        %2547 = vmatpush1.bf16.msra.mxu0 0
        %2548 = vmatprep.subr.bf16.mxu0 0
        %2549 = vmatpush1.bf16.msra.mxu0 0
        %2550 = vmatprep.subr.bf16.mxu0 0
        %2551 = vmatpush1.bf16.msra.mxu0 0
        %2552 = vmatprep.subr.bf16.mxu0 0
        %2553 = vmatpush1.bf16.msra.mxu0 0
        %2554 = vmatprep.subr.bf16.mxu0 0
        %2555 = vmatpush1.bf16.msra.mxu0 0
        %2556 = vmatprep.subr.bf16.mxu0 0
        %2557 = vmatpush1.bf16.msra.mxu0 0
        %2558 = vmatprep.subr.bf16.mxu0 0
        %2559 = vmatpush1.bf16.msra.mxu0 0
        %2560 = vmatprep.subr.bf16.mxu0 0
        %2561 = vmatpush1.bf16.msra.mxu0 0
        %2562 = vmatprep.subr.bf16.mxu0 0
        %2563 = vmatpush1.bf16.msra.mxu0 0
        %2564 = vmatprep.subr.bf16.mxu0 0
        %2565 = vmatpush1.bf16.msra.mxu0 0
        %2566 = vmatprep.subr.bf16.mxu0 0
        %2567 = vmatpush1.bf16.msra.mxu0 0
        %2568 = vmatprep.subr.bf16.mxu0 0
        %2569 = vmatpush1.bf16.msra.mxu0 0
        %2570 = vmatprep.subr.bf16.mxu0 0
        %2571 = vmatpush1.bf16.msra.mxu0 0
        %2572 = vmatprep.subr.bf16.mxu0 0
        %2573 = vmatpush1.bf16.msra.mxu0 0
        %2574 = vmatprep.mubr.bf16.mxu0 0
        %2575 = vmatmul.mubr.bf16.gmra.mrb[0].mxu0 %v2540
        %v2576 = vpop.f32.mrb[0].mxu0
        %v2577 = vadd.f32 %v2532, %v2576
        %v2578 = vpop.f32.mrb[0].mxu0
        %v2579 = vpop.f32.mrb[0].mxu0
        %v2580 = vadd.f32 %v2532, %v2579
        %v2581 = vpop.f32.mrb[0].mxu0
        %2582 = vdwg.mxu0
        %v2583 = vmul.f32 %v2577, %v2577
        %v2584 = vmul.f32 %v2580, %v2580
        %v2585 = vmul.f32 %v2577, %v2583
        %v2586 = vmul.f32 %v2580, %v2584
        %v2587 = vmul.f32 %v2585, 0.044715
        %v2588 = vmul.f32 %v2586, 0.044715
        %v2589 = vadd.f32 %v2577, %v2587
        %v2590 = vadd.f32 %v2580, %v2588
        %v2591 = vmul.f32 %v2589, 0.7978846
        %v2592 = vmul.f32 %v2590, 0.7978846
        %v2593 = vtanh.pop %v2591
        %v2594 = vtanh.pop %v2592
        %v2595 = vadd.f32 %v2593, 1.0
        %v2596 = vadd.f32 %v2594, 1.0
        %v2597 = vmul.f32 %v2595, 0.5
        %v2598 = vmul.f32 %v2596, 0.5
        %v2599 = vmul.f32 %v2577, %v2597
        %v2600 = vmul.f32 %v2580, %v2598
        %v2601 = vpack.c.bf16 %v2600, %v2599
        %v2610 = vunpack.c.l.b16 %v487
        %v2611 = vunpack.c.l.b16 %v488
        %v2612 = vunpack.c.l.b16 %v489
        %v2613 = vunpack.c.l.b16 %v490
        %v2614 = vunpack.c.l.b16 %v491
        %v2615 = vunpack.c.l.b16 %v492
        %v2616 = vunpack.c.l.b16 %v493
        %v2617 = vunpack.c.l.b16 %v494
        %v2618 = vpack.c.b16 %v2611, %v2610
        %v2619 = vpack.c.b16 %v2613, %v2612
        %v2620 = vpack.c.b16 %v2615, %v2614
        %v2621 = vpack.c.b16 %v2617, %v2616
        %v2627 = vsel %vm2440, %v2601, 0
        %2629 = vmatprep.subr.bf16.mxu0 0
        %2630 = vmatpush1.bf16.msra.mxu0 %v2618
        %2631 = vmatprep.subr.bf16.mxu0 0
        %2632 = vmatpush1.bf16.msra.mxu0 %v2619
        %2633 = vmatprep.subr.bf16.mxu0 0
        %2634 = vmatpush1.bf16.msra.mxu0 %v2620
        %2635 = vmatprep.subr.bf16.mxu0 0
        %2636 = vmatpush1.bf16.msra.mxu0 %v2621
        %2637 = vmatprep.subr.bf16.mxu0 0
        %2638 = vmatpush1.bf16.msra.mxu0 0
        %2639 = vmatprep.subr.bf16.mxu0 0
        %2640 = vmatpush1.bf16.msra.mxu0 0
        %2641 = vmatprep.subr.bf16.mxu0 0
        %2642 = vmatpush1.bf16.msra.mxu0 0
        %2643 = vmatprep.subr.bf16.mxu0 0
        %2644 = vmatpush1.bf16.msra.mxu0 0
        %2645 = vmatprep.subr.bf16.mxu0 0
        %2646 = vmatpush1.bf16.msra.mxu0 0
        %2647 = vmatprep.subr.bf16.mxu0 0
        %2648 = vmatpush1.bf16.msra.mxu0 0
        %2649 = vmatprep.subr.bf16.mxu0 0
        %2650 = vmatpush1.bf16.msra.mxu0 0
        %2651 = vmatprep.subr.bf16.mxu0 0
        %2652 = vmatpush1.bf16.msra.mxu0 0
        %2653 = vmatprep.subr.bf16.mxu0 0
        %2654 = vmatpush1.bf16.msra.mxu0 0
        %2655 = vmatprep.subr.bf16.mxu0 0
        %2656 = vmatpush1.bf16.msra.mxu0 0
        %2657 = vmatprep.subr.bf16.mxu0 0
        %2658 = vmatpush1.bf16.msra.mxu0 0
        %2659 = vmatprep.subr.bf16.mxu0 0
        %2660 = vmatpush1.bf16.msra.mxu0 0
        %2661 = vmatprep.mubr.bf16.mxu0 0
        %2662 = vmatmul.mubr.bf16.gmra.mrb[0].mxu0 %v2627
        %v2663 = vpop.f32.mrb[0].mxu0
        %v2664 = vadd.f32 0.0, %v2663
        %v2665 = vpop.f32.mrb[0].mxu0
        %v2666 = vpop.f32.mrb[0].mxu0
        %v2667 = vadd.f32 0.0, %v2666
        %v2668 = vpop.f32.mrb[0].mxu0
        %2669 = vdwg.mxu0
        %v2670 = vadd.f32 %v2338, %v2664
        %v2671 = vadd.f32 %v2339, %v2667
        %v2672 = vlaneseq
        %v2673 = vshrl.u32 %v2672, 7
        %v2674 = vsub.s32 1, %v2673
        %v2675 = vrot.slane %v454, %v2674
        %v2676 = vadd.f32 %v2670, %v2675
        %v2677 = vadd.f32 %v2671, %v2675
        %2678 = vst.msk [vmem:[#allocation2] sm:$0xff] %vm498, %v2489
        %2679 = vst.msk [vmem:[#allocation3] sm:$0xff] %vm498, %v2676
        %2680 = vst.msk [vmem:[#allocation3 + $0x8] sm:$0xff] %vm498, %v2677
        %p2681 = scmp.eq.s32.totalorder %s36, 1
        // Predicated region
        $region57: #{tpu_custom_call.1} parent=43 // pred_check
          %p2682 = pneg %p2681
        $region58: #{tpu_custom_call.1} parent=43 // pred_check_branch
          %2684 = sbr.rel (%p2682) target = $region60
        $region59: #{tpu_custom_call.1} parent=43 // pred_region
          %2685 = vst.msk [vmem:[%s409] sm:$0xff] %vm498, %v2489
          %2686 = vst.msk [vmem:[%s416] sm:$0xff] %vm498, %v2676
          %2687 = vst.msk [vmem:[%s416 + $0x8] sm:$0xff] %vm498, %v2677
        $region60: #{tpu_custom_call.1} parent=43 // pred_fallthru
          _
        %s2688 = sand.u32 %s207, 1
        %s2689 = scalar_lea.sflag [#allocation6], %s2688
        %s2690 = sand.u32 %s207, 1
        %s2691 = smul.addr %s2690, 8
        %s2692 = scalar_lea.vmem [#allocation9], %s2691
        %s2693 = sand.u32 %s233, 1
        %s2694 = scalar_lea.sflag [#allocation11], %s2693
        %s2695 = sand.u32 %s233, 1
        %s2696 = smul.addr %s2695, 16
        %s2697 = scalar_lea.vmem [#allocation10], %s2696
        // Predicated region
        $region61: #{tpu_custom_call.1} parent=43 // pred_check
          %p2698 = pneg %p217
        $region62: #{tpu_custom_call.1} parent=43 // pred_check_branch
          %2700 = sbr.rel (%p2698) target = $region64
        $region63: #{tpu_custom_call.1} parent=43 // pred_region
          %s2702 = ssub.s32 128, 128
          %2703 = vsyncadd %s2689, %s2702
          %s2704 = smul.addr %s35, 128
          %s2705 = scalar_lea.hbm %s6, %s2704
          %s2707 = sshll.u32 %s2692, 4
          %s2708 = int_to_ptr.vmem [resolvable:$true] %s2707
          %2710 = dma.vmem_to_hbm [thread:$0]  %s2708, 128, %s2705, %s2689
        $region64: #{tpu_custom_call.1} parent=43 // pred_fallthru
          _
        // Predicated region
        $region65: #{tpu_custom_call.1} parent=43 // pred_check
          %p2711 = pneg %p243
        $region66: #{tpu_custom_call.1} parent=43 // pred_check_branch
          %2713 = sbr.rel (%p2711) target = $region68
        $region67: #{tpu_custom_call.1} parent=43 // pred_region
          %s2715 = ssub.s32 256, 256
          %2716 = vsyncadd %s2694, %s2715
          %s2717 = smul.addr %s35, 2
          %s2718 = smul.addr %s2717, 128
          %s2719 = scalar_lea.hbm %s7, %s2718
          %s2720 = sshll.u32 %s2697, 4
          %s2721 = int_to_ptr.vmem [resolvable:$true] %s2720
          %2726 = dma.vmem_to_hbm [thread:$0]  %s2721, 256, %s2719, %s2694, 128, 128, 8
        $region68: #{tpu_custom_call.1} parent=43 // pred_fallthru
          _
      $region44: #{tpu_custom_call.1} parent=5 // pred_fallthru
        _
      %p2727 = scmp.le.s32.totalorder 2, %s26
      // Predicated region
      $region69: #{tpu_custom_call.1} parent=5 // pred_check
        %p2728 = pneg %p2727
      $region70: #{tpu_custom_call.1} parent=5 // pred_check_branch
        %2730 = sbr.rel (%p2728) target = $region72
      $region71: #{tpu_custom_call.1} parent=5 // pred_region
        %s2731 = ssub.s32 %s26, 2
        // Predicated region
        $region73: #{tpu_custom_call.1} parent=71 // pred_check
          %p2732 = pneg %p223
        $region74: #{tpu_custom_call.1} parent=71 // pred_check_branch
          %2734 = sbr.rel (%p2732) target = $region76
        $region75: #{tpu_custom_call.1} parent=71 // pred_region
          %s2735 = sand.u32 %s208, 1
          %s2736 = scalar_lea.sflag [#allocation6], %s2735
          %s2737 = sand.u32 %s208, 1
          %s2738 = smul.addr %s2737, 8
          %s2739 = scalar_lea.vmem [#allocation9], %s2738
          %2740 = dma.done %s2736, 128
        $region76: #{tpu_custom_call.1} parent=71 // pred_fallthru
          _
        // Predicated region
        $region77: #{tpu_custom_call.1} parent=71 // pred_check
          %p2741 = pneg %p249
        $region78: #{tpu_custom_call.1} parent=71 // pred_check_branch
          %2743 = sbr.rel (%p2741) target = $region80
        $region79: #{tpu_custom_call.1} parent=71 // pred_region
          %s2744 = sand.u32 %s234, 1
          %s2745 = scalar_lea.sflag [#allocation11], %s2744
          %s2746 = sand.u32 %s234, 1
          %s2747 = smul.addr %s2746, 16
          %s2748 = scalar_lea.vmem [#allocation10], %s2747
          %2749 = dma.done %s2745, 256
        $region80: #{tpu_custom_call.1} parent=71 // pred_fallthru
          _
      $region72: #{tpu_custom_call.1} parent=5 // pred_fallthru
        _
    $region6: #{tpu_custom_call.1} parent=1 // loop_footer
      %s30 = sadd.s32 1, %s26
    $region7: #{tpu_custom_call.1} parent=1 // loop_footer_branch
      %25 = sbr.rel target = $region3
    $region8: #{tpu_custom_call.1} parent=1 // loop_exit
      _
    %2750 = vsyncpa [#allocation5], 1
    %s2751 = scalar_lea.sflag [#allocation5], 1
    %2752 = vsyncpa %s2751, 1
    %2753 = vsyncpa [#allocation8], 1
    %s2754 = scalar_lea.sflag [#allocation8], 1
    %2755 = vsyncpa %s2754, 1
    %2756 = vsyncpa [#allocation6], 1
    %s2757 = scalar_lea.sflag [#allocation6], 1
    %2758 = vsyncpa %s2757, 1
    %2759 = vsyncpa [#allocation11], 1
    %s2760 = scalar_lea.sflag [#allocation11], 1
    %2761 = vsyncpa %s2760, 1

</llo_original>
